<compile_context>
chip_gen: v7x
topology: tpu7x:2x2x1
jax: 0.10.0
libtpu: 0.0.40
codegen_flags: <defaults>
</compile_context>

<pallas_src>
import functools
import inspect

import jax
import jax.numpy as jnp
from jax import lax
from jax.experimental import pallas as pl
from jax.experimental.pallas import tpu as pltpu

EPS = 1e-5
LANE = 128

# Set to jnp.bfloat16 on v6e/v7x for ~2x MXU throughput (accumulation stays f32).
MATMUL_DTYPE = jnp.float32

try:
    _SINGLE_BUFFER_OK = (
        hasattr(pl, "Buffered")
        and "pipeline_mode" in inspect.signature(pl.BlockSpec).parameters)
except Exception:
    _SINGLE_BUFFER_OK = False


def _round_up(x, m):
    return (x + m - 1) // m * m


# ----------------------------- kernel helpers -----------------------------
def _gn_silu(x, gamma, beta, n_real):
    """GroupNorm(num_groups=1) + SiLU over one sample x:(H,W,Cp), single-pass stats.

    Padded channels of x are exactly zero so they do not perturb the sums; we
    divide by the REAL element count. gamma/beta are zero-padded, so padded
    channels come out exactly zero after the affine (and SiLU(0) = 0).
    """
    s = jnp.sum(x)
    ss = jnp.sum(x * x)
    mu = s / n_real
    var = jnp.maximum(ss / n_real - mu * mu, 0.0)
    h = (x - mu) * lax.rsqrt(var + EPS) * gamma + beta
    return h * jax.nn.sigmoid(h)          # SiLU


def _conv3x3(h, pad_ref, w_ref, bias, H, W, kc):
    """3x3 conv (pad=1, stride=1) as ONE im2col matmul.

    h:(H,W,kc) f32; pad_ref:(H+2,W+2,>=kc) VMEM scratch with a zero halo ring;
    w_ref:(9*kc, cout) ordered [dy, dx, cin]-major; bias:(1, cout).
    """
    cout = w_ref.shape[1]
    # Interior store only -- the halo stays zero; stale channels beyond kc are never read.
    pad_ref[1:H + 1, 1:W + 1, 0:kc] = h
    # im2col: gather the 9 taps, concatenate along the lane (channel) axis.
    cols = []
    for dy in range(3):
        for dx in range(3):
            cols.append(pad_ref[dy:dy + H, dx:dx + W, 0:kc].reshape(H * W, kc))
    patch = jnp.concatenate(cols, axis=1).astype(MATMUL_DTYPE)      # (H*W, 9*kc)
    out = jnp.dot(patch, w_ref[...].astype(MATMUL_DTYPE),
                  preferred_element_type=jnp.float32)               # (H*W, cout)
    return (out + bias).reshape(H, W, cout)


# ------------------------------- the kernel -------------------------------
def _resblock_kernel(x_ref,
                     g1_ref, bt1_ref, w1_ref, b1_ref,
                     g2_ref, bt2_ref, w2_ref, b2_ref,
                     ws_ref, bs_ref,
                     o_ref,
                     pad_ref,
                     *, H, W, cin_p, cout_p, n_in, n_out):
    cp_max = pad_ref.shape[2]
    # Zero only the 1-pixel halo ring (the interior is overwritten by every conv).
    # Re-done each grid step so correctness holds when the batch axis is sharded
    # across TensorCores ("parallel" dimension_semantics).
    zrow = jnp.zeros((1, W + 2, cp_max), jnp.float32)
    zcol = jnp.zeros((H + 2, 1, cp_max), jnp.float32)
    pad_ref[0:1, :, :] = zrow
    pad_ref[H + 1:H + 2, :, :] = zrow
    pad_ref[:, 0:1, :] = zcol
    pad_ref[:, W + 1:W + 2, :] = zcol

    x = x_ref[0].astype(jnp.float32)                          # (H, W, cin_p)

    # in_layers: GroupNorm(1) -> SiLU -> conv3x3
    h = _gn_silu(x, g1_ref[...], bt1_ref[...], n_in)
    h = _conv3x3(h, pad_ref, w1_ref, b1_ref[...], H, W, cin_p)

    # out_layers: GroupNorm(1) -> SiLU -> Dropout(eval: identity) -> conv3x3
    h = _gn_silu(h, g2_ref[...], bt2_ref[...], n_out)
    h = _conv3x3(h, pad_ref, w2_ref, b2_ref[...], H, W, cout_p)

    # skip_connection: 1x1 conv (channels != out_channels, use_conv=False)
    skip = jnp.dot(x.reshape(H * W, cin_p).astype(MATMUL_DTYPE),
                   ws_ref[...].astype(MATMUL_DTYPE),
                   preferred_element_type=jnp.float32) + bs_ref[...]
    o_ref[0] = (skip.reshape(H, W, cout_p) + h).astype(o_ref.dtype)


# -------------------------------- wrappers ----------------------------------
def _const_spec(shape):
    """BlockSpec for an operand that is constant across the grid."""
    idx = lambda n: (0,) * len(shape)
    if _SINGLE_BUFFER_OK:
        # Constant index -> single-buffer to halve its VMEM footprint (matters on v7x).
        return pl.BlockSpec(shape, idx, pipeline_mode=pl.Buffered(1))
    return pl.BlockSpec(shape, idx)


def _pad_last(a, target):
    pad = target - a.shape[-1]
    if pad == 0:
        return a
    return jnp.pad(a, [(0, 0)] * (a.ndim - 1) + [(0, pad)])


@jax.jit
def resblock_pallas_nhwc(x_nhwc, params):
    """Channels-last entry point (preferred: no NCHW<->NHWC HBM round trips)."""
    (g1, bt1, w1, b1, g2, bt2, w2, b2, ws, bs) = params
    N, H, W, Cin = x_nhwc.shape
    Cout = w1.shape[-1]
    cin_p = _round_up(Cin, LANE)
    cout_p = _round_up(Cout, LANE)
    cp_max = max(cin_p, cout_p)

    # Lane-dense (128-padded) channels everywhere; zero padding keeps the math exact.
    x_p = _pad_last(x_nhwc, cin_p)
    g1_p, bt1_p = _pad_last(g1, cin_p), _pad_last(bt1, cin_p)
    g2_p, bt2_p = _pad_last(g2, cout_p), _pad_last(bt2, cout_p)
    b1_p, b2_p, bs_p = (_pad_last(b1, cout_p), _pad_last(b2, cout_p),
                        _pad_last(bs, cout_p))
    w1_p = jnp.pad(w1, ((0, 0), (0, 0), (0, cin_p - Cin), (0, cout_p - Cout))
                   ).reshape(9 * cin_p, cout_p)              # [dy, dx, cin]-major
    w2_p = jnp.pad(w2, ((0, 0), (0, 0), (0, cout_p - Cout), (0, cout_p - Cout))
                   ).reshape(9 * cout_p, cout_p)
    ws_p = jnp.pad(ws, ((0, cin_p - Cin), (0, cout_p - Cout)))

    kernel = functools.partial(
        _resblock_kernel, H=H, W=W, cin_p=cin_p, cout_p=cout_p,
        n_in=H * W * Cin, n_out=H * W * Cout)

    # VMEM budget (f32 bytes): double-buffered x/out blocks + haloed scratch +
    # single-buffered weights + im2col patch live values, with headroom.
    vmem_bytes = 4 * (2 * H * W * (cin_p + cout_p)
                      + (H + 2) * (W + 2) * cp_max
                      + 9 * cin_p * cout_p + 9 * cout_p * cout_p + cin_p * cout_p
                      + 2 * 9 * H * W * cp_max)
    vmem_limit = min(int(1.5 * vmem_bytes) + (8 << 20), 100 << 20)
    # TODO(synk): for v7x at large H/W/C (64 MiB VMEM), add an H-strip grid axis
    # with a two-pass GroupNorm instead of keeping the whole sample resident.

    out_p = pl.pallas_call(
        kernel,
        out_shape=jax.ShapeDtypeStruct((N, H, W, cout_p), x_nhwc.dtype),
        grid_spec=pltpu.PrefetchScalarGridSpec(
            num_scalar_prefetch=0,
            grid=(N,),
            in_specs=[
                pl.BlockSpec((1, H, W, cin_p), lambda n: (n, 0, 0, 0)),   # x
                _const_spec((1, cin_p)),                                  # gn1 gamma
                _const_spec((1, cin_p)),                                  # gn1 beta
                _const_spec((9 * cin_p, cout_p)),                         # conv1 w (im2col)
                _const_spec((1, cout_p)),                                 # conv1 b
                _const_spec((1, cout_p)),                                 # gn2 gamma
                _const_spec((1, cout_p)),                                 # gn2 beta
                _const_spec((9 * cout_p, cout_p)),                        # conv2 w (im2col)
                _const_spec((1, cout_p)),                                 # conv2 b
                _const_spec((cin_p, cout_p)),                             # skip 1x1 w
                _const_spec((1, cout_p)),                                 # skip b
            ],
            out_specs=pl.BlockSpec((1, H, W, cout_p), lambda n: (n, 0, 0, 0)),
            scratch_shapes=[
                pltpu.VMEM((H + 2, W + 2, cp_max), jnp.float32),
            ],
        ),
        compiler_params=pltpu.CompilerParams(
            dimension_semantics=("parallel",),        # batch items are independent
            vmem_limit_bytes=vmem_limit),
    )(x_p, g1_p, bt1_p, w1_p, b1_p, g2_p, bt2_p, w2_p, b2_p, ws_p, bs_p)

    return out_p[..., :Cout]


@jax.jit
def resblock_pallas(x_nchw, params):
    """PyTorch-layout (NCHW) wrapper; channels-last callers should use the NHWC
    entry point directly. Under jit the transpose+pad / slice+transpose fuse."""
    out_nhwc = resblock_pallas_nhwc(jnp.transpose(x_nchw, (0, 2, 3, 1)), params)
    return jnp.transpose(out_nhwc, (0, 3, 1, 2))


# --------------------------- pure-JAX reference ----------------------------
def resblock_ref(x_nchw, params):
    (g1, bt1, w1, b1, g2, bt2, w2, b2, ws, bs) = params
    x = jnp.transpose(x_nchw, (0, 2, 3, 1)).astype(jnp.float32)

    def gn(h, gamma, beta):
        mu = jnp.mean(h, axis=(1, 2, 3), keepdims=True)
        var = jnp.mean(jnp.square(h - mu), axis=(1, 2, 3), keepdims=True)
        return (h - mu) * lax.rsqrt(var + EPS) * gamma.reshape(1, 1, 1, -1) \
            + beta.reshape(1, 1, 1, -1)

    def silu(h):
        return h * jax.nn.sigmoid(h)

    def conv(h, w, b, pad):
        y = lax.conv_general_dilated(h, w, (1, 1), [(pad, pad), (pad, pad)],
                                     dimension_numbers=("NHWC", "HWIO", "NHWC"))
        return y + b.reshape(1, 1, 1, -1)

    h = conv(silu(gn(x, g1, bt1)), w1, b1, 1)
    h = conv(silu(gn(h, g2, bt2)), w2, b2, 1)
    skip = conv(x, ws.reshape(1, 1, *ws.shape), bs, 0)
    return jnp.transpose(skip + h, (0, 3, 1, 2))


# ------------------------------- param init --------------------------------
def init_params(key, cin, cout):
    ks = jax.random.split(key, 8)
    g1 = 1.0 + 0.1 * jax.random.normal(ks[0], (1, cin), jnp.float32)
    bt1 = 0.1 * jax.random.normal(ks[1], (1, cin), jnp.float32)
    w1 = 0.1 * jax.random.normal(ks[2], (3, 3, cin, cout), jnp.float32)   # HWIO
    b1 = 0.1 * jax.random.normal(ks[3], (1, cout), jnp.float32)
    g2 = 1.0 + 0.1 * jax.random.normal(ks[4], (1, cout), jnp.float32)
    bt2 = 0.1 * jax.random.normal(ks[5], (1, cout), jnp.float32)
    # original module zero-inits this conv (zero_module); random here to exercise compute
    w2 = 0.1 * jax.random.normal(ks[6], (3, 3, cout, cout), jnp.float32)
    b2 = 0.1 * jax.random.normal(ks[7], (1, cout), jnp.float32)
    kws, kbs = jax.random.split(ks[0])
    ws = 0.1 * jax.random.normal(kws, (cin, cout), jnp.float32)           # 1x1 skip conv
    bs = 0.1 * jax.random.normal(kbs, (1, cout), jnp.float32)
    return (g1, bt1, w1, b1, g2, bt2, w2, b2, ws, bs)


if __name__ == "__main__":
    key = jax.random.PRNGKey(0)
    N, Cin, Cout, H, W = 2, 4, 8, 16, 16
    kx, kp = jax.random.split(key)
    x = jax.random.normal(kx, (N, Cin, H, W), jnp.float32)   # NCHW, like PyTorch
    params = init_params(kp, Cin, Cout)

    out = jax.block_until_ready(resblock_pallas(x, params))
    ref = jax.block_until_ready(resblock_ref(x, params))

    assert out.shape == (N, Cout, H, W)
    err = jnp.max(jnp.abs(out - ref))
    assert jnp.allclose(out, ref, atol=2e-4, rtol=2e-4), f"max err {err}"
    print("KERNEL_OK")
</pallas_src>

<mosaic_0001>
module attributes {stable_mosaic.version = 11 : i64} {
  func.func @_resblock_kernel(%arg0: i32, %arg1: memref<1x16x16x128xf32, #tpu.memory_space<vmem>>, %arg2: memref<1x128xf32, #tpu.memory_space<vmem>>, %arg3: memref<1x128xf32, #tpu.memory_space<vmem>>, %arg4: memref<1152x128xf32, #tpu.memory_space<vmem>>, %arg5: memref<1x128xf32, #tpu.memory_space<vmem>>, %arg6: memref<1x128xf32, #tpu.memory_space<vmem>>, %arg7: memref<1x128xf32, #tpu.memory_space<vmem>>, %arg8: memref<1152x128xf32, #tpu.memory_space<vmem>>, %arg9: memref<1x128xf32, #tpu.memory_space<vmem>>, %arg10: memref<128x128xf32, #tpu.memory_space<vmem>>, %arg11: memref<1x128xf32, #tpu.memory_space<vmem>>, %arg12: memref<1x16x16x128xf32, #tpu.memory_space<vmem>>, %arg13: memref<18x18x128xf32, #tpu.memory_space<vmem>>) attributes {dimension_semantics = [#tpu.dimension_semantics<parallel>], iteration_bounds = array<i64: 2>, scalar_prefetch = 0 : i64, scratch_operands = 1 : i64, tpu.core_type = #tpu.core_type<tc>, window_params = [{transform_indices = @transform_0, window_bounds = array<i64: 1, 16, 16, 128>}, {pipeline_mode = #tpu.pipeline_mode<synchronous>, transform_indices = @transform_1, window_bounds = array<i64: 1, 128>}, {pipeline_mode = #tpu.pipeline_mode<synchronous>, transform_indices = @transform_2, window_bounds = array<i64: 1, 128>}, {pipeline_mode = #tpu.pipeline_mode<synchronous>, transform_indices = @transform_3, window_bounds = array<i64: 1152, 128>}, {pipeline_mode = #tpu.pipeline_mode<synchronous>, transform_indices = @transform_4, window_bounds = array<i64: 1, 128>}, {pipeline_mode = #tpu.pipeline_mode<synchronous>, transform_indices = @transform_5, window_bounds = array<i64: 1, 128>}, {pipeline_mode = #tpu.pipeline_mode<synchronous>, transform_indices = @transform_6, window_bounds = array<i64: 1, 128>}, {pipeline_mode = #tpu.pipeline_mode<synchronous>, transform_indices = @transform_7, window_bounds = array<i64: 1152, 128>}, {pipeline_mode = #tpu.pipeline_mode<synchronous>, transform_indices = @transform_8, window_bounds = array<i64: 1, 128>}, {pipeline_mode = #tpu.pipeline_mode<synchronous>, transform_indices = @transform_9, window_bounds = array<i64: 128, 128>}, {pipeline_mode = #tpu.pipeline_mode<synchronous>, transform_indices = @transform_10, window_bounds = array<i64: 1, 128>}, {transform_indices = @transform_11, window_bounds = array<i64: 1, 16, 16, 128>}]} {
    %cst = arith.constant 0.000000e+00 : f32
    %0 = vector.broadcast %cst : f32 to vector<1x18x128xf32>
    %cst_0 = arith.constant 0.000000e+00 : f32
    %1 = vector.broadcast %cst_0 : f32 to vector<18x1x128xf32>
    %c0 = arith.constant 0 : index
    %c0_1 = arith.constant 0 : index
    %c0_2 = arith.constant 0 : index
    %2 = vector.load %arg13[%c0, %c0_1, %c0_2] : memref<18x18x128xf32, #tpu.memory_space<vmem>>, vector<1x18x128xf32>
    tpu.vector_store %arg13[%c0, %c0_1, %c0_2], %0 {strides = array<i32>} : memref<18x18x128xf32, #tpu.memory_space<vmem>>, vector<1x18x128xf32>,
    %c17 = arith.constant 17 : index
    %c0_3 = arith.constant 0 : index
    %c0_4 = arith.constant 0 : index
    %3 = vector.load %arg13[%c17, %c0_3, %c0_4] : memref<18x18x128xf32, #tpu.memory_space<vmem>>, vector<1x18x128xf32>
    tpu.vector_store %arg13[%c17, %c0_3, %c0_4], %0 {strides = array<i32>} : memref<18x18x128xf32, #tpu.memory_space<vmem>>, vector<1x18x128xf32>,
    %c0_5 = arith.constant 0 : index
    %c0_6 = arith.constant 0 : index
    %c0_7 = arith.constant 0 : index
    %4 = vector.load %arg13[%c0_5, %c0_6, %c0_7] : memref<18x18x128xf32, #tpu.memory_space<vmem>>, vector<18x1x128xf32>
    tpu.vector_store %arg13[%c0_5, %c0_6, %c0_7], %1 {strides = array<i32>} : memref<18x18x128xf32, #tpu.memory_space<vmem>>, vector<18x1x128xf32>,
    %c0_8 = arith.constant 0 : index
    %c17_9 = arith.constant 17 : index
    %c0_10 = arith.constant 0 : index
    %5 = vector.load %arg13[%c0_8, %c17_9, %c0_10] : memref<18x18x128xf32, #tpu.memory_space<vmem>>, vector<18x1x128xf32>
    tpu.vector_store %arg13[%c0_8, %c17_9, %c0_10], %1 {strides = array<i32>} : memref<18x18x128xf32, #tpu.memory_space<vmem>>, vector<18x1x128xf32>,
    %c0_11 = arith.constant 0 : index
    %c0_12 = arith.constant 0 : index
    %c0_13 = arith.constant 0 : index
    %c0_14 = arith.constant 0 : index
    %6 = vector.load %arg1[%c0_11, %c0_12, %c0_13, %c0_14] : memref<1x16x16x128xf32, #tpu.memory_space<vmem>>, vector<1x16x16x128xf32>
    %7 = vector.shape_cast %6 : vector<1x16x16x128xf32> to vector<16x16x128xf32>
    %c0_15 = arith.constant 0 : index
    %c0_16 = arith.constant 0 : index
    %8 = vector.load %arg2[%c0_15, %c0_16] : memref<1x128xf32, #tpu.memory_space<vmem>>, vector<1x128xf32>
    %c0_17 = arith.constant 0 : index
    %c0_18 = arith.constant 0 : index
    %9 = vector.load %arg3[%c0_17, %c0_18] : memref<1x128xf32, #tpu.memory_space<vmem>>, vector<1x128xf32>
    %10 = vector.shape_cast %7 : vector<16x16x128xf32> to vector<1x16x16x128xf32>
    %cst_19 = arith.constant dense<0.000000e+00> : vector<1xf32>
    %11 = vector.multi_reduction <add>, %10, %cst_19 [1, 2, 3] : vector<1x16x16x128xf32> to vector<1xf32>
    %12 = vector.shape_cast %11 : vector<1xf32> to vector<1x1x1x1xf32>
    %13 = vector.extract %12[0, 0, 0, 0] : f32 from vector<1x1x1x1xf32>
    %14 = arith.mulf %7, %7 : vector<16x16x128xf32>
    %15 = vector.shape_cast %14 : vector<16x16x128xf32> to vector<1x16x16x128xf32>
    %cst_20 = arith.constant dense<0.000000e+00> : vector<1xf32>
    %16 = vector.multi_reduction <add>, %15, %cst_20 [1, 2, 3] : vector<1x16x16x128xf32> to vector<1xf32>
    %17 = vector.shape_cast %16 : vector<1xf32> to vector<1x1x1x1xf32>
    %18 = vector.extract %17[0, 0, 0, 0] : f32 from vector<1x1x1x1xf32>
    %cst_21 = arith.constant 1.024000e+03 : f32
    %19 = arith.divf %13, %cst_21 : f32
    %cst_22 = arith.constant 1.024000e+03 : f32
    %20 = arith.divf %18, %cst_22 : f32
    %21 = arith.mulf %19, %19 : f32
    %22 = arith.subf %20, %21 : f32
    %cst_23 = arith.constant 0.000000e+00 : f32
    %23 = arith.maximumf %22, %cst_23 : f32
    %24 = vector.broadcast %19 : f32 to vector<16x16x128xf32>
    %25 = arith.subf %7, %24 : vector<16x16x128xf32>
    %cst_24 = arith.constant 9.99999974E-6 : f32
    %26 = arith.addf %23, %cst_24 : f32
    %27 = math.rsqrt %26 : f32
    %28 = vector.broadcast %27 : f32 to vector<16x16x128xf32>
    %29 = arith.mulf %25, %28 : vector<16x16x128xf32>
    %30 = vector.shape_cast %8 : vector<1x128xf32> to vector<1x1x128xf32>
    %31 = vector.broadcast %30 : vector<1x1x128xf32> to vector<16x16x128xf32>
    %32 = arith.mulf %29, %31 : vector<16x16x128xf32>
    %33 = vector.shape_cast %9 : vector<1x128xf32> to vector<1x1x128xf32>
    %34 = vector.broadcast %33 : vector<1x1x128xf32> to vector<16x16x128xf32>
    %35 = arith.addf %32, %34 : vector<16x16x128xf32>
    %36 = arith.negf %35 : vector<16x16x128xf32>
    %37 = math.exp %36 : vector<16x16x128xf32>
    %cst_25 = arith.constant 1.000000e+00 : f32
    %38 = vector.broadcast %cst_25 : f32 to vector<16x16x128xf32>
    %39 = arith.addf %38, %37 : vector<16x16x128xf32>
    %40 = arith.divf %38, %39 : vector<16x16x128xf32>
    %41 = arith.mulf %35, %40 : vector<16x16x128xf32>
    %c0_26 = arith.constant 0 : index
    %c0_27 = arith.constant 0 : index
    %42 = vector.load %arg5[%c0_26, %c0_27] : memref<1x128xf32, #tpu.memory_space<vmem>>, vector<1x128xf32>
    %c1 = arith.constant 1 : index
    %c1_28 = arith.constant 1 : index
    %c0_29 = arith.constant 0 : index
    %43 = vector.load %arg13[%c1, %c1_28, %c0_29] : memref<18x18x128xf32, #tpu.memory_space<vmem>>, vector<16x16x128xf32>
    tpu.vector_store %arg13[%c1, %c1_28, %c0_29], %41 {strides = array<i32>} : memref<18x18x128xf32, #tpu.memory_space<vmem>>, vector<16x16x128xf32>,
    %c0_30 = arith.constant 0 : index
    %c0_31 = arith.constant 0 : index
    %c0_32 = arith.constant 0 : index
    %44 = vector.load %arg13[%c0_30, %c0_31, %c0_32] : memref<18x18x128xf32, #tpu.memory_space<vmem>>, vector<16x16x128xf32>
    %45 = vector.shape_cast %44 : vector<16x16x128xf32> to vector<256x128xf32>
    %c0_33 = arith.constant 0 : index
    %c1_34 = arith.constant 1 : index
    %c0_35 = arith.constant 0 : index
    %46 = vector.load %arg13[%c0_33, %c1_34, %c0_35] : memref<18x18x128xf32, #tpu.memory_space<vmem>>, vector<16x16x128xf32>
    %47 = vector.shape_cast %46 : vector<16x16x128xf32> to vector<256x128xf32>
    %c0_36 = arith.constant 0 : index
    %c2 = arith.constant 2 : index
    %c0_37 = arith.constant 0 : index
    %48 = vector.load %arg13[%c0_36, %c2, %c0_37] : memref<18x18x128xf32, #tpu.memory_space<vmem>>, vector<16x16x128xf32>
    %49 = vector.shape_cast %48 : vector<16x16x128xf32> to vector<256x128xf32>
    %c1_38 = arith.constant 1 : index
    %c0_39 = arith.constant 0 : index
    %c0_40 = arith.constant 0 : index
    %50 = vector.load %arg13[%c1_38, %c0_39, %c0_40] : memref<18x18x128xf32, #tpu.memory_space<vmem>>, vector<16x16x128xf32>
    %51 = vector.shape_cast %50 : vector<16x16x128xf32> to vector<256x128xf32>
    %c1_41 = arith.constant 1 : index
    %c1_42 = arith.constant 1 : index
    %c0_43 = arith.constant 0 : index
    %52 = vector.load %arg13[%c1_41, %c1_42, %c0_43] : memref<18x18x128xf32, #tpu.memory_space<vmem>>, vector<16x16x128xf32>
    %53 = vector.shape_cast %52 : vector<16x16x128xf32> to vector<256x128xf32>
    %c1_44 = arith.constant 1 : index
    %c2_45 = arith.constant 2 : index
    %c0_46 = arith.constant 0 : index
    %54 = vector.load %arg13[%c1_44, %c2_45, %c0_46] : memref<18x18x128xf32, #tpu.memory_space<vmem>>, vector<16x16x128xf32>
    %55 = vector.shape_cast %54 : vector<16x16x128xf32> to vector<256x128xf32>
    %c2_47 = arith.constant 2 : index
    %c0_48 = arith.constant 0 : index
    %c0_49 = arith.constant 0 : index
    %56 = vector.load %arg13[%c2_47, %c0_48, %c0_49] : memref<18x18x128xf32, #tpu.memory_space<vmem>>, vector<16x16x128xf32>
    %57 = vector.shape_cast %56 : vector<16x16x128xf32> to vector<256x128xf32>
    %c2_50 = arith.constant 2 : index
    %c1_51 = arith.constant 1 : index
    %c0_52 = arith.constant 0 : index
    %58 = vector.load %arg13[%c2_50, %c1_51, %c0_52] : memref<18x18x128xf32, #tpu.memory_space<vmem>>, vector<16x16x128xf32>
    %59 = vector.shape_cast %58 : vector<16x16x128xf32> to vector<256x128xf32>
    %c2_53 = arith.constant 2 : index
    %c2_54 = arith.constant 2 : index
    %c0_55 = arith.constant 0 : index
    %60 = vector.load %arg13[%c2_53, %c2_54, %c0_55] : memref<18x18x128xf32, #tpu.memory_space<vmem>>, vector<16x16x128xf32>
    %61 = vector.shape_cast %60 : vector<16x16x128xf32> to vector<256x128xf32>
    %62 = tpu.concatenate %45, %47, %49, %51, %53, %55, %57, %59, %61 in 1 : vector<256x128xf32>, vector<256x128xf32>, vector<256x128xf32>, vector<256x128xf32>, vector<256x128xf32>, vector<256x128xf32>, vector<256x128xf32>, vector<256x128xf32>, vector<256x128xf32> -> vector<256x1152xf32>
    %c0_56 = arith.constant 0 : index
    %c0_57 = arith.constant 0 : index
    %63 = vector.load %arg4[%c0_56, %c0_57] : memref<1152x128xf32, #tpu.memory_space<vmem>>, vector<1152x128xf32>
    %cst_58 = arith.constant dense<0.000000e+00> : vector<256x128xf32>
    %64 = tpu.matmul %62, %63, %cst_58 {dimension_numbers = #tpu.dot_dimension_numbers<[1], [0], [0], [1], [0, 0, 1, 1], [], []>} : vector<256x1152xf32>, vector<1152x128xf32>, vector<256x128xf32> -> vector<256x128xf32>
    %65 = vector.broadcast %42 : vector<1x128xf32> to vector<256x128xf32>
    %66 = arith.addf %64, %65 : vector<256x128xf32>
    %67 = vector.shape_cast %66 : vector<256x128xf32> to vector<16x16x128xf32>
    %c0_59 = arith.constant 0 : index
    %c0_60 = arith.constant 0 : index
    %68 = vector.load %arg6[%c0_59, %c0_60] : memref<1x128xf32, #tpu.memory_space<vmem>>, vector<1x128xf32>
    %c0_61 = arith.constant 0 : index
    %c0_62 = arith.constant 0 : index
    %69 = vector.load %arg7[%c0_61, %c0_62] : memref<1x128xf32, #tpu.memory_space<vmem>>, vector<1x128xf32>
    %70 = vector.shape_cast %67 : vector<16x16x128xf32> to vector<1x16x16x128xf32>
    %cst_63 = arith.constant dense<0.000000e+00> : vector<1xf32>
    %71 = vector.multi_reduction <add>, %70, %cst_63 [1, 2, 3] : vector<1x16x16x128xf32> to vector<1xf32>
    %72 = vector.shape_cast %71 : vector<1xf32> to vector<1x1x1x1xf32>
    %73 = vector.extract %72[0, 0, 0, 0] : f32 from vector<1x1x1x1xf32>
    %74 = arith.mulf %67, %67 : vector<16x16x128xf32>
    %75 = vector.shape_cast %74 : vector<16x16x128xf32> to vector<1x16x16x128xf32>
    %cst_64 = arith.constant dense<0.000000e+00> : vector<1xf32>
    %76 = vector.multi_reduction <add>, %75, %cst_64 [1, 2, 3] : vector<1x16x16x128xf32> to vector<1xf32>
    %77 = vector.shape_cast %76 : vector<1xf32> to vector<1x1x1x1xf32>
    %78 = vector.extract %77[0, 0, 0, 0] : f32 from vector<1x1x1x1xf32>
    %cst_65 = arith.constant 2.048000e+03 : f32
    %79 = arith.divf %73, %cst_65 : f32
    %cst_66 = arith.constant 2.048000e+03 : f32
    %80 = arith.divf %78, %cst_66 : f32
    %81 = arith.mulf %79, %79 : f32
    %82 = arith.subf %80, %81 : f32
    %cst_67 = arith.constant 0.000000e+00 : f32
    %83 = arith.maximumf %82, %cst_67 : f32
    %84 = vector.broadcast %79 : f32 to vector<16x16x128xf32>
    %85 = arith.subf %67, %84 : vector<16x16x128xf32>
    %cst_68 = arith.constant 9.99999974E-6 : f32
    %86 = arith.addf %83, %cst_68 : f32
    %87 = math.rsqrt %86 : f32
    %88 = vector.broadcast %87 : f32 to vector<16x16x128xf32>
    %89 = arith.mulf %85, %88 : vector<16x16x128xf32>
    %90 = vector.shape_cast %68 : vector<1x128xf32> to vector<1x1x128xf32>
    %91 = vector.broadcast %90 : vector<1x1x128xf32> to vector<16x16x128xf32>
    %92 = arith.mulf %89, %91 : vector<16x16x128xf32>
    %93 = vector.shape_cast %69 : vector<1x128xf32> to vector<1x1x128xf32>
    %94 = vector.broadcast %93 : vector<1x1x128xf32> to vector<16x16x128xf32>
    %95 = arith.addf %92, %94 : vector<16x16x128xf32>
    %96 = arith.negf %95 : vector<16x16x128xf32>
    %97 = math.exp %96 : vector<16x16x128xf32>
    %cst_69 = arith.constant 1.000000e+00 : f32
    %98 = vector.broadcast %cst_69 : f32 to vector<16x16x128xf32>
    %99 = arith.addf %98, %97 : vector<16x16x128xf32>
    %100 = arith.divf %98, %99 : vector<16x16x128xf32>
    %101 = arith.mulf %95, %100 : vector<16x16x128xf32>
    %c0_70 = arith.constant 0 : index
    %c0_71 = arith.constant 0 : index
    %102 = vector.load %arg9[%c0_70, %c0_71] : memref<1x128xf32, #tpu.memory_space<vmem>>, vector<1x128xf32>
    %c1_72 = arith.constant 1 : index
    %c1_73 = arith.constant 1 : index
    %c0_74 = arith.constant 0 : index
    %103 = vector.load %arg13[%c1_72, %c1_73, %c0_74] : memref<18x18x128xf32, #tpu.memory_space<vmem>>, vector<16x16x128xf32>
    tpu.vector_store %arg13[%c1_72, %c1_73, %c0_74], %101 {strides = array<i32>} : memref<18x18x128xf32, #tpu.memory_space<vmem>>, vector<16x16x128xf32>,
    %c0_75 = arith.constant 0 : index
    %c0_76 = arith.constant 0 : index
    %c0_77 = arith.constant 0 : index
    %104 = vector.load %arg13[%c0_75, %c0_76, %c0_77] : memref<18x18x128xf32, #tpu.memory_space<vmem>>, vector<16x16x128xf32>
    %105 = vector.shape_cast %104 : vector<16x16x128xf32> to vector<256x128xf32>
    %c0_78 = arith.constant 0 : index
    %c1_79 = arith.constant 1 : index
    %c0_80 = arith.constant 0 : index
    %106 = vector.load %arg13[%c0_78, %c1_79, %c0_80] : memref<18x18x128xf32, #tpu.memory_space<vmem>>, vector<16x16x128xf32>
    %107 = vector.shape_cast %106 : vector<16x16x128xf32> to vector<256x128xf32>
    %c0_81 = arith.constant 0 : index
    %c2_82 = arith.constant 2 : index
    %c0_83 = arith.constant 0 : index
    %108 = vector.load %arg13[%c0_81, %c2_82, %c0_83] : memref<18x18x128xf32, #tpu.memory_space<vmem>>, vector<16x16x128xf32>
    %109 = vector.shape_cast %108 : vector<16x16x128xf32> to vector<256x128xf32>
    %c1_84 = arith.constant 1 : index
    %c0_85 = arith.constant 0 : index
    %c0_86 = arith.constant 0 : index
    %110 = vector.load %arg13[%c1_84, %c0_85, %c0_86] : memref<18x18x128xf32, #tpu.memory_space<vmem>>, vector<16x16x128xf32>
    %111 = vector.shape_cast %110 : vector<16x16x128xf32> to vector<256x128xf32>
    %c1_87 = arith.constant 1 : index
    %c1_88 = arith.constant 1 : index
    %c0_89 = arith.constant 0 : index
    %112 = vector.load %arg13[%c1_87, %c1_88, %c0_89] : memref<18x18x128xf32, #tpu.memory_space<vmem>>, vector<16x16x128xf32>
    %113 = vector.shape_cast %112 : vector<16x16x128xf32> to vector<256x128xf32>
    %c1_90 = arith.constant 1 : index
    %c2_91 = arith.constant 2 : index
    %c0_92 = arith.constant 0 : index
    %114 = vector.load %arg13[%c1_90, %c2_91, %c0_92] : memref<18x18x128xf32, #tpu.memory_space<vmem>>, vector<16x16x128xf32>
    %115 = vector.shape_cast %114 : vector<16x16x128xf32> to vector<256x128xf32>
    %c2_93 = arith.constant 2 : index
    %c0_94 = arith.constant 0 : index
    %c0_95 = arith.constant 0 : index
    %116 = vector.load %arg13[%c2_93, %c0_94, %c0_95] : memref<18x18x128xf32, #tpu.memory_space<vmem>>, vector<16x16x128xf32>
    %117 = vector.shape_cast %116 : vector<16x16x128xf32> to vector<256x128xf32>
    %c2_96 = arith.constant 2 : index
    %c1_97 = arith.constant 1 : index
    %c0_98 = arith.constant 0 : index
    %118 = vector.load %arg13[%c2_96, %c1_97, %c0_98] : memref<18x18x128xf32, #tpu.memory_space<vmem>>, vector<16x16x128xf32>
    %119 = vector.shape_cast %118 : vector<16x16x128xf32> to vector<256x128xf32>
    %c2_99 = arith.constant 2 : index
    %c2_100 = arith.constant 2 : index
    %c0_101 = arith.constant 0 : index
    %120 = vector.load %arg13[%c2_99, %c2_100, %c0_101] : memref<18x18x128xf32, #tpu.memory_space<vmem>>, vector<16x16x128xf32>
    %121 = vector.shape_cast %120 : vector<16x16x128xf32> to vector<256x128xf32>
    %122 = tpu.concatenate %105, %107, %109, %111, %113, %115, %117, %119, %121 in 1 : vector<256x128xf32>, vector<256x128xf32>, vector<256x128xf32>, vector<256x128xf32>, vector<256x128xf32>, vector<256x128xf32>, vector<256x128xf32>, vector<256x128xf32>, vector<256x128xf32> -> vector<256x1152xf32>
    %c0_102 = arith.constant 0 : index
    %c0_103 = arith.constant 0 : index
    %123 = vector.load %arg8[%c0_102, %c0_103] : memref<1152x128xf32, #tpu.memory_space<vmem>>, vector<1152x128xf32>
    %cst_104 = arith.constant dense<0.000000e+00> : vector<256x128xf32>
    %124 = tpu.matmul %122, %123, %cst_104 {dimension_numbers = #tpu.dot_dimension_numbers<[1], [0], [0], [1], [0, 0, 1, 1], [], []>} : vector<256x1152xf32>, vector<1152x128xf32>, vector<256x128xf32> -> vector<256x128xf32>
    %125 = vector.broadcast %102 : vector<1x128xf32> to vector<256x128xf32>
    %126 = arith.addf %124, %125 : vector<256x128xf32>
    %127 = vector.shape_cast %126 : vector<256x128xf32> to vector<16x16x128xf32>
    %128 = vector.shape_cast %7 : vector<16x16x128xf32> to vector<256x128xf32>
    %c0_105 = arith.constant 0 : index
    %c0_106 = arith.constant 0 : index
    %129 = vector.load %arg10[%c0_105, %c0_106] : memref<128x128xf32, #tpu.memory_space<vmem>>, vector<128x128xf32>
    %cst_107 = arith.constant dense<0.000000e+00> : vector<256x128xf32>
    %130 = tpu.matmul %128, %129, %cst_107 {dimension_numbers = #tpu.dot_dimension_numbers<[1], [0], [0], [1], [0, 0, 1, 1], [], []>} : vector<256x128xf32>, vector<128x128xf32>, vector<256x128xf32> -> vector<256x128xf32>
    %c0_108 = arith.constant 0 : index
    %c0_109 = arith.constant 0 : index
    %131 = vector.load %arg11[%c0_108, %c0_109] : memref<1x128xf32, #tpu.memory_space<vmem>>, vector<1x128xf32>
    %132 = vector.broadcast %131 : vector<1x128xf32> to vector<256x128xf32>
    %133 = arith.addf %130, %132 : vector<256x128xf32>
    %134 = vector.shape_cast %133 : vector<256x128xf32> to vector<16x16x128xf32>
    %135 = arith.addf %134, %127 : vector<16x16x128xf32>
    %c0_110 = arith.constant 0 : index
    %c0_111 = arith.constant 0 : index
    %c0_112 = arith.constant 0 : index
    %c0_113 = arith.constant 0 : index
    %136 = vector.load %arg12[%c0_110, %c0_111, %c0_112, %c0_113] : memref<1x16x16x128xf32, #tpu.memory_space<vmem>>, vector<1x16x16x128xf32>
    %137 = vector.shape_cast %136 : vector<1x16x16x128xf32> to vector<16x16x128xf32>
    %138 = vector.shape_cast %135 : vector<16x16x128xf32> to vector<1x16x16x128xf32>
    tpu.vector_store %arg12[%c0_110, %c0_111, %c0_112, %c0_113], %138 {strides = array<i32>} : memref<1x16x16x128xf32, #tpu.memory_space<vmem>>, vector<1x16x16x128xf32>,
    return
  }
  func.func @transform_0(%arg0: i32) -> (i32, i32, i32, i32) {
    %c0_i32 = arith.constant 0 : i32
    %c0_i32_0 = arith.constant 0 : i32
    %c0_i32_1 = arith.constant 0 : i32
    %c0_i32_2 = arith.constant 0 : i32
    return %arg0, %c0_i32, %c0_i32_0, %c0_i32_1 : i32, i32, i32, i32
  }
  func.func @transform_1(%arg0: i32) -> (i32, i32) {
    %c0_i32 = arith.constant 0 : i32
    %c0_i32_0 = arith.constant 0 : i32
    %c0_i32_1 = arith.constant 0 : i32
    return %c0_i32, %c0_i32_0 : i32, i32
  }
  func.func @transform_2(%arg0: i32) -> (i32, i32) {
    %c0_i32 = arith.constant 0 : i32
    %c0_i32_0 = arith.constant 0 : i32
    %c0_i32_1 = arith.constant 0 : i32
    return %c0_i32, %c0_i32_0 : i32, i32
  }
  func.func @transform_3(%arg0: i32) -> (i32, i32) {
    %c0_i32 = arith.constant 0 : i32
    %c0_i32_0 = arith.constant 0 : i32
    %c0_i32_1 = arith.constant 0 : i32
    return %c0_i32, %c0_i32_0 : i32, i32
  }
  func.func @transform_4(%arg0: i32) -> (i32, i32) {
    %c0_i32 = arith.constant 0 : i32
    %c0_i32_0 = arith.constant 0 : i32
    %c0_i32_1 = arith.constant 0 : i32
    return %c0_i32, %c0_i32_0 : i32, i32
  }
  func.func @transform_5(%arg0: i32) -> (i32, i32) {
    %c0_i32 = arith.constant 0 : i32
    %c0_i32_0 = arith.constant 0 : i32
    %c0_i32_1 = arith.constant 0 : i32
    return %c0_i32, %c0_i32_0 : i32, i32
  }
  func.func @transform_6(%arg0: i32) -> (i32, i32) {
    %c0_i32 = arith.constant 0 : i32
    %c0_i32_0 = arith.constant 0 : i32
    %c0_i32_1 = arith.constant 0 : i32
    return %c0_i32, %c0_i32_0 : i32, i32
  }
  func.func @transform_7(%arg0: i32) -> (i32, i32) {
    %c0_i32 = arith.constant 0 : i32
    %c0_i32_0 = arith.constant 0 : i32
    %c0_i32_1 = arith.constant 0 : i32
    return %c0_i32, %c0_i32_0 : i32, i32
  }
  func.func @transform_8(%arg0: i32) -> (i32, i32) {
    %c0_i32 = arith.constant 0 : i32
    %c0_i32_0 = arith.constant 0 : i32
    %c0_i32_1 = arith.constant 0 : i32
    return %c0_i32, %c0_i32_0 : i32, i32
  }
  func.func @transform_9(%arg0: i32) -> (i32, i32) {
    %c0_i32 = arith.constant 0 : i32
    %c0_i32_0 = arith.constant 0 : i32
    %c0_i32_1 = arith.constant 0 : i32
    return %c0_i32, %c0_i32_0 : i32, i32
  }
  func.func @transform_10(%arg0: i32) -> (i32, i32) {
    %c0_i32 = arith.constant 0 : i32
    %c0_i32_0 = arith.constant 0 : i32
    %c0_i32_1 = arith.constant 0 : i32
    return %c0_i32, %c0_i32_0 : i32, i32
  }
  func.func @transform_11(%arg0: i32) -> (i32, i32, i32, i32) {
    %c0_i32 = arith.constant 0 : i32
    %c0_i32_0 = arith.constant 0 : i32
    %c0_i32_1 = arith.constant 0 : i32
    %c0_i32_2 = arith.constant 0 : i32
    return %arg0, %c0_i32, %c0_i32_0, %c0_i32_1 : i32, i32, i32, i32
  }
}

</mosaic_0001>

<llo_original>
// kernel: resblock_pallas_nhwc.1
$region0: #{resblock_pallas_nhwc.1}
  #allocation0 [shape = 'u32[]', space=smem, size = 0x4, offset = 0x4, fixed_abs, tag = 'smem constant byte address 0x4 - core index']
  #allocation1 [shape = 'u32[144,128]{1,0:T(1,128)}', space=vmem, size = 0x12000, scoped, tag = 'internal scratch']
  #allocation2 [shape = 'f32[18,18,128]{2,1,0:T(8,128)}', space=vmem, size = 0x36000, scoped, tag = 'scratch operand']
  %s0 = inlined_call_operand.vmem [shape: f32[2,16,16,128], index: 0, kind: input, shape index: {}]
  %s1 = inlined_call_operand.vmem [shape: f32[1,128], index: 1, kind: input, shape index: {}]
  %s2 = inlined_call_operand.vmem [shape: f32[1,128], index: 2, kind: input, shape index: {}]
  %s3 = inlined_call_operand.vmem [shape: f32[1152,128], index: 3, kind: input, shape index: {}]
  %s4 = inlined_call_operand.vmem [shape: f32[1,128], index: 4, kind: input, shape index: {}]
  %s5 = inlined_call_operand.vmem [shape: f32[1,128], index: 5, kind: input, shape index: {}]
  %s6 = inlined_call_operand.vmem [shape: f32[1,128], index: 6, kind: input, shape index: {}]
  %s7 = inlined_call_operand.vmem [shape: f32[1152,128], index: 7, kind: input, shape index: {}]
  %s8 = inlined_call_operand.vmem [shape: f32[1,128], index: 8, kind: input, shape index: {}]
  %s9 = inlined_call_operand.vmem [shape: f32[128,128], index: 9, kind: input, shape index: {}]
  %s10 = inlined_call_operand.vmem [shape: f32[1,128], index: 10, kind: input, shape index: {}]
  %s11 = inlined_call_operand.vmem [shape: f32[2,16,16,128], index: 11, kind: output, shape index: {}]
  %s12 = sld [smem:[#allocation0]]
  $region77: #{resblock_pallas_nhwc.1} parent=0
    _
  %s14 = ssub.s32 1, %s12
  %s15 = scalar_select 0, %s14, %s12
  loop: start=0, step=1, limit=4
  $region2: #{resblock_pallas_nhwc.1} parent=0 // loop_pre_header
    _
  $region3: #{resblock_pallas_nhwc.1} parent=0 // loop_header
    %s17 = sphi 0, %s21
    %p18 = scmp.ge.s32.totalorder %s17, 4
    %s27 = sphi 0, %s29
    %s30 = sphi 0, %s27
    %s31 = sphi 0, %s30
    %s47 = sphi 0, %s31
    %s51 = sphi 0, %s51
    %s53 = sphi 0, %s51
    %s54 = sphi 0, %s53
    %s68 = sphi 0, %s54
    %s72 = sphi 0, %s72
    %s74 = sphi 0, %s72
    %s75 = sphi 0, %s74
    %s89 = sphi 0, %s75
    %s93 = sphi 0, %s93
    %s95 = sphi 0, %s93
    %s96 = sphi 0, %s95
    %s110 = sphi 0, %s96
    %s114 = sphi 0, %s114
    %s116 = sphi 0, %s114
    %s117 = sphi 0, %s116
    %s131 = sphi 0, %s117
    %s135 = sphi 0, %s135
    %s137 = sphi 0, %s135
    %s138 = sphi 0, %s137
    %s152 = sphi 0, %s138
    %s156 = sphi 0, %s156
    %s158 = sphi 0, %s156
    %s159 = sphi 0, %s158
    %s173 = sphi 0, %s159
    %s177 = sphi 0, %s177
    %s179 = sphi 0, %s177
    %s180 = sphi 0, %s179
    %s194 = sphi 0, %s180
    %s198 = sphi 0, %s198
    %s200 = sphi 0, %s198
    %s201 = sphi 0, %s200
    %s215 = sphi 0, %s201
    %s219 = sphi 0, %s219
    %s221 = sphi 0, %s219
    %s222 = sphi 0, %s221
    %s236 = sphi 0, %s222
    %s240 = sphi 0, %s240
    %s242 = sphi 0, %s240
    %s243 = sphi 0, %s242
    %s257 = sphi 0, %s243
    %s263 = sphi 0, %s265
    %s266 = sphi 0, %s263
    %s267 = sphi 0, %s266
    %s283 = sphi 0, %s267
  $region4: #{resblock_pallas_nhwc.1} parent=0 // loop_header_branch
    %20 = sbr.rel (%p18) target = $region8
  $region5: #{resblock_pallas_nhwc.1} parent=0 // loop_body
    %s22 = ssub.s32 %s17, 1
    %s23 = ssub.s32 %s17, 2
    %s24 = sadd.s32 %s17, 1
    %s25 = ssub.s32 %s17, %s24
    %p26 = scmp.eq.s32.totalorder %s25, 0
    %s28 = sadd.s32 %s27, 1
    %s29 = scalar_select %p26, %s27, %s28
    %p32 = pneg %p26
    %p33 = scmp.eq.s32.totalorder %s17, 1
    %p34 = por %p32, %p33
    %p35 = scmp.ne.s32.totalorder %s27, %s30
    %p36 = scmp.eq.s32.totalorder %s17, 0
    %p37 = por %p35, %p36
    %p38 = scmp.ne.s32.totalorder %s27, %s30
    %p39 = scmp.eq.s32.totalorder %s22, 1
    %p40 = por %p38, %p39
    %p41 = scmp.ne.s32.totalorder %s30, %s31
    %p42 = scmp.eq.s32.totalorder %s22, 0
    %p43 = por %p41, %p42
    %p44 = scmp.ne.s32.totalorder %s30, %s31
    %p45 = scmp.eq.s32.totalorder %s23, 1
    %p46 = por %p44, %p45
    %p48 = scmp.ne.s32.totalorder %s31, %s47
    %p49 = scmp.eq.s32.totalorder %s23, 0
    %p50 = por %p48, %p49
    %s52 = sadd.s32 %s51, 1
    %p55 = scmp.eq.s32.totalorder %s17, 1
    %p56 = scmp.ne.s32.totalorder %s51, %s53
    %p57 = scmp.eq.s32.totalorder %s17, 0
    %p58 = por %p56, %p57
    %p59 = scmp.ne.s32.totalorder %s51, %s53
    %p60 = scmp.eq.s32.totalorder %s22, 1
    %p61 = por %p59, %p60
    %p62 = scmp.ne.s32.totalorder %s53, %s54
    %p63 = scmp.eq.s32.totalorder %s22, 0
    %p64 = por %p62, %p63
    %p65 = scmp.ne.s32.totalorder %s53, %s54
    %p66 = scmp.eq.s32.totalorder %s23, 1
    %p67 = por %p65, %p66
    %p69 = scmp.ne.s32.totalorder %s54, %s68
    %p70 = scmp.eq.s32.totalorder %s23, 0
    %p71 = por %p69, %p70
    %s73 = sadd.s32 %s72, 1
    %p76 = scmp.eq.s32.totalorder %s17, 1
    %p77 = scmp.ne.s32.totalorder %s72, %s74
    %p78 = scmp.eq.s32.totalorder %s17, 0
    %p79 = por %p77, %p78
    %p80 = scmp.ne.s32.totalorder %s72, %s74
    %p81 = scmp.eq.s32.totalorder %s22, 1
    %p82 = por %p80, %p81
    %p83 = scmp.ne.s32.totalorder %s74, %s75
    %p84 = scmp.eq.s32.totalorder %s22, 0
    %p85 = por %p83, %p84
    %p86 = scmp.ne.s32.totalorder %s74, %s75
    %p87 = scmp.eq.s32.totalorder %s23, 1
    %p88 = por %p86, %p87
    %p90 = scmp.ne.s32.totalorder %s75, %s89
    %p91 = scmp.eq.s32.totalorder %s23, 0
    %p92 = por %p90, %p91
    %s94 = sadd.s32 %s93, 1
    %p97 = scmp.eq.s32.totalorder %s17, 1
    %p98 = scmp.ne.s32.totalorder %s93, %s95
    %p99 = scmp.eq.s32.totalorder %s17, 0
    %p100 = por %p98, %p99
    %p101 = scmp.ne.s32.totalorder %s93, %s95
    %p102 = scmp.eq.s32.totalorder %s22, 1
    %p103 = por %p101, %p102
    %p104 = scmp.ne.s32.totalorder %s95, %s96
    %p105 = scmp.eq.s32.totalorder %s22, 0
    %p106 = por %p104, %p105
    %p107 = scmp.ne.s32.totalorder %s95, %s96
    %p108 = scmp.eq.s32.totalorder %s23, 1
    %p109 = por %p107, %p108
    %p111 = scmp.ne.s32.totalorder %s96, %s110
    %p112 = scmp.eq.s32.totalorder %s23, 0
    %p113 = por %p111, %p112
    %s115 = sadd.s32 %s114, 1
    %p118 = scmp.eq.s32.totalorder %s17, 1
    %p119 = scmp.ne.s32.totalorder %s114, %s116
    %p120 = scmp.eq.s32.totalorder %s17, 0
    %p121 = por %p119, %p120
    %p122 = scmp.ne.s32.totalorder %s114, %s116
    %p123 = scmp.eq.s32.totalorder %s22, 1
    %p124 = por %p122, %p123
    %p125 = scmp.ne.s32.totalorder %s116, %s117
    %p126 = scmp.eq.s32.totalorder %s22, 0
    %p127 = por %p125, %p126
    %p128 = scmp.ne.s32.totalorder %s116, %s117
    %p129 = scmp.eq.s32.totalorder %s23, 1
    %p130 = por %p128, %p129
    %p132 = scmp.ne.s32.totalorder %s117, %s131
    %p133 = scmp.eq.s32.totalorder %s23, 0
    %p134 = por %p132, %p133
    %s136 = sadd.s32 %s135, 1
    %p139 = scmp.eq.s32.totalorder %s17, 1
    %p140 = scmp.ne.s32.totalorder %s135, %s137
    %p141 = scmp.eq.s32.totalorder %s17, 0
    %p142 = por %p140, %p141
    %p143 = scmp.ne.s32.totalorder %s135, %s137
    %p144 = scmp.eq.s32.totalorder %s22, 1
    %p145 = por %p143, %p144
    %p146 = scmp.ne.s32.totalorder %s137, %s138
    %p147 = scmp.eq.s32.totalorder %s22, 0
    %p148 = por %p146, %p147
    %p149 = scmp.ne.s32.totalorder %s137, %s138
    %p150 = scmp.eq.s32.totalorder %s23, 1
    %p151 = por %p149, %p150
    %p153 = scmp.ne.s32.totalorder %s138, %s152
    %p154 = scmp.eq.s32.totalorder %s23, 0
    %p155 = por %p153, %p154
    %s157 = sadd.s32 %s156, 1
    %p160 = scmp.eq.s32.totalorder %s17, 1
    %p161 = scmp.ne.s32.totalorder %s156, %s158
    %p162 = scmp.eq.s32.totalorder %s17, 0
    %p163 = por %p161, %p162
    %p164 = scmp.ne.s32.totalorder %s156, %s158
    %p165 = scmp.eq.s32.totalorder %s22, 1
    %p166 = por %p164, %p165
    %p167 = scmp.ne.s32.totalorder %s158, %s159
    %p168 = scmp.eq.s32.totalorder %s22, 0
    %p169 = por %p167, %p168
    %p170 = scmp.ne.s32.totalorder %s158, %s159
    %p171 = scmp.eq.s32.totalorder %s23, 1
    %p172 = por %p170, %p171
    %p174 = scmp.ne.s32.totalorder %s159, %s173
    %p175 = scmp.eq.s32.totalorder %s23, 0
    %p176 = por %p174, %p175
    %s178 = sadd.s32 %s177, 1
    %p181 = scmp.eq.s32.totalorder %s17, 1
    %p182 = scmp.ne.s32.totalorder %s177, %s179
    %p183 = scmp.eq.s32.totalorder %s17, 0
    %p184 = por %p182, %p183
    %p185 = scmp.ne.s32.totalorder %s177, %s179
    %p186 = scmp.eq.s32.totalorder %s22, 1
    %p187 = por %p185, %p186
    %p188 = scmp.ne.s32.totalorder %s179, %s180
    %p189 = scmp.eq.s32.totalorder %s22, 0
    %p190 = por %p188, %p189
    %p191 = scmp.ne.s32.totalorder %s179, %s180
    %p192 = scmp.eq.s32.totalorder %s23, 1
    %p193 = por %p191, %p192
    %p195 = scmp.ne.s32.totalorder %s180, %s194
    %p196 = scmp.eq.s32.totalorder %s23, 0
    %p197 = por %p195, %p196
    %s199 = sadd.s32 %s198, 1
    %p202 = scmp.eq.s32.totalorder %s17, 1
    %p203 = scmp.ne.s32.totalorder %s198, %s200
    %p204 = scmp.eq.s32.totalorder %s17, 0
    %p205 = por %p203, %p204
    %p206 = scmp.ne.s32.totalorder %s198, %s200
    %p207 = scmp.eq.s32.totalorder %s22, 1
    %p208 = por %p206, %p207
    %p209 = scmp.ne.s32.totalorder %s200, %s201
    %p210 = scmp.eq.s32.totalorder %s22, 0
    %p211 = por %p209, %p210
    %p212 = scmp.ne.s32.totalorder %s200, %s201
    %p213 = scmp.eq.s32.totalorder %s23, 1
    %p214 = por %p212, %p213
    %p216 = scmp.ne.s32.totalorder %s201, %s215
    %p217 = scmp.eq.s32.totalorder %s23, 0
    %p218 = por %p216, %p217
    %s220 = sadd.s32 %s219, 1
    %p223 = scmp.eq.s32.totalorder %s17, 1
    %p224 = scmp.ne.s32.totalorder %s219, %s221
    %p225 = scmp.eq.s32.totalorder %s17, 0
    %p226 = por %p224, %p225
    %p227 = scmp.ne.s32.totalorder %s219, %s221
    %p228 = scmp.eq.s32.totalorder %s22, 1
    %p229 = por %p227, %p228
    %p230 = scmp.ne.s32.totalorder %s221, %s222
    %p231 = scmp.eq.s32.totalorder %s22, 0
    %p232 = por %p230, %p231
    %p233 = scmp.ne.s32.totalorder %s221, %s222
    %p234 = scmp.eq.s32.totalorder %s23, 1
    %p235 = por %p233, %p234
    %p237 = scmp.ne.s32.totalorder %s222, %s236
    %p238 = scmp.eq.s32.totalorder %s23, 0
    %p239 = por %p237, %p238
    %s241 = sadd.s32 %s240, 1
    %p244 = scmp.eq.s32.totalorder %s17, 1
    %p245 = scmp.ne.s32.totalorder %s240, %s242
    %p246 = scmp.eq.s32.totalorder %s17, 0
    %p247 = por %p245, %p246
    %p248 = scmp.ne.s32.totalorder %s240, %s242
    %p249 = scmp.eq.s32.totalorder %s22, 1
    %p250 = por %p248, %p249
    %p251 = scmp.ne.s32.totalorder %s242, %s243
    %p252 = scmp.eq.s32.totalorder %s22, 0
    %p253 = por %p251, %p252
    %p254 = scmp.ne.s32.totalorder %s242, %s243
    %p255 = scmp.eq.s32.totalorder %s23, 1
    %p256 = por %p254, %p255
    %p258 = scmp.ne.s32.totalorder %s243, %s257
    %p259 = scmp.eq.s32.totalorder %s23, 0
    %p260 = por %p258, %p259
    %s261 = ssub.s32 %s17, %s24
    %p262 = scmp.eq.s32.totalorder %s261, 0
    %s264 = sadd.s32 %s263, 1
    %s265 = scalar_select %p262, %s263, %s264
    %p268 = pneg %p262
    %p269 = scmp.eq.s32.totalorder %s17, 1
    %p270 = por %p268, %p269
    %p271 = scmp.ne.s32.totalorder %s263, %s266
    %p272 = scmp.eq.s32.totalorder %s17, 0
    %p273 = por %p271, %p272
    %p274 = scmp.ne.s32.totalorder %s263, %s266
    %p275 = scmp.eq.s32.totalorder %s22, 1
    %p276 = por %p274, %p275
    %p277 = scmp.ne.s32.totalorder %s266, %s267
    %p278 = scmp.eq.s32.totalorder %s22, 0
    %p279 = por %p277, %p278
    %p280 = scmp.ne.s32.totalorder %s266, %s267
    %p281 = scmp.eq.s32.totalorder %s23, 1
    %p282 = por %p280, %p281
    %p284 = scmp.ne.s32.totalorder %s267, %s283
    %p285 = scmp.eq.s32.totalorder %s23, 0
    %p286 = por %p284, %p285
    %p287 = scmp.le.s32.totalorder 1, %s17
    %p288 = scmp.lt.s32.totalorder %s17, 3
    %p289 = pnand %p287, %p288
    %p290 = pneg %p289
    // Predicated region
    $region9: #{resblock_pallas_nhwc.1} parent=5 // pred_check
      _
    $region10: #{resblock_pallas_nhwc.1} parent=5 // pred_check_branch
      %292 = sbr.rel (%p289) target = $region12
    $region11: #{resblock_pallas_nhwc.1} parent=5 // pred_region
      %s293 = ssub.s32 %s17, 1
      // Predicated region
      $region13: #{resblock_pallas_nhwc.1} parent=11 // pred_check
        %p294 = pneg %p64
      $region14: #{resblock_pallas_nhwc.1} parent=11 // pred_check_branch
        %296 = sbr.rel (%p294) target = $region16
      $region15: #{resblock_pallas_nhwc.1} parent=11 // pred_region
        _
      $region16: #{resblock_pallas_nhwc.1} parent=11 // pred_fallthru
        _
      // Predicated region
      $region17: #{resblock_pallas_nhwc.1} parent=11 // pred_check
        %p297 = pneg %p85
      $region18: #{resblock_pallas_nhwc.1} parent=11 // pred_check_branch
        %299 = sbr.rel (%p297) target = $region20
      $region19: #{resblock_pallas_nhwc.1} parent=11 // pred_region
        _
      $region20: #{resblock_pallas_nhwc.1} parent=11 // pred_fallthru
        _
      // Predicated region
      $region21: #{resblock_pallas_nhwc.1} parent=11 // pred_check
        %p300 = pneg %p106
      $region22: #{resblock_pallas_nhwc.1} parent=11 // pred_check_branch
        %302 = sbr.rel (%p300) target = $region24
      $region23: #{resblock_pallas_nhwc.1} parent=11 // pred_region
        _
      $region24: #{resblock_pallas_nhwc.1} parent=11 // pred_fallthru
        _
      // Predicated region
      $region25: #{resblock_pallas_nhwc.1} parent=11 // pred_check
        %p303 = pneg %p127
      $region26: #{resblock_pallas_nhwc.1} parent=11 // pred_check_branch
        %305 = sbr.rel (%p303) target = $region28
      $region27: #{resblock_pallas_nhwc.1} parent=11 // pred_region
        _
      $region28: #{resblock_pallas_nhwc.1} parent=11 // pred_fallthru
        _
      // Predicated region
      $region29: #{resblock_pallas_nhwc.1} parent=11 // pred_check
        %p306 = pneg %p148
      $region30: #{resblock_pallas_nhwc.1} parent=11 // pred_check_branch
        %308 = sbr.rel (%p306) target = $region32
      $region31: #{resblock_pallas_nhwc.1} parent=11 // pred_region
        _
      $region32: #{resblock_pallas_nhwc.1} parent=11 // pred_fallthru
        _
      // Predicated region
      $region33: #{resblock_pallas_nhwc.1} parent=11 // pred_check
        %p309 = pneg %p169
      $region34: #{resblock_pallas_nhwc.1} parent=11 // pred_check_branch
        %311 = sbr.rel (%p309) target = $region36
      $region35: #{resblock_pallas_nhwc.1} parent=11 // pred_region
        _
      $region36: #{resblock_pallas_nhwc.1} parent=11 // pred_fallthru
        _
      // Predicated region
      $region37: #{resblock_pallas_nhwc.1} parent=11 // pred_check
        %p312 = pneg %p190
      $region38: #{resblock_pallas_nhwc.1} parent=11 // pred_check_branch
        %314 = sbr.rel (%p312) target = $region40
      $region39: #{resblock_pallas_nhwc.1} parent=11 // pred_region
        _
      $region40: #{resblock_pallas_nhwc.1} parent=11 // pred_fallthru
        _
      // Predicated region
      $region41: #{resblock_pallas_nhwc.1} parent=11 // pred_check
        %p315 = pneg %p211
      $region42: #{resblock_pallas_nhwc.1} parent=11 // pred_check_branch
        %317 = sbr.rel (%p315) target = $region44
      $region43: #{resblock_pallas_nhwc.1} parent=11 // pred_region
        _
      $region44: #{resblock_pallas_nhwc.1} parent=11 // pred_fallthru
        _
      // Predicated region
      $region45: #{resblock_pallas_nhwc.1} parent=11 // pred_check
        %p318 = pneg %p232
      $region46: #{resblock_pallas_nhwc.1} parent=11 // pred_check_branch
        %320 = sbr.rel (%p318) target = $region48
      $region47: #{resblock_pallas_nhwc.1} parent=11 // pred_region
        _
      $region48: #{resblock_pallas_nhwc.1} parent=11 // pred_fallthru
        _
      // Predicated region
      $region49: #{resblock_pallas_nhwc.1} parent=11 // pred_check
        %p321 = pneg %p253
      $region50: #{resblock_pallas_nhwc.1} parent=11 // pred_check_branch
        %323 = sbr.rel (%p321) target = $region52
      $region51: #{resblock_pallas_nhwc.1} parent=11 // pred_region
        _
      $region52: #{resblock_pallas_nhwc.1} parent=11 // pred_fallthru
        _
    $region12: #{resblock_pallas_nhwc.1} parent=5 // pred_fallthru
      _
    %p324 = scmp.lt.s32.totalorder %s17, 2
    // Predicated region
    $region53: #{resblock_pallas_nhwc.1} parent=5 // pred_check
      %p325 = pneg %p324
    $region54: #{resblock_pallas_nhwc.1} parent=5 // pred_check_branch
      %327 = sbr.rel (%p325) target = $region56
    $region55: #{resblock_pallas_nhwc.1} parent=5 // pred_region
      // Predicated region
      $region57: #{resblock_pallas_nhwc.1} parent=55 // pred_check
        %p328 = pneg %p37
      $region58: #{resblock_pallas_nhwc.1} parent=55 // pred_check_branch
        %330 = sbr.rel (%p328) target = $region60
      $region59: #{resblock_pallas_nhwc.1} parent=55 // pred_region
        %p331 = scmp.lt.s32.totalorder %s17, 1
        %s332 = scalar_select %p331, %s17, 1
        %s333 = smul.addr %s332, 32
        %s334 = smul.addr %s333, 8
        %s335 = scalar_lea.vmem %s0, %s334
      $region60: #{resblock_pallas_nhwc.1} parent=55 // pred_fallthru
        _
    $region56: #{resblock_pallas_nhwc.1} parent=5 // pred_fallthru
      _
    %p336 = scmp.le.s32.totalorder 1, %s17
    %p337 = scmp.lt.s32.totalorder %s17, 3
    %p338 = pnand %p336, %p337
    %p339 = pneg %p338
    // Predicated region
    $region61: #{resblock_pallas_nhwc.1} parent=5 // pred_check
      _
    $region62: #{resblock_pallas_nhwc.1} parent=5 // pred_check_branch
      %341 = sbr.rel (%p338) target = $region64
    $region63: #{resblock_pallas_nhwc.1} parent=5 // pred_region
      %s342 = ssub.s32 %s17, 1
      %p343 = scmp.lt.s32.totalorder %s22, 1
      %s344 = scalar_select %p343, %s22, 1
      %s345 = smul.addr %s344, 32
      %s346 = smul.addr %s345, 8
      %s347 = scalar_lea.vmem %s0, %s346
      %p348 = pneg %p43
      %p349 = pneg %p40
      %p350 = pneg %p64
      %p351 = pneg %p61
      %p352 = pneg %p85
      %p353 = pneg %p82
      %p354 = pneg %p106
      %p355 = pneg %p103
      %p356 = pneg %p127
      %p357 = pneg %p124
      %p358 = pneg %p148
      %p359 = pneg %p145
      %p360 = pneg %p169
      %p361 = pneg %p166
      %p362 = pneg %p190
      %p363 = pneg %p187
      %p364 = pneg %p211
      %p365 = pneg %p208
      %p366 = pneg %p232
      %p367 = pneg %p229
      %p368 = pneg %p253
      %p369 = pneg %p250
      %p370 = pneg %p279
      %p371 = pneg %p276
      %p372 = scmp.lt.s32.totalorder %s22, 1
      %s373 = scalar_select %p372, %s22, 1
      %s374 = smul.addr %s373, 32
      %s375 = smul.addr %s374, 8
      %s376 = scalar_lea.vmem %s11, %s375
      %p377 = scmp.lt.s32.totalorder %s22, 1
      %s378 = scalar_select %p377, %s22, 1
      %s379 = smul.addr %s378, 32
      %s380 = smul.addr %s379, 8
      %s381 = scalar_lea.vmem %s0, %s380
      %p382 = scmp.lt.s32.totalorder %s22, 1
      %s383 = scalar_select %p382, %s22, 1
      %s384 = smul.addr %s383, 32
      %s385 = smul.addr %s384, 8
      %s386 = scalar_lea.vmem %s11, %s385
      %387 = vst [vmem:[#allocation2] sm:$0xff] 0.0
      %388 = vst [vmem:[#allocation2 + $0x8] sm:$0xff] 0.0
      %389 = vst [vmem:[#allocation2 + $0x10] sm:$0x3] 0.0
      %s390 = scalar_lea.vmem [#allocation2], 408
      %391 = vst [vmem:[%s390] sm:$0xff] 0.0
      %392 = vst [vmem:[%s390 + $0x8] sm:$0xff] 0.0
      %393 = vst [vmem:[%s390 + $0x10] sm:$0x3] 0.0
      %394 = vst [vmem:[#allocation2] sm:$0x1] 0.0
      %395 = vst [vmem:[#allocation2 + $0x18] sm:$0x1] 0.0
      %396 = vst [vmem:[#allocation2 + $0x30] sm:$0x1] 0.0
      %397 = vst [vmem:[#allocation2 + $0x48] sm:$0x1] 0.0
      %398 = vst [vmem:[#allocation2 + $0x60] sm:$0x1] 0.0
      %399 = vst [vmem:[#allocation2 + $0x78] sm:$0x1] 0.0
      %400 = vst [vmem:[#allocation2 + $0x90] sm:$0x1] 0.0
      %401 = vst [vmem:[#allocation2 + $0xa8] sm:$0x1] 0.0
      %402 = vst [vmem:[#allocation2 + $0xc0] sm:$0x1] 0.0
      %403 = vst [vmem:[#allocation2 + $0xd8] sm:$0x1] 0.0
      %404 = vst [vmem:[#allocation2 + $0xf0] sm:$0x1] 0.0
      %405 = vst [vmem:[#allocation2 + $0x108] sm:$0x1] 0.0
      %406 = vst [vmem:[#allocation2 + $0x120] sm:$0x1] 0.0
      %407 = vst [vmem:[#allocation2 + $0x138] sm:$0x1] 0.0
      %408 = vst [vmem:[#allocation2 + $0x150] sm:$0x1] 0.0
      %409 = vst [vmem:[#allocation2 + $0x168] sm:$0x1] 0.0
      %410 = vst [vmem:[#allocation2 + $0x180] sm:$0x1] 0.0
      %411 = vst [vmem:[#allocation2 + $0x198] sm:$0x1] 0.0
      %412 = vst [vmem:[#allocation2 + $0x11] sm:$0x1] 0.0
      %413 = vst [vmem:[#allocation2 + $0x29] sm:$0x1] 0.0
      %414 = vst [vmem:[#allocation2 + $0x41] sm:$0x1] 0.0
      %415 = vst [vmem:[#allocation2 + $0x59] sm:$0x1] 0.0
      %416 = vst [vmem:[#allocation2 + $0x71] sm:$0x1] 0.0
      %417 = vst [vmem:[#allocation2 + $0x89] sm:$0x1] 0.0
      %418 = vst [vmem:[#allocation2 + $0xa1] sm:$0x1] 0.0
      %419 = vst [vmem:[#allocation2 + $0xb9] sm:$0x1] 0.0
      %420 = vst [vmem:[#allocation2 + $0xd1] sm:$0x1] 0.0
      %421 = vst [vmem:[#allocation2 + $0xe9] sm:$0x1] 0.0
      %422 = vst [vmem:[#allocation2 + $0x101] sm:$0x1] 0.0
      %423 = vst [vmem:[#allocation2 + $0x119] sm:$0x1] 0.0
      %424 = vst [vmem:[#allocation2 + $0x131] sm:$0x1] 0.0
      %425 = vst [vmem:[#allocation2 + $0x149] sm:$0x1] 0.0
      %426 = vst [vmem:[#allocation2 + $0x161] sm:$0x1] 0.0
      %427 = vst [vmem:[#allocation2 + $0x179] sm:$0x1] 0.0
      %428 = vst [vmem:[#allocation2 + $0x191] sm:$0x1] 0.0
      %429 = vst [vmem:[#allocation2 + $0x1a9] sm:$0x1] 0.0
      %v430 = vld [vmem:[%s381] sm:$0xff]
      %v431 = vld [vmem:[%s381 + $0x8] sm:$0xff]
      %v432 = vld [vmem:[%s381 + $0x10] sm:$0xff]
      %v433 = vld [vmem:[%s381 + $0x18] sm:$0xff]
      %v434 = vld [vmem:[%s381 + $0x20] sm:$0xff]
      %v435 = vld [vmem:[%s381 + $0x28] sm:$0xff]
      %v436 = vld [vmem:[%s381 + $0x30] sm:$0xff]
      %v437 = vld [vmem:[%s381 + $0x38] sm:$0xff]
      %v438 = vld [vmem:[%s381 + $0x40] sm:$0xff]
      %v439 = vld [vmem:[%s381 + $0x48] sm:$0xff]
      %v440 = vld [vmem:[%s381 + $0x50] sm:$0xff]
      %v441 = vld [vmem:[%s381 + $0x58] sm:$0xff]
      %v442 = vld [vmem:[%s381 + $0x60] sm:$0xff]
      %v443 = vld [vmem:[%s381 + $0x68] sm:$0xff]
      %v444 = vld [vmem:[%s381 + $0x70] sm:$0xff]
      %v445 = vld [vmem:[%s381 + $0x78] sm:$0xff]
      %v446 = vld [vmem:[%s381 + $0x80] sm:$0xff]
      %v447 = vld [vmem:[%s381 + $0x88] sm:$0xff]
      %v448 = vld [vmem:[%s381 + $0x90] sm:$0xff]
      %v449 = vld [vmem:[%s381 + $0x98] sm:$0xff]
      %v450 = vld [vmem:[%s381 + $0xa0] sm:$0xff]
      %v451 = vld [vmem:[%s381 + $0xa8] sm:$0xff]
      %v452 = vld [vmem:[%s381 + $0xb0] sm:$0xff]
      %v453 = vld [vmem:[%s381 + $0xb8] sm:$0xff]
      %v454 = vld [vmem:[%s381 + $0xc0] sm:$0xff]
      %v455 = vld [vmem:[%s381 + $0xc8] sm:$0xff]
      %v456 = vld [vmem:[%s381 + $0xd0] sm:$0xff]
      %v457 = vld [vmem:[%s381 + $0xd8] sm:$0xff]
      %v458 = vld [vmem:[%s381 + $0xe0] sm:$0xff]
      %v459 = vld [vmem:[%s381 + $0xe8] sm:$0xff]
      %v460 = vld [vmem:[%s381 + $0xf0] sm:$0xff]
      %v461 = vld [vmem:[%s381 + $0xf8] sm:$0xff]
      %v462 = vld [vmem:[%s1] sm:$0x1]
      %v463 = vld [vmem:[%s2] sm:$0x1]
      %v464 = vadd.f32 %v430, %v431
      %v465 = vadd.f32 %v464, %v432
      %v466 = vadd.f32 %v465, %v433
      %v467 = vadd.f32 %v466, %v434
      %v468 = vadd.f32 %v467, %v435
      %v469 = vadd.f32 %v468, %v436
      %v470 = vadd.f32 %v469, %v437
      %v471 = vadd.f32 %v470, %v438
      %v472 = vadd.f32 %v471, %v439
      %v473 = vadd.f32 %v472, %v440
      %v474 = vadd.f32 %v473, %v441
      %v475 = vadd.f32 %v474, %v442
      %v476 = vadd.f32 %v475, %v443
      %v477 = vadd.f32 %v476, %v444
      %v478 = vadd.f32 %v477, %v445
      %v479 = vadd.f32 %v478, %v446
      %v480 = vadd.f32 %v479, %v447
      %v481 = vadd.f32 %v480, %v448
      %v482 = vadd.f32 %v481, %v449
      %v483 = vadd.f32 %v482, %v450
      %v484 = vadd.f32 %v483, %v451
      %v485 = vadd.f32 %v484, %v452
      %v486 = vadd.f32 %v485, %v453
      %v487 = vadd.f32 %v486, %v454
      %v488 = vadd.f32 %v487, %v455
      %v489 = vadd.f32 %v488, %v456
      %v490 = vadd.f32 %v489, %v457
      %v491 = vadd.f32 %v490, %v458
      %v492 = vadd.f32 %v491, %v459
      %v493 = vadd.f32 %v492, %v460
      %v494 = vadd.f32 %v493, %v461
      %495 = vadd.xlane.f32.xlu0 %v494
      %v496 = vpop.xlane.xlu0 %495
      %v497 = vrot.slane %v496, 4
      %v498 = vadd.f32 %v496, %v497
      %v499 = vrot.slane %v498, 2
      %v500 = vadd.f32 %v498, %v499
      %v501 = vrot.slane %v500, 1
      %v502 = vadd.f32 %v500, %v501
      %s503 = vtos %v502
      %v504 = vmul.f32 %v430, %v430
      %v505 = vmul.f32 %v431, %v431
      %v506 = vmul.f32 %v432, %v432
      %v507 = vmul.f32 %v433, %v433
      %v508 = vmul.f32 %v434, %v434
      %v509 = vmul.f32 %v435, %v435
      %v510 = vmul.f32 %v436, %v436
      %v511 = vmul.f32 %v437, %v437
      %v512 = vmul.f32 %v438, %v438
      %v513 = vmul.f32 %v439, %v439
      %v514 = vmul.f32 %v440, %v440
      %v515 = vmul.f32 %v441, %v441
      %v516 = vmul.f32 %v442, %v442
      %v517 = vmul.f32 %v443, %v443
      %v518 = vmul.f32 %v444, %v444
      %v519 = vmul.f32 %v445, %v445
      %v520 = vmul.f32 %v446, %v446
      %v521 = vmul.f32 %v447, %v447
      %v522 = vmul.f32 %v448, %v448
      %v523 = vmul.f32 %v449, %v449
      %v524 = vmul.f32 %v450, %v450
      %v525 = vmul.f32 %v451, %v451
      %v526 = vmul.f32 %v452, %v452
      %v527 = vmul.f32 %v453, %v453
      %v528 = vmul.f32 %v454, %v454
      %v529 = vmul.f32 %v455, %v455
      %v530 = vmul.f32 %v456, %v456
      %v531 = vmul.f32 %v457, %v457
      %v532 = vmul.f32 %v458, %v458
      %v533 = vmul.f32 %v459, %v459
      %v534 = vmul.f32 %v460, %v460
      %v535 = vmul.f32 %v461, %v461
      %v536 = vadd.f32 %v504, %v505
      %v537 = vadd.f32 %v536, %v506
      %v538 = vadd.f32 %v537, %v507
      %v539 = vadd.f32 %v538, %v508
      %v540 = vadd.f32 %v539, %v509
      %v541 = vadd.f32 %v540, %v510
      %v542 = vadd.f32 %v541, %v511
      %v543 = vadd.f32 %v542, %v512
      %v544 = vadd.f32 %v543, %v513
      %v545 = vadd.f32 %v544, %v514
      %v546 = vadd.f32 %v545, %v515
      %v547 = vadd.f32 %v546, %v516
      %v548 = vadd.f32 %v547, %v517
      %v549 = vadd.f32 %v548, %v518
      %v550 = vadd.f32 %v549, %v519
      %v551 = vadd.f32 %v550, %v520
      %v552 = vadd.f32 %v551, %v521
      %v553 = vadd.f32 %v552, %v522
      %v554 = vadd.f32 %v553, %v523
      %v555 = vadd.f32 %v554, %v524
      %v556 = vadd.f32 %v555, %v525
      %v557 = vadd.f32 %v556, %v526
      %v558 = vadd.f32 %v557, %v527
      %v559 = vadd.f32 %v558, %v528
      %v560 = vadd.f32 %v559, %v529
      %v561 = vadd.f32 %v560, %v530
      %v562 = vadd.f32 %v561, %v531
      %v563 = vadd.f32 %v562, %v532
      %v564 = vadd.f32 %v563, %v533
      %v565 = vadd.f32 %v564, %v534
      %v566 = vadd.f32 %v565, %v535
      %567 = vadd.xlane.f32.xlu0 %v566
      %v568 = vpop.xlane.xlu0 %567
      %v569 = vrot.slane %v568, 4
      %v570 = vadd.f32 %v568, %v569
      %v571 = vrot.slane %v570, 2
      %v572 = vadd.f32 %v570, %v571
      %v573 = vrot.slane %v572, 1
      %v574 = vadd.f32 %v572, %v573
      %s575 = vtos %v574
      %v576 = vrcp.pop 1024.0
      %s577 = vtos %v576
      %s578 = smul.f32 %s503, %s577
      %v579 = vrcp.pop 1024.0
      %s580 = vtos %v579
      %s581 = smul.f32 %s575, %s580
      %s582 = smul.f32 %s578, %s578
      %s583 = ssub.f32 %s581, %s582
      %s584 = smax.f32 %s583, 0.0
      %v585 = vstv %s578
      %v586 = vsub.f32 %v430, %v585
      %v587 = vsub.f32 %v431, %v585
      %v588 = vsub.f32 %v432, %v585
      %v589 = vsub.f32 %v433, %v585
      %v590 = vsub.f32 %v434, %v585
      %v591 = vsub.f32 %v435, %v585
      %v592 = vsub.f32 %v436, %v585
      %v593 = vsub.f32 %v437, %v585
      %v594 = vsub.f32 %v438, %v585
      %v595 = vsub.f32 %v439, %v585
      %v596 = vsub.f32 %v440, %v585
      %v597 = vsub.f32 %v441, %v585
      %v598 = vsub.f32 %v442, %v585
      %v599 = vsub.f32 %v443, %v585
      %v600 = vsub.f32 %v444, %v585
      %v601 = vsub.f32 %v445, %v585
      %v602 = vsub.f32 %v446, %v585
      %v603 = vsub.f32 %v447, %v585
      %v604 = vsub.f32 %v448, %v585
      %v605 = vsub.f32 %v449, %v585
      %v606 = vsub.f32 %v450, %v585
      %v607 = vsub.f32 %v451, %v585
      %v608 = vsub.f32 %v452, %v585
      %v609 = vsub.f32 %v453, %v585
      %v610 = vsub.f32 %v454, %v585
      %v611 = vsub.f32 %v455, %v585
      %v612 = vsub.f32 %v456, %v585
      %v613 = vsub.f32 %v457, %v585
      %v614 = vsub.f32 %v458, %v585
      %v615 = vsub.f32 %v459, %v585
      %v616 = vsub.f32 %v460, %v585
      %v617 = vsub.f32 %v461, %v585
      %s618 = sadd.f32 %s584, 1e-05
      %v619 = vstv %s618
      %v620 = vrsqrt.pop %v619
      %s621 = vtos %v620
      %v622 = vstv %s621
      %v623 = vmul.f32 %v586, %v622
      %v624 = vmul.f32 %v587, %v622
      %v625 = vmul.f32 %v588, %v622
      %v626 = vmul.f32 %v589, %v622
      %v627 = vmul.f32 %v590, %v622
      %v628 = vmul.f32 %v591, %v622
      %v629 = vmul.f32 %v592, %v622
      %v630 = vmul.f32 %v593, %v622
      %v631 = vmul.f32 %v594, %v622
      %v632 = vmul.f32 %v595, %v622
      %v633 = vmul.f32 %v596, %v622
      %v634 = vmul.f32 %v597, %v622
      %v635 = vmul.f32 %v598, %v622
      %v636 = vmul.f32 %v599, %v622
      %v637 = vmul.f32 %v600, %v622
      %v638 = vmul.f32 %v601, %v622
      %v639 = vmul.f32 %v602, %v622
      %v640 = vmul.f32 %v603, %v622
      %v641 = vmul.f32 %v604, %v622
      %v642 = vmul.f32 %v605, %v622
      %v643 = vmul.f32 %v606, %v622
      %v644 = vmul.f32 %v607, %v622
      %v645 = vmul.f32 %v608, %v622
      %v646 = vmul.f32 %v609, %v622
      %v647 = vmul.f32 %v610, %v622
      %v648 = vmul.f32 %v611, %v622
      %v649 = vmul.f32 %v612, %v622
      %v650 = vmul.f32 %v613, %v622
      %v651 = vmul.f32 %v614, %v622
      %v652 = vmul.f32 %v615, %v622
      %v653 = vmul.f32 %v616, %v622
      %v654 = vmul.f32 %v617, %v622
      %v656 = vlaneseq
      %v657 = vshrl.u32 %v656, 7
      %v658 = vsub.s32 0, %v657
      %v659 = vrot.slane %v462, %v658
      %v661 = vmul.f32 %v623, %v659
      %v662 = vmul.f32 %v624, %v659
      %v663 = vmul.f32 %v625, %v659
      %v664 = vmul.f32 %v626, %v659
      %v665 = vmul.f32 %v627, %v659
      %v666 = vmul.f32 %v628, %v659
      %v667 = vmul.f32 %v629, %v659
      %v668 = vmul.f32 %v630, %v659
      %v669 = vmul.f32 %v631, %v659
      %v670 = vmul.f32 %v632, %v659
      %v671 = vmul.f32 %v633, %v659
      %v672 = vmul.f32 %v634, %v659
      %v673 = vmul.f32 %v635, %v659
      %v674 = vmul.f32 %v636, %v659
      %v675 = vmul.f32 %v637, %v659
      %v676 = vmul.f32 %v638, %v659
      %v677 = vmul.f32 %v639, %v659
      %v678 = vmul.f32 %v640, %v659
      %v679 = vmul.f32 %v641, %v659
      %v680 = vmul.f32 %v642, %v659
      %v681 = vmul.f32 %v643, %v659
      %v682 = vmul.f32 %v644, %v659
      %v683 = vmul.f32 %v645, %v659
      %v684 = vmul.f32 %v646, %v659
      %v685 = vmul.f32 %v647, %v659
      %v686 = vmul.f32 %v648, %v659
      %v687 = vmul.f32 %v649, %v659
      %v688 = vmul.f32 %v650, %v659
      %v689 = vmul.f32 %v651, %v659
      %v690 = vmul.f32 %v652, %v659
      %v691 = vmul.f32 %v653, %v659
      %v692 = vmul.f32 %v654, %v659
      %v694 = vlaneseq
      %v695 = vshrl.u32 %v694, 7
      %v696 = vsub.s32 0, %v695
      %v697 = vrot.slane %v463, %v696
      %v699 = vadd.f32 %v661, %v697
      %v700 = vadd.f32 %v662, %v697
      %v701 = vadd.f32 %v663, %v697
      %v702 = vadd.f32 %v664, %v697
      %v703 = vadd.f32 %v665, %v697
      %v704 = vadd.f32 %v666, %v697
      %v705 = vadd.f32 %v667, %v697
      %v706 = vadd.f32 %v668, %v697
      %v707 = vadd.f32 %v669, %v697
      %v708 = vadd.f32 %v670, %v697
      %v709 = vadd.f32 %v671, %v697
      %v710 = vadd.f32 %v672, %v697
      %v711 = vadd.f32 %v673, %v697
      %v712 = vadd.f32 %v674, %v697
      %v713 = vadd.f32 %v675, %v697
      %v714 = vadd.f32 %v676, %v697
      %v715 = vadd.f32 %v677, %v697
      %v716 = vadd.f32 %v678, %v697
      %v717 = vadd.f32 %v679, %v697
      %v718 = vadd.f32 %v680, %v697
      %v719 = vadd.f32 %v681, %v697
      %v720 = vadd.f32 %v682, %v697
      %v721 = vadd.f32 %v683, %v697
      %v722 = vadd.f32 %v684, %v697
      %v723 = vadd.f32 %v685, %v697
      %v724 = vadd.f32 %v686, %v697
      %v725 = vadd.f32 %v687, %v697
      %v726 = vadd.f32 %v688, %v697
      %v727 = vadd.f32 %v689, %v697
      %v728 = vadd.f32 %v690, %v697
      %v729 = vadd.f32 %v691, %v697
      %v730 = vadd.f32 %v692, %v697
      %v731 = vxor.u32 %v699, 2147483648
      %v732 = vxor.u32 %v700, 2147483648
      %v733 = vxor.u32 %v701, 2147483648
      %v734 = vxor.u32 %v702, 2147483648
      %v735 = vxor.u32 %v703, 2147483648
      %v736 = vxor.u32 %v704, 2147483648
      %v737 = vxor.u32 %v705, 2147483648
      %v738 = vxor.u32 %v706, 2147483648
      %v739 = vxor.u32 %v707, 2147483648
      %v740 = vxor.u32 %v708, 2147483648
      %v741 = vxor.u32 %v709, 2147483648
      %v742 = vxor.u32 %v710, 2147483648
      %v743 = vxor.u32 %v711, 2147483648
      %v744 = vxor.u32 %v712, 2147483648
      %v745 = vxor.u32 %v713, 2147483648
      %v746 = vxor.u32 %v714, 2147483648
      %v747 = vxor.u32 %v715, 2147483648
      %v748 = vxor.u32 %v716, 2147483648
      %v749 = vxor.u32 %v717, 2147483648
      %v750 = vxor.u32 %v718, 2147483648
      %v751 = vxor.u32 %v719, 2147483648
      %v752 = vxor.u32 %v720, 2147483648
      %v753 = vxor.u32 %v721, 2147483648
      %v754 = vxor.u32 %v722, 2147483648
      %v755 = vxor.u32 %v723, 2147483648
      %v756 = vxor.u32 %v724, 2147483648
      %v757 = vxor.u32 %v725, 2147483648
      %v758 = vxor.u32 %v726, 2147483648
      %v759 = vxor.u32 %v727, 2147483648
      %v760 = vxor.u32 %v728, 2147483648
      %v761 = vxor.u32 %v729, 2147483648
      %v762 = vxor.u32 %v730, 2147483648
      %v763 = vmul.f32 %v731, 1.442695
      %v764 = vpow.pop %v763
      %v765 = vmul.f32 %v732, 1.442695
      %v766 = vpow.pop %v765
      %v767 = vmul.f32 %v733, 1.442695
      %v768 = vpow.pop %v767
      %v769 = vmul.f32 %v734, 1.442695
      %v770 = vpow.pop %v769
      %v771 = vmul.f32 %v735, 1.442695
      %v772 = vpow.pop %v771
      %v773 = vmul.f32 %v736, 1.442695
      %v774 = vpow.pop %v773
      %v775 = vmul.f32 %v737, 1.442695
      %v776 = vpow.pop %v775
      %v777 = vmul.f32 %v738, 1.442695
      %v778 = vpow.pop %v777
      %v779 = vmul.f32 %v739, 1.442695
      %v780 = vpow.pop %v779
      %v781 = vmul.f32 %v740, 1.442695
      %v782 = vpow.pop %v781
      %v783 = vmul.f32 %v741, 1.442695
      %v784 = vpow.pop %v783
      %v785 = vmul.f32 %v742, 1.442695
      %v786 = vpow.pop %v785
      %v787 = vmul.f32 %v743, 1.442695
      %v788 = vpow.pop %v787
      %v789 = vmul.f32 %v744, 1.442695
      %v790 = vpow.pop %v789
      %v791 = vmul.f32 %v745, 1.442695
      %v792 = vpow.pop %v791
      %v793 = vmul.f32 %v746, 1.442695
      %v794 = vpow.pop %v793
      %v795 = vmul.f32 %v747, 1.442695
      %v796 = vpow.pop %v795
      %v797 = vmul.f32 %v748, 1.442695
      %v798 = vpow.pop %v797
      %v799 = vmul.f32 %v749, 1.442695
      %v800 = vpow.pop %v799
      %v801 = vmul.f32 %v750, 1.442695
      %v802 = vpow.pop %v801
      %v803 = vmul.f32 %v751, 1.442695
      %v804 = vpow.pop %v803
      %v805 = vmul.f32 %v752, 1.442695
      %v806 = vpow.pop %v805
      %v807 = vmul.f32 %v753, 1.442695
      %v808 = vpow.pop %v807
      %v809 = vmul.f32 %v754, 1.442695
      %v810 = vpow.pop %v809
      %v811 = vmul.f32 %v755, 1.442695
      %v812 = vpow.pop %v811
      %v813 = vmul.f32 %v756, 1.442695
      %v814 = vpow.pop %v813
      %v815 = vmul.f32 %v757, 1.442695
      %v816 = vpow.pop %v815
      %v817 = vmul.f32 %v758, 1.442695
      %v818 = vpow.pop %v817
      %v819 = vmul.f32 %v759, 1.442695
      %v820 = vpow.pop %v819
      %v821 = vmul.f32 %v760, 1.442695
      %v822 = vpow.pop %v821
      %v823 = vmul.f32 %v761, 1.442695
      %v824 = vpow.pop %v823
      %v825 = vmul.f32 %v762, 1.442695
      %v826 = vpow.pop %v825
      %v827 = vadd.f32 %v764, 1.0
      %v828 = vadd.f32 %v766, 1.0
      %v829 = vadd.f32 %v768, 1.0
      %v830 = vadd.f32 %v770, 1.0
      %v831 = vadd.f32 %v772, 1.0
      %v832 = vadd.f32 %v774, 1.0
      %v833 = vadd.f32 %v776, 1.0
      %v834 = vadd.f32 %v778, 1.0
      %v835 = vadd.f32 %v780, 1.0
      %v836 = vadd.f32 %v782, 1.0
      %v837 = vadd.f32 %v784, 1.0
      %v838 = vadd.f32 %v786, 1.0
      %v839 = vadd.f32 %v788, 1.0
      %v840 = vadd.f32 %v790, 1.0
      %v841 = vadd.f32 %v792, 1.0
      %v842 = vadd.f32 %v794, 1.0
      %v843 = vadd.f32 %v796, 1.0
      %v844 = vadd.f32 %v798, 1.0
      %v845 = vadd.f32 %v800, 1.0
      %v846 = vadd.f32 %v802, 1.0
      %v847 = vadd.f32 %v804, 1.0
      %v848 = vadd.f32 %v806, 1.0
      %v849 = vadd.f32 %v808, 1.0
      %v850 = vadd.f32 %v810, 1.0
      %v851 = vadd.f32 %v812, 1.0
      %v852 = vadd.f32 %v814, 1.0
      %v853 = vadd.f32 %v816, 1.0
      %v854 = vadd.f32 %v818, 1.0
      %v855 = vadd.f32 %v820, 1.0
      %v856 = vadd.f32 %v822, 1.0
      %v857 = vadd.f32 %v824, 1.0
      %v858 = vadd.f32 %v826, 1.0
      %v859 = vrcp.pop %v827
      %v860 = vmul.f32 1.0, %v859
      %v861 = vrcp.pop %v828
      %v862 = vmul.f32 1.0, %v861
      %v863 = vrcp.pop %v829
      %v864 = vmul.f32 1.0, %v863
      %v865 = vrcp.pop %v830
      %v866 = vmul.f32 1.0, %v865
      %v867 = vrcp.pop %v831
      %v868 = vmul.f32 1.0, %v867
      %v869 = vrcp.pop %v832
      %v870 = vmul.f32 1.0, %v869
      %v871 = vrcp.pop %v833
      %v872 = vmul.f32 1.0, %v871
      %v873 = vrcp.pop %v834
      %v874 = vmul.f32 1.0, %v873
      %v875 = vrcp.pop %v835
      %v876 = vmul.f32 1.0, %v875
      %v877 = vrcp.pop %v836
      %v878 = vmul.f32 1.0, %v877
      %v879 = vrcp.pop %v837
      %v880 = vmul.f32 1.0, %v879
      %v881 = vrcp.pop %v838
      %v882 = vmul.f32 1.0, %v881
      %v883 = vrcp.pop %v839
      %v884 = vmul.f32 1.0, %v883
      %v885 = vrcp.pop %v840
      %v886 = vmul.f32 1.0, %v885
      %v887 = vrcp.pop %v841
      %v888 = vmul.f32 1.0, %v887
      %v889 = vrcp.pop %v842
      %v890 = vmul.f32 1.0, %v889
      %v891 = vrcp.pop %v843
      %v892 = vmul.f32 1.0, %v891
      %v893 = vrcp.pop %v844
      %v894 = vmul.f32 1.0, %v893
      %v895 = vrcp.pop %v845
      %v896 = vmul.f32 1.0, %v895
      %v897 = vrcp.pop %v846
      %v898 = vmul.f32 1.0, %v897
      %v899 = vrcp.pop %v847
      %v900 = vmul.f32 1.0, %v899
      %v901 = vrcp.pop %v848
      %v902 = vmul.f32 1.0, %v901
      %v903 = vrcp.pop %v849
      %v904 = vmul.f32 1.0, %v903
      %v905 = vrcp.pop %v850
      %v906 = vmul.f32 1.0, %v905
      %v907 = vrcp.pop %v851
      %v908 = vmul.f32 1.0, %v907
      %v909 = vrcp.pop %v852
      %v910 = vmul.f32 1.0, %v909
      %v911 = vrcp.pop %v853
      %v912 = vmul.f32 1.0, %v911
      %v913 = vrcp.pop %v854
      %v914 = vmul.f32 1.0, %v913
      %v915 = vrcp.pop %v855
      %v916 = vmul.f32 1.0, %v915
      %v917 = vrcp.pop %v856
      %v918 = vmul.f32 1.0, %v917
      %v919 = vrcp.pop %v857
      %v920 = vmul.f32 1.0, %v919
      %v921 = vrcp.pop %v858
      %v922 = vmul.f32 1.0, %v921
      %v923 = vmul.f32 %v699, %v860
      %v924 = vmul.f32 %v700, %v862
      %v925 = vmul.f32 %v701, %v864
      %v926 = vmul.f32 %v702, %v866
      %v927 = vmul.f32 %v703, %v868
      %v928 = vmul.f32 %v704, %v870
      %v929 = vmul.f32 %v705, %v872
      %v930 = vmul.f32 %v706, %v874
      %v931 = vmul.f32 %v707, %v876
      %v932 = vmul.f32 %v708, %v878
      %v933 = vmul.f32 %v709, %v880
      %v934 = vmul.f32 %v710, %v882
      %v935 = vmul.f32 %v711, %v884
      %v936 = vmul.f32 %v712, %v886
      %v937 = vmul.f32 %v713, %v888
      %v938 = vmul.f32 %v714, %v890
      %v939 = vmul.f32 %v715, %v892
      %v940 = vmul.f32 %v716, %v894
      %v941 = vmul.f32 %v717, %v896
      %v942 = vmul.f32 %v718, %v898
      %v943 = vmul.f32 %v719, %v900
      %v944 = vmul.f32 %v720, %v902
      %v945 = vmul.f32 %v721, %v904
      %v946 = vmul.f32 %v722, %v906
      %v947 = vmul.f32 %v723, %v908
      %v948 = vmul.f32 %v724, %v910
      %v949 = vmul.f32 %v725, %v912
      %v950 = vmul.f32 %v726, %v914
      %v951 = vmul.f32 %v727, %v916
      %v952 = vmul.f32 %v728, %v918
      %v953 = vmul.f32 %v729, %v920
      %v954 = vmul.f32 %v730, %v922
      %v955 = vld [vmem:[%s4] sm:$0x1]
      %s956 = scalar_lea.vmem [#allocation2], 24
      %957 = vst [vmem:[%s956 + $0x1] sm:$0xff] %v923
      %958 = vst [vmem:[%s956 + $0x9] sm:$0xff] %v924
      %959 = vst [vmem:[%s956 + $0x19] sm:$0xff] %v925
      %960 = vst [vmem:[%s956 + $0x21] sm:$0xff] %v926
      %961 = vst [vmem:[%s956 + $0x31] sm:$0xff] %v927
      %962 = vst [vmem:[%s956 + $0x39] sm:$0xff] %v928
      %963 = vst [vmem:[%s956 + $0x49] sm:$0xff] %v929
      %964 = vst [vmem:[%s956 + $0x51] sm:$0xff] %v930
      %965 = vst [vmem:[%s956 + $0x61] sm:$0xff] %v931
      %966 = vst [vmem:[%s956 + $0x69] sm:$0xff] %v932
      %967 = vst [vmem:[%s956 + $0x79] sm:$0xff] %v933
      %968 = vst [vmem:[%s956 + $0x81] sm:$0xff] %v934
      %969 = vst [vmem:[%s956 + $0x91] sm:$0xff] %v935
      %970 = vst [vmem:[%s956 + $0x99] sm:$0xff] %v936
      %971 = vst [vmem:[%s956 + $0xa9] sm:$0xff] %v937
      %972 = vst [vmem:[%s956 + $0xb1] sm:$0xff] %v938
      %973 = vst [vmem:[%s956 + $0xc1] sm:$0xff] %v939
      %974 = vst [vmem:[%s956 + $0xc9] sm:$0xff] %v940
      %975 = vst [vmem:[%s956 + $0xd9] sm:$0xff] %v941
      %976 = vst [vmem:[%s956 + $0xe1] sm:$0xff] %v942
      %977 = vst [vmem:[%s956 + $0xf1] sm:$0xff] %v943
      %978 = vst [vmem:[%s956 + $0xf9] sm:$0xff] %v944
      %979 = vst [vmem:[%s956 + $0x109] sm:$0xff] %v945
      %980 = vst [vmem:[%s956 + $0x111] sm:$0xff] %v946
      %981 = vst [vmem:[%s956 + $0x121] sm:$0xff] %v947
      %982 = vst [vmem:[%s956 + $0x129] sm:$0xff] %v948
      %983 = vst [vmem:[%s956 + $0x139] sm:$0xff] %v949
      %984 = vst [vmem:[%s956 + $0x141] sm:$0xff] %v950
      %985 = vst [vmem:[%s956 + $0x151] sm:$0xff] %v951
      %986 = vst [vmem:[%s956 + $0x159] sm:$0xff] %v952
      %987 = vst [vmem:[%s956 + $0x169] sm:$0xff] %v953
      %988 = vst [vmem:[%s956 + $0x171] sm:$0xff] %v954
      %v989 = vld [vmem:[#allocation2] sm:$0xff]
      %v990 = vld [vmem:[#allocation2 + $0x8] sm:$0xff]
      %v991 = vld [vmem:[#allocation2 + $0x18] sm:$0xff]
      %v992 = vld [vmem:[#allocation2 + $0x20] sm:$0xff]
      %v993 = vld [vmem:[#allocation2 + $0x30] sm:$0xff]
      %v994 = vld [vmem:[#allocation2 + $0x38] sm:$0xff]
      %v995 = vld [vmem:[#allocation2 + $0x48] sm:$0xff]
      %v996 = vld [vmem:[#allocation2 + $0x50] sm:$0xff]
      %v997 = vld [vmem:[#allocation2 + $0x60] sm:$0xff]
      %v998 = vld [vmem:[#allocation2 + $0x68] sm:$0xff]
      %v999 = vld [vmem:[#allocation2 + $0x78] sm:$0xff]
      %v1000 = vld [vmem:[#allocation2 + $0x80] sm:$0xff]
      %v1001 = vld [vmem:[#allocation2 + $0x90] sm:$0xff]
      %v1002 = vld [vmem:[#allocation2 + $0x98] sm:$0xff]
      %v1003 = vld [vmem:[#allocation2 + $0xa8] sm:$0xff]
      %v1004 = vld [vmem:[#allocation2 + $0xb0] sm:$0xff]
      %v1005 = vld [vmem:[#allocation2 + $0xc0] sm:$0xff]
      %v1006 = vld [vmem:[#allocation2 + $0xc8] sm:$0xff]
      %v1007 = vld [vmem:[#allocation2 + $0xd8] sm:$0xff]
      %v1008 = vld [vmem:[#allocation2 + $0xe0] sm:$0xff]
      %v1009 = vld [vmem:[#allocation2 + $0xf0] sm:$0xff]
      %v1010 = vld [vmem:[#allocation2 + $0xf8] sm:$0xff]
      %v1011 = vld [vmem:[#allocation2 + $0x108] sm:$0xff]
      %v1012 = vld [vmem:[#allocation2 + $0x110] sm:$0xff]
      %v1013 = vld [vmem:[#allocation2 + $0x120] sm:$0xff]
      %v1014 = vld [vmem:[#allocation2 + $0x128] sm:$0xff]
      %v1015 = vld [vmem:[#allocation2 + $0x138] sm:$0xff]
      %v1016 = vld [vmem:[#allocation2 + $0x140] sm:$0xff]
      %v1017 = vld [vmem:[#allocation2 + $0x150] sm:$0xff]
      %v1018 = vld [vmem:[#allocation2 + $0x158] sm:$0xff]
      %v1019 = vld [vmem:[#allocation2 + $0x168] sm:$0xff]
      %v1020 = vld [vmem:[#allocation2 + $0x170] sm:$0xff]
      %v1021 = vld [vmem:[#allocation2 + $0x1] sm:$0xff]
      %v1022 = vld [vmem:[#allocation2 + $0x9] sm:$0xff]
      %v1023 = vld [vmem:[#allocation2 + $0x19] sm:$0xff]
      %v1024 = vld [vmem:[#allocation2 + $0x21] sm:$0xff]
      %v1025 = vld [vmem:[#allocation2 + $0x31] sm:$0xff]
      %v1026 = vld [vmem:[#allocation2 + $0x39] sm:$0xff]
      %v1027 = vld [vmem:[#allocation2 + $0x49] sm:$0xff]
      %v1028 = vld [vmem:[#allocation2 + $0x51] sm:$0xff]
      %v1029 = vld [vmem:[#allocation2 + $0x61] sm:$0xff]
      %v1030 = vld [vmem:[#allocation2 + $0x69] sm:$0xff]
      %v1031 = vld [vmem:[#allocation2 + $0x79] sm:$0xff]
      %v1032 = vld [vmem:[#allocation2 + $0x81] sm:$0xff]
      %v1033 = vld [vmem:[#allocation2 + $0x91] sm:$0xff]
      %v1034 = vld [vmem:[#allocation2 + $0x99] sm:$0xff]
      %v1035 = vld [vmem:[#allocation2 + $0xa9] sm:$0xff]
      %v1036 = vld [vmem:[#allocation2 + $0xb1] sm:$0xff]
      %v1037 = vld [vmem:[#allocation2 + $0xc1] sm:$0xff]
      %v1038 = vld [vmem:[#allocation2 + $0xc9] sm:$0xff]
      %v1039 = vld [vmem:[#allocation2 + $0xd9] sm:$0xff]
      %v1040 = vld [vmem:[#allocation2 + $0xe1] sm:$0xff]
      %v1041 = vld [vmem:[#allocation2 + $0xf1] sm:$0xff]
      %v1042 = vld [vmem:[#allocation2 + $0xf9] sm:$0xff]
      %v1043 = vld [vmem:[#allocation2 + $0x109] sm:$0xff]
      %v1044 = vld [vmem:[#allocation2 + $0x111] sm:$0xff]
      %v1045 = vld [vmem:[#allocation2 + $0x121] sm:$0xff]
      %v1046 = vld [vmem:[#allocation2 + $0x129] sm:$0xff]
      %v1047 = vld [vmem:[#allocation2 + $0x139] sm:$0xff]
      %v1048 = vld [vmem:[#allocation2 + $0x141] sm:$0xff]
      %v1049 = vld [vmem:[#allocation2 + $0x151] sm:$0xff]
      %v1050 = vld [vmem:[#allocation2 + $0x159] sm:$0xff]
      %v1051 = vld [vmem:[#allocation2 + $0x169] sm:$0xff]
      %v1052 = vld [vmem:[#allocation2 + $0x171] sm:$0xff]
      %v1053 = vld [vmem:[#allocation2 + $0x2] sm:$0xff]
      %v1054 = vld [vmem:[#allocation2 + $0xa] sm:$0xff]
      %v1055 = vld [vmem:[#allocation2 + $0x1a] sm:$0xff]
      %v1056 = vld [vmem:[#allocation2 + $0x22] sm:$0xff]
      %v1057 = vld [vmem:[#allocation2 + $0x32] sm:$0xff]
      %v1058 = vld [vmem:[#allocation2 + $0x3a] sm:$0xff]
      %v1059 = vld [vmem:[#allocation2 + $0x4a] sm:$0xff]
      %v1060 = vld [vmem:[#allocation2 + $0x52] sm:$0xff]
      %v1061 = vld [vmem:[#allocation2 + $0x62] sm:$0xff]
      %v1062 = vld [vmem:[#allocation2 + $0x6a] sm:$0xff]
      %v1063 = vld [vmem:[#allocation2 + $0x7a] sm:$0xff]
      %v1064 = vld [vmem:[#allocation2 + $0x82] sm:$0xff]
      %v1065 = vld [vmem:[#allocation2 + $0x92] sm:$0xff]
      %v1066 = vld [vmem:[#allocation2 + $0x9a] sm:$0xff]
      %v1067 = vld [vmem:[#allocation2 + $0xaa] sm:$0xff]
      %v1068 = vld [vmem:[#allocation2 + $0xb2] sm:$0xff]
      %v1069 = vld [vmem:[#allocation2 + $0xc2] sm:$0xff]
      %v1070 = vld [vmem:[#allocation2 + $0xca] sm:$0xff]
      %v1071 = vld [vmem:[#allocation2 + $0xda] sm:$0xff]
      %v1072 = vld [vmem:[#allocation2 + $0xe2] sm:$0xff]
      %v1073 = vld [vmem:[#allocation2 + $0xf2] sm:$0xff]
      %v1074 = vld [vmem:[#allocation2 + $0xfa] sm:$0xff]
      %v1075 = vld [vmem:[#allocation2 + $0x10a] sm:$0xff]
      %v1076 = vld [vmem:[#allocation2 + $0x112] sm:$0xff]
      %v1077 = vld [vmem:[#allocation2 + $0x122] sm:$0xff]
      %v1078 = vld [vmem:[#allocation2 + $0x12a] sm:$0xff]
      %v1079 = vld [vmem:[#allocation2 + $0x13a] sm:$0xff]
      %v1080 = vld [vmem:[#allocation2 + $0x142] sm:$0xff]
      %v1081 = vld [vmem:[#allocation2 + $0x152] sm:$0xff]
      %v1082 = vld [vmem:[#allocation2 + $0x15a] sm:$0xff]
      %v1083 = vld [vmem:[#allocation2 + $0x16a] sm:$0xff]
      %v1084 = vld [vmem:[#allocation2 + $0x172] sm:$0xff]
      %v1085 = vld [vmem:[%s956] sm:$0xff]
      %v1086 = vld [vmem:[%s956 + $0x8] sm:$0xff]
      %v1087 = vld [vmem:[%s956 + $0x18] sm:$0xff]
      %v1088 = vld [vmem:[%s956 + $0x20] sm:$0xff]
      %v1089 = vld [vmem:[%s956 + $0x30] sm:$0xff]
      %v1090 = vld [vmem:[%s956 + $0x38] sm:$0xff]
      %v1091 = vld [vmem:[%s956 + $0x48] sm:$0xff]
      %v1092 = vld [vmem:[%s956 + $0x50] sm:$0xff]
      %v1093 = vld [vmem:[%s956 + $0x60] sm:$0xff]
      %v1094 = vld [vmem:[%s956 + $0x68] sm:$0xff]
      %v1095 = vld [vmem:[%s956 + $0x78] sm:$0xff]
      %v1096 = vld [vmem:[%s956 + $0x80] sm:$0xff]
      %v1097 = vld [vmem:[%s956 + $0x90] sm:$0xff]
      %v1098 = vld [vmem:[%s956 + $0x98] sm:$0xff]
      %v1099 = vld [vmem:[%s956 + $0xa8] sm:$0xff]
      %v1100 = vld [vmem:[%s956 + $0xb0] sm:$0xff]
      %v1101 = vld [vmem:[%s956 + $0xc0] sm:$0xff]
      %v1102 = vld [vmem:[%s956 + $0xc8] sm:$0xff]
      %v1103 = vld [vmem:[%s956 + $0xd8] sm:$0xff]
      %v1104 = vld [vmem:[%s956 + $0xe0] sm:$0xff]
      %v1105 = vld [vmem:[%s956 + $0xf0] sm:$0xff]
      %v1106 = vld [vmem:[%s956 + $0xf8] sm:$0xff]
      %v1107 = vld [vmem:[%s956 + $0x108] sm:$0xff]
      %v1108 = vld [vmem:[%s956 + $0x110] sm:$0xff]
      %v1109 = vld [vmem:[%s956 + $0x120] sm:$0xff]
      %v1110 = vld [vmem:[%s956 + $0x128] sm:$0xff]
      %v1111 = vld [vmem:[%s956 + $0x138] sm:$0xff]
      %v1112 = vld [vmem:[%s956 + $0x140] sm:$0xff]
      %v1113 = vld [vmem:[%s956 + $0x150] sm:$0xff]
      %v1114 = vld [vmem:[%s956 + $0x158] sm:$0xff]
      %v1115 = vld [vmem:[%s956 + $0x168] sm:$0xff]
      %v1116 = vld [vmem:[%s956 + $0x170] sm:$0xff]
      %v1117 = vld [vmem:[%s956 + $0x1] sm:$0xff]
      %v1118 = vld [vmem:[%s956 + $0x9] sm:$0xff]
      %v1119 = vld [vmem:[%s956 + $0x19] sm:$0xff]
      %v1120 = vld [vmem:[%s956 + $0x21] sm:$0xff]
      %v1121 = vld [vmem:[%s956 + $0x31] sm:$0xff]
      %v1122 = vld [vmem:[%s956 + $0x39] sm:$0xff]
      %v1123 = vld [vmem:[%s956 + $0x49] sm:$0xff]
      %v1124 = vld [vmem:[%s956 + $0x51] sm:$0xff]
      %v1125 = vld [vmem:[%s956 + $0x61] sm:$0xff]
      %v1126 = vld [vmem:[%s956 + $0x69] sm:$0xff]
      %v1127 = vld [vmem:[%s956 + $0x79] sm:$0xff]
      %v1128 = vld [vmem:[%s956 + $0x81] sm:$0xff]
      %v1129 = vld [vmem:[%s956 + $0x91] sm:$0xff]
      %v1130 = vld [vmem:[%s956 + $0x99] sm:$0xff]
      %v1131 = vld [vmem:[%s956 + $0xa9] sm:$0xff]
      %v1132 = vld [vmem:[%s956 + $0xb1] sm:$0xff]
      %v1133 = vld [vmem:[%s956 + $0xc1] sm:$0xff]
      %v1134 = vld [vmem:[%s956 + $0xc9] sm:$0xff]
      %v1135 = vld [vmem:[%s956 + $0xd9] sm:$0xff]
      %v1136 = vld [vmem:[%s956 + $0xe1] sm:$0xff]
      %v1137 = vld [vmem:[%s956 + $0xf1] sm:$0xff]
      %v1138 = vld [vmem:[%s956 + $0xf9] sm:$0xff]
      %v1139 = vld [vmem:[%s956 + $0x109] sm:$0xff]
      %v1140 = vld [vmem:[%s956 + $0x111] sm:$0xff]
      %v1141 = vld [vmem:[%s956 + $0x121] sm:$0xff]
      %v1142 = vld [vmem:[%s956 + $0x129] sm:$0xff]
      %v1143 = vld [vmem:[%s956 + $0x139] sm:$0xff]
      %v1144 = vld [vmem:[%s956 + $0x141] sm:$0xff]
      %v1145 = vld [vmem:[%s956 + $0x151] sm:$0xff]
      %v1146 = vld [vmem:[%s956 + $0x159] sm:$0xff]
      %v1147 = vld [vmem:[%s956 + $0x169] sm:$0xff]
      %v1148 = vld [vmem:[%s956 + $0x171] sm:$0xff]
      %v1149 = vld [vmem:[%s956 + $0x2] sm:$0xff]
      %v1150 = vld [vmem:[%s956 + $0xa] sm:$0xff]
      %v1151 = vld [vmem:[%s956 + $0x1a] sm:$0xff]
      %v1152 = vld [vmem:[%s956 + $0x22] sm:$0xff]
      %v1153 = vld [vmem:[%s956 + $0x32] sm:$0xff]
      %v1154 = vld [vmem:[%s956 + $0x3a] sm:$0xff]
      %v1155 = vld [vmem:[%s956 + $0x4a] sm:$0xff]
      %v1156 = vld [vmem:[%s956 + $0x52] sm:$0xff]
      %v1157 = vld [vmem:[%s956 + $0x62] sm:$0xff]
      %v1158 = vld [vmem:[%s956 + $0x6a] sm:$0xff]
      %v1159 = vld [vmem:[%s956 + $0x7a] sm:$0xff]
      %v1160 = vld [vmem:[%s956 + $0x82] sm:$0xff]
      %v1161 = vld [vmem:[%s956 + $0x92] sm:$0xff]
      %v1162 = vld [vmem:[%s956 + $0x9a] sm:$0xff]
      %v1163 = vld [vmem:[%s956 + $0xaa] sm:$0xff]
      %v1164 = vld [vmem:[%s956 + $0xb2] sm:$0xff]
      %v1165 = vld [vmem:[%s956 + $0xc2] sm:$0xff]
      %v1166 = vld [vmem:[%s956 + $0xca] sm:$0xff]
      %v1167 = vld [vmem:[%s956 + $0xda] sm:$0xff]
      %v1168 = vld [vmem:[%s956 + $0xe2] sm:$0xff]
      %v1169 = vld [vmem:[%s956 + $0xf2] sm:$0xff]
      %v1170 = vld [vmem:[%s956 + $0xfa] sm:$0xff]
      %v1171 = vld [vmem:[%s956 + $0x10a] sm:$0xff]
      %v1172 = vld [vmem:[%s956 + $0x112] sm:$0xff]
      %v1173 = vld [vmem:[%s956 + $0x122] sm:$0xff]
      %v1174 = vld [vmem:[%s956 + $0x12a] sm:$0xff]
      %v1175 = vld [vmem:[%s956 + $0x13a] sm:$0xff]
      %v1176 = vld [vmem:[%s956 + $0x142] sm:$0xff]
      %v1177 = vld [vmem:[%s956 + $0x152] sm:$0xff]
      %v1178 = vld [vmem:[%s956 + $0x15a] sm:$0xff]
      %v1179 = vld [vmem:[%s956 + $0x16a] sm:$0xff]
      %v1180 = vld [vmem:[%s956 + $0x172] sm:$0xff]
      %s1181 = scalar_lea.vmem [#allocation2], 48
      %v1182 = vld [vmem:[%s1181] sm:$0xff]
      %v1183 = vld [vmem:[%s1181 + $0x8] sm:$0xff]
      %v1184 = vld [vmem:[%s1181 + $0x18] sm:$0xff]
      %v1185 = vld [vmem:[%s1181 + $0x20] sm:$0xff]
      %v1186 = vld [vmem:[%s1181 + $0x30] sm:$0xff]
      %v1187 = vld [vmem:[%s1181 + $0x38] sm:$0xff]
      %v1188 = vld [vmem:[%s1181 + $0x48] sm:$0xff]
      %v1189 = vld [vmem:[%s1181 + $0x50] sm:$0xff]
      %v1190 = vld [vmem:[%s1181 + $0x60] sm:$0xff]
      %v1191 = vld [vmem:[%s1181 + $0x68] sm:$0xff]
      %v1192 = vld [vmem:[%s1181 + $0x78] sm:$0xff]
      %v1193 = vld [vmem:[%s1181 + $0x80] sm:$0xff]
      %v1194 = vld [vmem:[%s1181 + $0x90] sm:$0xff]
      %v1195 = vld [vmem:[%s1181 + $0x98] sm:$0xff]
      %v1196 = vld [vmem:[%s1181 + $0xa8] sm:$0xff]
      %v1197 = vld [vmem:[%s1181 + $0xb0] sm:$0xff]
      %v1198 = vld [vmem:[%s1181 + $0xc0] sm:$0xff]
      %v1199 = vld [vmem:[%s1181 + $0xc8] sm:$0xff]
      %v1200 = vld [vmem:[%s1181 + $0xd8] sm:$0xff]
      %v1201 = vld [vmem:[%s1181 + $0xe0] sm:$0xff]
      %v1202 = vld [vmem:[%s1181 + $0xf0] sm:$0xff]
      %v1203 = vld [vmem:[%s1181 + $0xf8] sm:$0xff]
      %v1204 = vld [vmem:[%s1181 + $0x108] sm:$0xff]
      %v1205 = vld [vmem:[%s1181 + $0x110] sm:$0xff]
      %v1206 = vld [vmem:[%s1181 + $0x120] sm:$0xff]
      %v1207 = vld [vmem:[%s1181 + $0x128] sm:$0xff]
      %v1208 = vld [vmem:[%s1181 + $0x138] sm:$0xff]
      %v1209 = vld [vmem:[%s1181 + $0x140] sm:$0xff]
      %v1210 = vld [vmem:[%s1181 + $0x150] sm:$0xff]
      %v1211 = vld [vmem:[%s1181 + $0x158] sm:$0xff]
      %v1212 = vld [vmem:[%s1181 + $0x168] sm:$0xff]
      %v1213 = vld [vmem:[%s1181 + $0x170] sm:$0xff]
      %v1214 = vld [vmem:[%s1181 + $0x1] sm:$0xff]
      %v1215 = vld [vmem:[%s1181 + $0x9] sm:$0xff]
      %v1216 = vld [vmem:[%s1181 + $0x19] sm:$0xff]
      %v1217 = vld [vmem:[%s1181 + $0x21] sm:$0xff]
      %v1218 = vld [vmem:[%s1181 + $0x31] sm:$0xff]
      %v1219 = vld [vmem:[%s1181 + $0x39] sm:$0xff]
      %v1220 = vld [vmem:[%s1181 + $0x49] sm:$0xff]
      %v1221 = vld [vmem:[%s1181 + $0x51] sm:$0xff]
      %v1222 = vld [vmem:[%s1181 + $0x61] sm:$0xff]
      %v1223 = vld [vmem:[%s1181 + $0x69] sm:$0xff]
      %v1224 = vld [vmem:[%s1181 + $0x79] sm:$0xff]
      %v1225 = vld [vmem:[%s1181 + $0x81] sm:$0xff]
      %v1226 = vld [vmem:[%s1181 + $0x91] sm:$0xff]
      %v1227 = vld [vmem:[%s1181 + $0x99] sm:$0xff]
      %v1228 = vld [vmem:[%s1181 + $0xa9] sm:$0xff]
      %v1229 = vld [vmem:[%s1181 + $0xb1] sm:$0xff]
      %v1230 = vld [vmem:[%s1181 + $0xc1] sm:$0xff]
      %v1231 = vld [vmem:[%s1181 + $0xc9] sm:$0xff]
      %v1232 = vld [vmem:[%s1181 + $0xd9] sm:$0xff]
      %v1233 = vld [vmem:[%s1181 + $0xe1] sm:$0xff]
      %v1234 = vld [vmem:[%s1181 + $0xf1] sm:$0xff]
      %v1235 = vld [vmem:[%s1181 + $0xf9] sm:$0xff]
      %v1236 = vld [vmem:[%s1181 + $0x109] sm:$0xff]
      %v1237 = vld [vmem:[%s1181 + $0x111] sm:$0xff]
      %v1238 = vld [vmem:[%s1181 + $0x121] sm:$0xff]
      %v1239 = vld [vmem:[%s1181 + $0x129] sm:$0xff]
      %v1240 = vld [vmem:[%s1181 + $0x139] sm:$0xff]
      %v1241 = vld [vmem:[%s1181 + $0x141] sm:$0xff]
      %v1242 = vld [vmem:[%s1181 + $0x151] sm:$0xff]
      %v1243 = vld [vmem:[%s1181 + $0x159] sm:$0xff]
      %v1244 = vld [vmem:[%s1181 + $0x169] sm:$0xff]
      %v1245 = vld [vmem:[%s1181 + $0x171] sm:$0xff]
      %v1246 = vld [vmem:[%s1181 + $0x2] sm:$0xff]
      %v1247 = vld [vmem:[%s1181 + $0xa] sm:$0xff]
      %v1248 = vld [vmem:[%s1181 + $0x1a] sm:$0xff]
      %v1249 = vld [vmem:[%s1181 + $0x22] sm:$0xff]
      %v1250 = vld [vmem:[%s1181 + $0x32] sm:$0xff]
      %v1251 = vld [vmem:[%s1181 + $0x3a] sm:$0xff]
      %v1252 = vld [vmem:[%s1181 + $0x4a] sm:$0xff]
      %v1253 = vld [vmem:[%s1181 + $0x52] sm:$0xff]
      %v1254 = vld [vmem:[%s1181 + $0x62] sm:$0xff]
      %v1255 = vld [vmem:[%s1181 + $0x6a] sm:$0xff]
      %v1256 = vld [vmem:[%s1181 + $0x7a] sm:$0xff]
      %v1257 = vld [vmem:[%s1181 + $0x82] sm:$0xff]
      %v1258 = vld [vmem:[%s1181 + $0x92] sm:$0xff]
      %v1259 = vld [vmem:[%s1181 + $0x9a] sm:$0xff]
      %v1260 = vld [vmem:[%s1181 + $0xaa] sm:$0xff]
      %v1261 = vld [vmem:[%s1181 + $0xb2] sm:$0xff]
      %v1262 = vld [vmem:[%s1181 + $0xc2] sm:$0xff]
      %v1263 = vld [vmem:[%s1181 + $0xca] sm:$0xff]
      %v1264 = vld [vmem:[%s1181 + $0xda] sm:$0xff]
      %v1265 = vld [vmem:[%s1181 + $0xe2] sm:$0xff]
      %v1266 = vld [vmem:[%s1181 + $0xf2] sm:$0xff]
      %v1267 = vld [vmem:[%s1181 + $0xfa] sm:$0xff]
      %v1268 = vld [vmem:[%s1181 + $0x10a] sm:$0xff]
      %v1269 = vld [vmem:[%s1181 + $0x112] sm:$0xff]
      %v1270 = vld [vmem:[%s1181 + $0x122] sm:$0xff]
      %v1271 = vld [vmem:[%s1181 + $0x12a] sm:$0xff]
      %v1272 = vld [vmem:[%s1181 + $0x13a] sm:$0xff]
      %v1273 = vld [vmem:[%s1181 + $0x142] sm:$0xff]
      %v1274 = vld [vmem:[%s1181 + $0x152] sm:$0xff]
      %v1275 = vld [vmem:[%s1181 + $0x15a] sm:$0xff]
      %v1276 = vld [vmem:[%s1181 + $0x16a] sm:$0xff]
      %v1277 = vld [vmem:[%s1181 + $0x172] sm:$0xff]
      %v1278 = vld [vmem:[%s3] sm:$0xff]
      %v1279 = vld [vmem:[%s3 + $0x8] sm:$0xff]
      %v1280 = vld [vmem:[%s3 + $0x10] sm:$0xff]
      %v1281 = vld [vmem:[%s3 + $0x18] sm:$0xff]
      %v1282 = vld [vmem:[%s3 + $0x20] sm:$0xff]
      %v1283 = vld [vmem:[%s3 + $0x28] sm:$0xff]
      %v1284 = vld [vmem:[%s3 + $0x30] sm:$0xff]
      %v1285 = vld [vmem:[%s3 + $0x38] sm:$0xff]
      %v1286 = vld [vmem:[%s3 + $0x40] sm:$0xff]
      %v1287 = vld [vmem:[%s3 + $0x48] sm:$0xff]
      %v1288 = vld [vmem:[%s3 + $0x50] sm:$0xff]
      %v1289 = vld [vmem:[%s3 + $0x58] sm:$0xff]
      %v1290 = vld [vmem:[%s3 + $0x60] sm:$0xff]
      %v1291 = vld [vmem:[%s3 + $0x68] sm:$0xff]
      %v1292 = vld [vmem:[%s3 + $0x70] sm:$0xff]
      %v1293 = vld [vmem:[%s3 + $0x78] sm:$0xff]
      %v1294 = vld [vmem:[%s3 + $0x80] sm:$0xff]
      %v1295 = vld [vmem:[%s3 + $0x88] sm:$0xff]
      %v1296 = vld [vmem:[%s3 + $0x90] sm:$0xff]
      %v1297 = vld [vmem:[%s3 + $0x98] sm:$0xff]
      %v1298 = vld [vmem:[%s3 + $0xa0] sm:$0xff]
      %v1299 = vld [vmem:[%s3 + $0xa8] sm:$0xff]
      %v1300 = vld [vmem:[%s3 + $0xb0] sm:$0xff]
      %v1301 = vld [vmem:[%s3 + $0xb8] sm:$0xff]
      %v1302 = vld [vmem:[%s3 + $0xc0] sm:$0xff]
      %v1303 = vld [vmem:[%s3 + $0xc8] sm:$0xff]
      %v1304 = vld [vmem:[%s3 + $0xd0] sm:$0xff]
      %v1305 = vld [vmem:[%s3 + $0xd8] sm:$0xff]
      %v1306 = vld [vmem:[%s3 + $0xe0] sm:$0xff]
      %v1307 = vld [vmem:[%s3 + $0xe8] sm:$0xff]
      %v1308 = vld [vmem:[%s3 + $0xf0] sm:$0xff]
      %v1309 = vld [vmem:[%s3 + $0xf8] sm:$0xff]
      %v1310 = vld [vmem:[%s3 + $0x100] sm:$0xff]
      %v1311 = vld [vmem:[%s3 + $0x108] sm:$0xff]
      %v1312 = vld [vmem:[%s3 + $0x110] sm:$0xff]
      %v1313 = vld [vmem:[%s3 + $0x118] sm:$0xff]
      %v1314 = vld [vmem:[%s3 + $0x120] sm:$0xff]
      %v1315 = vld [vmem:[%s3 + $0x128] sm:$0xff]
      %v1316 = vld [vmem:[%s3 + $0x130] sm:$0xff]
      %v1317 = vld [vmem:[%s3 + $0x138] sm:$0xff]
      %v1318 = vld [vmem:[%s3 + $0x140] sm:$0xff]
      %v1319 = vld [vmem:[%s3 + $0x148] sm:$0xff]
      %v1320 = vld [vmem:[%s3 + $0x150] sm:$0xff]
      %v1321 = vld [vmem:[%s3 + $0x158] sm:$0xff]
      %v1322 = vld [vmem:[%s3 + $0x160] sm:$0xff]
      %v1323 = vld [vmem:[%s3 + $0x168] sm:$0xff]
      %v1324 = vld [vmem:[%s3 + $0x170] sm:$0xff]
      %v1325 = vld [vmem:[%s3 + $0x178] sm:$0xff]
      %v1326 = vld [vmem:[%s3 + $0x180] sm:$0xff]
      %v1327 = vld [vmem:[%s3 + $0x188] sm:$0xff]
      %v1328 = vld [vmem:[%s3 + $0x190] sm:$0xff]
      %v1329 = vld [vmem:[%s3 + $0x198] sm:$0xff]
      %v1330 = vld [vmem:[%s3 + $0x1a0] sm:$0xff]
      %v1331 = vld [vmem:[%s3 + $0x1a8] sm:$0xff]
      %v1332 = vld [vmem:[%s3 + $0x1b0] sm:$0xff]
      %v1333 = vld [vmem:[%s3 + $0x1b8] sm:$0xff]
      %v1334 = vld [vmem:[%s3 + $0x1c0] sm:$0xff]
      %v1335 = vld [vmem:[%s3 + $0x1c8] sm:$0xff]
      %v1336 = vld [vmem:[%s3 + $0x1d0] sm:$0xff]
      %v1337 = vld [vmem:[%s3 + $0x1d8] sm:$0xff]
      %v1338 = vld [vmem:[%s3 + $0x1e0] sm:$0xff]
      %v1339 = vld [vmem:[%s3 + $0x1e8] sm:$0xff]
      %v1340 = vld [vmem:[%s3 + $0x1f0] sm:$0xff]
      %v1341 = vld [vmem:[%s3 + $0x1f8] sm:$0xff]
      %v1342 = vld [vmem:[%s3 + $0x200] sm:$0xff]
      %v1343 = vld [vmem:[%s3 + $0x208] sm:$0xff]
      %v1344 = vld [vmem:[%s3 + $0x210] sm:$0xff]
      %v1345 = vld [vmem:[%s3 + $0x218] sm:$0xff]
      %v1346 = vld [vmem:[%s3 + $0x220] sm:$0xff]
      %v1347 = vld [vmem:[%s3 + $0x228] sm:$0xff]
      %v1348 = vld [vmem:[%s3 + $0x230] sm:$0xff]
      %v1349 = vld [vmem:[%s3 + $0x238] sm:$0xff]
      %v1350 = vld [vmem:[%s3 + $0x240] sm:$0xff]
      %v1351 = vld [vmem:[%s3 + $0x248] sm:$0xff]
      %v1352 = vld [vmem:[%s3 + $0x250] sm:$0xff]
      %v1353 = vld [vmem:[%s3 + $0x258] sm:$0xff]
      %v1354 = vld [vmem:[%s3 + $0x260] sm:$0xff]
      %v1355 = vld [vmem:[%s3 + $0x268] sm:$0xff]
      %v1356 = vld [vmem:[%s3 + $0x270] sm:$0xff]
      %v1357 = vld [vmem:[%s3 + $0x278] sm:$0xff]
      %v1358 = vld [vmem:[%s3 + $0x280] sm:$0xff]
      %v1359 = vld [vmem:[%s3 + $0x288] sm:$0xff]
      %v1360 = vld [vmem:[%s3 + $0x290] sm:$0xff]
      %v1361 = vld [vmem:[%s3 + $0x298] sm:$0xff]
      %v1362 = vld [vmem:[%s3 + $0x2a0] sm:$0xff]
      %v1363 = vld [vmem:[%s3 + $0x2a8] sm:$0xff]
      %v1364 = vld [vmem:[%s3 + $0x2b0] sm:$0xff]
      %v1365 = vld [vmem:[%s3 + $0x2b8] sm:$0xff]
      %v1366 = vld [vmem:[%s3 + $0x2c0] sm:$0xff]
      %v1367 = vld [vmem:[%s3 + $0x2c8] sm:$0xff]
      %v1368 = vld [vmem:[%s3 + $0x2d0] sm:$0xff]
      %v1369 = vld [vmem:[%s3 + $0x2d8] sm:$0xff]
      %v1370 = vld [vmem:[%s3 + $0x2e0] sm:$0xff]
      %v1371 = vld [vmem:[%s3 + $0x2e8] sm:$0xff]
      %v1372 = vld [vmem:[%s3 + $0x2f0] sm:$0xff]
      %v1373 = vld [vmem:[%s3 + $0x2f8] sm:$0xff]
      %v1374 = vld [vmem:[%s3 + $0x300] sm:$0xff]
      %v1375 = vld [vmem:[%s3 + $0x308] sm:$0xff]
      %v1376 = vld [vmem:[%s3 + $0x310] sm:$0xff]
      %v1377 = vld [vmem:[%s3 + $0x318] sm:$0xff]
      %v1378 = vld [vmem:[%s3 + $0x320] sm:$0xff]
      %v1379 = vld [vmem:[%s3 + $0x328] sm:$0xff]
      %v1380 = vld [vmem:[%s3 + $0x330] sm:$0xff]
      %v1381 = vld [vmem:[%s3 + $0x338] sm:$0xff]
      %v1382 = vld [vmem:[%s3 + $0x340] sm:$0xff]
      %v1383 = vld [vmem:[%s3 + $0x348] sm:$0xff]
      %v1384 = vld [vmem:[%s3 + $0x350] sm:$0xff]
      %v1385 = vld [vmem:[%s3 + $0x358] sm:$0xff]
      %v1386 = vld [vmem:[%s3 + $0x360] sm:$0xff]
      %v1387 = vld [vmem:[%s3 + $0x368] sm:$0xff]
      %v1388 = vld [vmem:[%s3 + $0x370] sm:$0xff]
      %v1389 = vld [vmem:[%s3 + $0x378] sm:$0xff]
      %v1390 = vld [vmem:[%s3 + $0x380] sm:$0xff]
      %v1391 = vld [vmem:[%s3 + $0x388] sm:$0xff]
      %v1392 = vld [vmem:[%s3 + $0x390] sm:$0xff]
      %v1393 = vld [vmem:[%s3 + $0x398] sm:$0xff]
      %v1394 = vld [vmem:[%s3 + $0x3a0] sm:$0xff]
      %v1395 = vld [vmem:[%s3 + $0x3a8] sm:$0xff]
      %v1396 = vld [vmem:[%s3 + $0x3b0] sm:$0xff]
      %v1397 = vld [vmem:[%s3 + $0x3b8] sm:$0xff]
      %v1398 = vld [vmem:[%s3 + $0x3c0] sm:$0xff]
      %v1399 = vld [vmem:[%s3 + $0x3c8] sm:$0xff]
      %v1400 = vld [vmem:[%s3 + $0x3d0] sm:$0xff]
      %v1401 = vld [vmem:[%s3 + $0x3d8] sm:$0xff]
      %v1402 = vld [vmem:[%s3 + $0x3e0] sm:$0xff]
      %v1403 = vld [vmem:[%s3 + $0x3e8] sm:$0xff]
      %v1404 = vld [vmem:[%s3 + $0x3f0] sm:$0xff]
      %v1405 = vld [vmem:[%s3 + $0x3f8] sm:$0xff]
      %v1406 = vld [vmem:[%s3 + $0x400] sm:$0xff]
      %v1407 = vld [vmem:[%s3 + $0x408] sm:$0xff]
      %v1408 = vld [vmem:[%s3 + $0x410] sm:$0xff]
      %v1409 = vld [vmem:[%s3 + $0x418] sm:$0xff]
      %v1410 = vld [vmem:[%s3 + $0x420] sm:$0xff]
      %v1411 = vld [vmem:[%s3 + $0x428] sm:$0xff]
      %v1412 = vld [vmem:[%s3 + $0x430] sm:$0xff]
      %v1413 = vld [vmem:[%s3 + $0x438] sm:$0xff]
      %v1414 = vld [vmem:[%s3 + $0x440] sm:$0xff]
      %v1415 = vld [vmem:[%s3 + $0x448] sm:$0xff]
      %v1416 = vld [vmem:[%s3 + $0x450] sm:$0xff]
      %v1417 = vld [vmem:[%s3 + $0x458] sm:$0xff]
      %v1418 = vld [vmem:[%s3 + $0x460] sm:$0xff]
      %v1419 = vld [vmem:[%s3 + $0x468] sm:$0xff]
      %v1420 = vld [vmem:[%s3 + $0x470] sm:$0xff]
      %v1421 = vld [vmem:[%s3 + $0x478] sm:$0xff]
      %v1423 = vlaneseq
      %v1424 = vshrl.u32 %v1423, 7
      %v1425 = vsub.s32 0, %v1424
      %v1426 = vrot.slane %v955, %v1425
      %1428 = vmatprep.subr.mxu0 0.0
      %1429 = vmatpush1.msra.mxu0 %v1278
      %1430 = vmatprep.subr.mxu0 0.0
      %1431 = vmatpush1.msra.mxu0 %v1279
      %1432 = vmatprep.subr.mxu0 0.0
      %1433 = vmatpush1.msra.mxu0 %v1280
      %1434 = vmatprep.subr.mxu0 0.0
      %1435 = vmatpush1.msra.mxu0 %v1281
      %1436 = vmatprep.subr.mxu0 0.0
      %1437 = vmatpush1.msra.mxu0 %v1282
      %1438 = vmatprep.subr.mxu0 0.0
      %1439 = vmatpush1.msra.mxu0 %v1283
      %1440 = vmatprep.subr.mxu0 0.0
      %1441 = vmatpush1.msra.mxu0 %v1284
      %1442 = vmatprep.subr.mxu0 0.0
      %1443 = vmatpush1.msra.mxu0 %v1285
      %1444 = vmatprep.subr.mxu0 0.0
      %1445 = vmatpush1.msra.mxu0 %v1286
      %1446 = vmatprep.subr.mxu0 0.0
      %1447 = vmatpush1.msra.mxu0 %v1287
      %1448 = vmatprep.subr.mxu0 0.0
      %1449 = vmatpush1.msra.mxu0 %v1288
      %1450 = vmatprep.subr.mxu0 0.0
      %1451 = vmatpush1.msra.mxu0 %v1289
      %1452 = vmatprep.subr.mxu0 0.0
      %1453 = vmatpush1.msra.mxu0 %v1290
      %1454 = vmatprep.subr.mxu0 0.0
      %1455 = vmatpush1.msra.mxu0 %v1291
      %1456 = vmatprep.subr.mxu0 0.0
      %1457 = vmatpush1.msra.mxu0 %v1292
      %1458 = vmatprep.subr.mxu0 0.0
      %1459 = vmatpush1.msra.mxu0 %v1293
      %1460 = vmatprep.subr.mxu0 0.0
      %1461 = vmatpush1.msra.mxu0 %v1294
      %1462 = vmatprep.subr.mxu0 0.0
      %1463 = vmatpush1.msra.mxu0 %v1295
      %1464 = vmatprep.subr.mxu0 0.0
      %1465 = vmatpush1.msra.mxu0 %v1296
      %1466 = vmatprep.subr.mxu0 0.0
      %1467 = vmatpush1.msra.mxu0 %v1297
      %1468 = vmatprep.subr.mxu0 0.0
      %1469 = vmatpush1.msra.mxu0 %v1298
      %1470 = vmatprep.subr.mxu0 0.0
      %1471 = vmatpush1.msra.mxu0 %v1299
      %1472 = vmatprep.subr.mxu0 0.0
      %1473 = vmatpush1.msra.mxu0 %v1300
      %1474 = vmatprep.subr.mxu0 0.0
      %1475 = vmatpush1.msra.mxu0 %v1301
      %1476 = vmatprep.subr.mxu0 0.0
      %1477 = vmatpush1.msra.mxu0 %v1302
      %1478 = vmatprep.subr.mxu0 0.0
      %1479 = vmatpush1.msra.mxu0 %v1303
      %1480 = vmatprep.subr.mxu0 0.0
      %1481 = vmatpush1.msra.mxu0 %v1304
      %1482 = vmatprep.subr.mxu0 0.0
      %1483 = vmatpush1.msra.mxu0 %v1305
      %1484 = vmatprep.subr.mxu0 0.0
      %1485 = vmatpush1.msra.mxu0 %v1306
      %1486 = vmatprep.subr.mxu0 0.0
      %1487 = vmatpush1.msra.mxu0 %v1307
      %1488 = vmatprep.subr.mxu0 0.0
      %1489 = vmatpush1.msra.mxu0 %v1308
      %1490 = vmatprep.subr.mxu0 0.0
      %1491 = vmatpush1.msra.mxu0 %v1309
      %1492 = vmatprep.mubr.f32.mxu0 %v1021
      %1493 = vmatmul.mubr.f32.gmra.mrb[0].mxu0 %v989
      %v1494 = vpop.f32.mrb[0].mxu0
      %v1495 = vadd.f32 %v1426, %v1494
      %v1496 = vpop.f32.mrb[0].mxu0
      %1497 = vmatprep.mubr.f32.mxu0 %v1022
      %1498 = vmatmul.mubr.f32.gmra.mrb[0].mxu0 %v990
      %v1499 = vpop.f32.mrb[0].mxu0
      %v1500 = vadd.f32 %v1426, %v1499
      %v1501 = vpop.f32.mrb[0].mxu0
      %1502 = vmatprep.mubr.f32.mxu0 %v1023
      %1503 = vmatmul.mubr.f32.gmra.mrb[0].mxu0 %v991
      %v1504 = vpop.f32.mrb[0].mxu0
      %v1505 = vadd.f32 %v1426, %v1504
      %v1506 = vpop.f32.mrb[0].mxu0
      %1507 = vmatprep.mubr.f32.mxu0 %v1024
      %1508 = vmatmul.mubr.f32.gmra.mrb[0].mxu0 %v992
      %v1509 = vpop.f32.mrb[0].mxu0
      %v1510 = vadd.f32 %v1426, %v1509
      %v1511 = vpop.f32.mrb[0].mxu0
      %1512 = vmatprep.mubr.f32.mxu0 %v1025
      %1513 = vmatmul.mubr.f32.gmra.mrb[0].mxu0 %v993
      %v1514 = vpop.f32.mrb[0].mxu0
      %v1515 = vadd.f32 %v1426, %v1514
      %v1516 = vpop.f32.mrb[0].mxu0
      %1517 = vmatprep.mubr.f32.mxu0 %v1026
      %1518 = vmatmul.mubr.f32.gmra.mrb[0].mxu0 %v994
      %v1519 = vpop.f32.mrb[0].mxu0
      %v1520 = vadd.f32 %v1426, %v1519
      %v1521 = vpop.f32.mrb[0].mxu0
      %1522 = vmatprep.mubr.f32.mxu0 %v1027
      %1523 = vmatmul.mubr.f32.gmra.mrb[0].mxu0 %v995
      %v1524 = vpop.f32.mrb[0].mxu0
      %v1525 = vadd.f32 %v1426, %v1524
      %v1526 = vpop.f32.mrb[0].mxu0
      %1527 = vmatprep.mubr.f32.mxu0 %v1028
      %1528 = vmatmul.mubr.f32.gmra.mrb[0].mxu0 %v996
      %v1529 = vpop.f32.mrb[0].mxu0
      %v1530 = vadd.f32 %v1426, %v1529
      %v1531 = vpop.f32.mrb[0].mxu0
      %1532 = vmatprep.mubr.f32.mxu0 %v1029
      %1533 = vmatmul.mubr.f32.gmra.mrb[0].mxu0 %v997
      %v1534 = vpop.f32.mrb[0].mxu0
      %v1535 = vadd.f32 %v1426, %v1534
      %v1536 = vpop.f32.mrb[0].mxu0
      %1537 = vmatprep.mubr.f32.mxu0 %v1030
      %1538 = vmatmul.mubr.f32.gmra.mrb[0].mxu0 %v998
      %v1539 = vpop.f32.mrb[0].mxu0
      %v1540 = vadd.f32 %v1426, %v1539
      %v1541 = vpop.f32.mrb[0].mxu0
      %1542 = vmatprep.mubr.f32.mxu0 %v1031
      %1543 = vmatmul.mubr.f32.gmra.mrb[0].mxu0 %v999
      %v1544 = vpop.f32.mrb[0].mxu0
      %v1545 = vadd.f32 %v1426, %v1544
      %v1546 = vpop.f32.mrb[0].mxu0
      %1547 = vmatprep.mubr.f32.mxu0 %v1032
      %1548 = vmatmul.mubr.f32.gmra.mrb[0].mxu0 %v1000
      %v1549 = vpop.f32.mrb[0].mxu0
      %v1550 = vadd.f32 %v1426, %v1549
      %v1551 = vpop.f32.mrb[0].mxu0
      %1552 = vmatprep.mubr.f32.mxu0 %v1033
      %1553 = vmatmul.mubr.f32.gmra.mrb[0].mxu0 %v1001
      %v1554 = vpop.f32.mrb[0].mxu0
      %v1555 = vadd.f32 %v1426, %v1554
      %v1556 = vpop.f32.mrb[0].mxu0
      %1557 = vmatprep.mubr.f32.mxu0 %v1034
      %1558 = vmatmul.mubr.f32.gmra.mrb[0].mxu0 %v1002
      %v1559 = vpop.f32.mrb[0].mxu0
      %v1560 = vadd.f32 %v1426, %v1559
      %v1561 = vpop.f32.mrb[0].mxu0
      %1562 = vmatprep.mubr.f32.mxu0 %v1035
      %1563 = vmatmul.mubr.f32.gmra.mrb[0].mxu0 %v1003
      %v1564 = vpop.f32.mrb[0].mxu0
      %v1565 = vadd.f32 %v1426, %v1564
      %v1566 = vpop.f32.mrb[0].mxu0
      %1567 = vmatprep.mubr.f32.mxu0 %v1036
      %1568 = vmatmul.mubr.f32.gmra.mrb[0].mxu0 %v1004
      %v1569 = vpop.f32.mrb[0].mxu0
      %v1570 = vadd.f32 %v1426, %v1569
      %v1571 = vpop.f32.mrb[0].mxu0
      %1572 = vmatprep.mubr.f32.mxu0 %v1037
      %1573 = vmatmul.mubr.f32.gmra.mrb[0].mxu0 %v1005
      %v1574 = vpop.f32.mrb[0].mxu0
      %v1575 = vadd.f32 %v1426, %v1574
      %v1576 = vpop.f32.mrb[0].mxu0
      %1577 = vmatprep.mubr.f32.mxu0 %v1038
      %1578 = vmatmul.mubr.f32.gmra.mrb[0].mxu0 %v1006
      %v1579 = vpop.f32.mrb[0].mxu0
      %v1580 = vadd.f32 %v1426, %v1579
      %v1581 = vpop.f32.mrb[0].mxu0
      %1582 = vmatprep.mubr.f32.mxu0 %v1039
      %1583 = vmatmul.mubr.f32.gmra.mrb[0].mxu0 %v1007
      %v1584 = vpop.f32.mrb[0].mxu0
      %v1585 = vadd.f32 %v1426, %v1584
      %v1586 = vpop.f32.mrb[0].mxu0
      %1587 = vmatprep.mubr.f32.mxu0 %v1040
      %1588 = vmatmul.mubr.f32.gmra.mrb[0].mxu0 %v1008
      %v1589 = vpop.f32.mrb[0].mxu0
      %v1590 = vadd.f32 %v1426, %v1589
      %v1591 = vpop.f32.mrb[0].mxu0
      %1592 = vmatprep.mubr.f32.mxu0 %v1041
      %1593 = vmatmul.mubr.f32.gmra.mrb[0].mxu0 %v1009
      %v1594 = vpop.f32.mrb[0].mxu0
      %v1595 = vadd.f32 %v1426, %v1594
      %v1596 = vpop.f32.mrb[0].mxu0
      %1597 = vmatprep.mubr.f32.mxu0 %v1042
      %1598 = vmatmul.mubr.f32.gmra.mrb[0].mxu0 %v1010
      %v1599 = vpop.f32.mrb[0].mxu0
      %v1600 = vadd.f32 %v1426, %v1599
      %v1601 = vpop.f32.mrb[0].mxu0
      %1602 = vmatprep.mubr.f32.mxu0 %v1043
      %1603 = vmatmul.mubr.f32.gmra.mrb[0].mxu0 %v1011
      %v1604 = vpop.f32.mrb[0].mxu0
      %v1605 = vadd.f32 %v1426, %v1604
      %v1606 = vpop.f32.mrb[0].mxu0
      %1607 = vmatprep.mubr.f32.mxu0 %v1044
      %1608 = vmatmul.mubr.f32.gmra.mrb[0].mxu0 %v1012
      %v1609 = vpop.f32.mrb[0].mxu0
      %v1610 = vadd.f32 %v1426, %v1609
      %v1611 = vpop.f32.mrb[0].mxu0
      %1612 = vmatprep.mubr.f32.mxu0 %v1045
      %1613 = vmatmul.mubr.f32.gmra.mrb[0].mxu0 %v1013
      %v1614 = vpop.f32.mrb[0].mxu0
      %v1615 = vadd.f32 %v1426, %v1614
      %v1616 = vpop.f32.mrb[0].mxu0
      %1617 = vmatprep.mubr.f32.mxu0 %v1046
      %1618 = vmatmul.mubr.f32.gmra.mrb[0].mxu0 %v1014
      %v1619 = vpop.f32.mrb[0].mxu0
      %v1620 = vadd.f32 %v1426, %v1619
      %v1621 = vpop.f32.mrb[0].mxu0
      %1622 = vmatprep.mubr.f32.mxu0 %v1047
      %1623 = vmatmul.mubr.f32.gmra.mrb[0].mxu0 %v1015
      %v1624 = vpop.f32.mrb[0].mxu0
      %v1625 = vadd.f32 %v1426, %v1624
      %v1626 = vpop.f32.mrb[0].mxu0
      %1627 = vmatprep.mubr.f32.mxu0 %v1048
      %1628 = vmatmul.mubr.f32.gmra.mrb[0].mxu0 %v1016
      %v1629 = vpop.f32.mrb[0].mxu0
      %v1630 = vadd.f32 %v1426, %v1629
      %v1631 = vpop.f32.mrb[0].mxu0
      %1632 = vmatprep.mubr.f32.mxu0 %v1049
      %1633 = vmatmul.mubr.f32.gmra.mrb[0].mxu0 %v1017
      %v1634 = vpop.f32.mrb[0].mxu0
      %v1635 = vadd.f32 %v1426, %v1634
      %v1636 = vpop.f32.mrb[0].mxu0
      %1637 = vmatprep.mubr.f32.mxu0 %v1050
      %1638 = vmatmul.mubr.f32.gmra.mrb[0].mxu0 %v1018
      %v1639 = vpop.f32.mrb[0].mxu0
      %v1640 = vadd.f32 %v1426, %v1639
      %v1641 = vpop.f32.mrb[0].mxu0
      %1642 = vmatprep.mubr.f32.mxu0 %v1051
      %1643 = vmatmul.mubr.f32.gmra.mrb[0].mxu0 %v1019
      %v1644 = vpop.f32.mrb[0].mxu0
      %v1645 = vadd.f32 %v1426, %v1644
      %v1646 = vpop.f32.mrb[0].mxu0
      %1647 = vmatprep.mubr.f32.mxu0 %v1052
      %1648 = vmatmul.mubr.f32.gmra.mrb[0].mxu0 %v1020
      %v1649 = vpop.f32.mrb[0].mxu0
      %v1650 = vadd.f32 %v1426, %v1649
      %v1651 = vpop.f32.mrb[0].mxu0
      %1652 = vdwg.mxu0
      %1653 = vmatprep.subr.mxu0 0.0
      %1654 = vmatpush1.msra.mxu0 %v1310
      %1655 = vmatprep.subr.mxu0 0.0
      %1656 = vmatpush1.msra.mxu0 %v1311
      %1657 = vmatprep.subr.mxu0 0.0
      %1658 = vmatpush1.msra.mxu0 %v1312
      %1659 = vmatprep.subr.mxu0 0.0
      %1660 = vmatpush1.msra.mxu0 %v1313
      %1661 = vmatprep.subr.mxu0 0.0
      %1662 = vmatpush1.msra.mxu0 %v1314
      %1663 = vmatprep.subr.mxu0 0.0
      %1664 = vmatpush1.msra.mxu0 %v1315
      %1665 = vmatprep.subr.mxu0 0.0
      %1666 = vmatpush1.msra.mxu0 %v1316
      %1667 = vmatprep.subr.mxu0 0.0
      %1668 = vmatpush1.msra.mxu0 %v1317
      %1669 = vmatprep.subr.mxu0 0.0
      %1670 = vmatpush1.msra.mxu0 %v1318
      %1671 = vmatprep.subr.mxu0 0.0
      %1672 = vmatpush1.msra.mxu0 %v1319
      %1673 = vmatprep.subr.mxu0 0.0
      %1674 = vmatpush1.msra.mxu0 %v1320
      %1675 = vmatprep.subr.mxu0 0.0
      %1676 = vmatpush1.msra.mxu0 %v1321
      %1677 = vmatprep.subr.mxu0 0.0
      %1678 = vmatpush1.msra.mxu0 %v1322
      %1679 = vmatprep.subr.mxu0 0.0
      %1680 = vmatpush1.msra.mxu0 %v1323
      %1681 = vmatprep.subr.mxu0 0.0
      %1682 = vmatpush1.msra.mxu0 %v1324
      %1683 = vmatprep.subr.mxu0 0.0
      %1684 = vmatpush1.msra.mxu0 %v1325
      %1685 = vmatprep.subr.mxu0 0.0
      %1686 = vmatpush1.msra.mxu0 %v1326
      %1687 = vmatprep.subr.mxu0 0.0
      %1688 = vmatpush1.msra.mxu0 %v1327
      %1689 = vmatprep.subr.mxu0 0.0
      %1690 = vmatpush1.msra.mxu0 %v1328
      %1691 = vmatprep.subr.mxu0 0.0
      %1692 = vmatpush1.msra.mxu0 %v1329
      %1693 = vmatprep.subr.mxu0 0.0
      %1694 = vmatpush1.msra.mxu0 %v1330
      %1695 = vmatprep.subr.mxu0 0.0
      %1696 = vmatpush1.msra.mxu0 %v1331
      %1697 = vmatprep.subr.mxu0 0.0
      %1698 = vmatpush1.msra.mxu0 %v1332
      %1699 = vmatprep.subr.mxu0 0.0
      %1700 = vmatpush1.msra.mxu0 %v1333
      %1701 = vmatprep.subr.mxu0 0.0
      %1702 = vmatpush1.msra.mxu0 %v1334
      %1703 = vmatprep.subr.mxu0 0.0
      %1704 = vmatpush1.msra.mxu0 %v1335
      %1705 = vmatprep.subr.mxu0 0.0
      %1706 = vmatpush1.msra.mxu0 %v1336
      %1707 = vmatprep.subr.mxu0 0.0
      %1708 = vmatpush1.msra.mxu0 %v1337
      %1709 = vmatprep.subr.mxu0 0.0
      %1710 = vmatpush1.msra.mxu0 %v1338
      %1711 = vmatprep.subr.mxu0 0.0
      %1712 = vmatpush1.msra.mxu0 %v1339
      %1713 = vmatprep.subr.mxu0 0.0
      %1714 = vmatpush1.msra.mxu0 %v1340
      %1715 = vmatprep.subr.mxu0 0.0
      %1716 = vmatpush1.msra.mxu0 %v1341
      %1717 = vmatprep.mubr.f32.mxu0 %v1085
      %1718 = vmatmul.mubr.f32.gmra.mrb[0].mxu0 %v1053
      %v1719 = vpop.f32.mrb[0].mxu0
      %v1720 = vadd.f32 %v1495, %v1719
      %v1721 = vpop.f32.mrb[0].mxu0
      %1722 = vmatprep.mubr.f32.mxu0 %v1086
      %1723 = vmatmul.mubr.f32.gmra.mrb[0].mxu0 %v1054
      %v1724 = vpop.f32.mrb[0].mxu0
      %v1725 = vadd.f32 %v1500, %v1724
      %v1726 = vpop.f32.mrb[0].mxu0
      %1727 = vmatprep.mubr.f32.mxu0 %v1087
      %1728 = vmatmul.mubr.f32.gmra.mrb[0].mxu0 %v1055
      %v1729 = vpop.f32.mrb[0].mxu0
      %v1730 = vadd.f32 %v1505, %v1729
      %v1731 = vpop.f32.mrb[0].mxu0
      %1732 = vmatprep.mubr.f32.mxu0 %v1088
      %1733 = vmatmul.mubr.f32.gmra.mrb[0].mxu0 %v1056
      %v1734 = vpop.f32.mrb[0].mxu0
      %v1735 = vadd.f32 %v1510, %v1734
      %v1736 = vpop.f32.mrb[0].mxu0
      %1737 = vmatprep.mubr.f32.mxu0 %v1089
      %1738 = vmatmul.mubr.f32.gmra.mrb[0].mxu0 %v1057
      %v1739 = vpop.f32.mrb[0].mxu0
      %v1740 = vadd.f32 %v1515, %v1739
      %v1741 = vpop.f32.mrb[0].mxu0
      %1742 = vmatprep.mubr.f32.mxu0 %v1090
      %1743 = vmatmul.mubr.f32.gmra.mrb[0].mxu0 %v1058
      %v1744 = vpop.f32.mrb[0].mxu0
      %v1745 = vadd.f32 %v1520, %v1744
      %v1746 = vpop.f32.mrb[0].mxu0
      %1747 = vmatprep.mubr.f32.mxu0 %v1091
      %1748 = vmatmul.mubr.f32.gmra.mrb[0].mxu0 %v1059
      %v1749 = vpop.f32.mrb[0].mxu0
      %v1750 = vadd.f32 %v1525, %v1749
      %v1751 = vpop.f32.mrb[0].mxu0
      %1752 = vmatprep.mubr.f32.mxu0 %v1092
      %1753 = vmatmul.mubr.f32.gmra.mrb[0].mxu0 %v1060
      %v1754 = vpop.f32.mrb[0].mxu0
      %v1755 = vadd.f32 %v1530, %v1754
      %v1756 = vpop.f32.mrb[0].mxu0
      %1757 = vmatprep.mubr.f32.mxu0 %v1093
      %1758 = vmatmul.mubr.f32.gmra.mrb[0].mxu0 %v1061
      %v1759 = vpop.f32.mrb[0].mxu0
      %v1760 = vadd.f32 %v1535, %v1759
      %v1761 = vpop.f32.mrb[0].mxu0
      %1762 = vmatprep.mubr.f32.mxu0 %v1094
      %1763 = vmatmul.mubr.f32.gmra.mrb[0].mxu0 %v1062
      %v1764 = vpop.f32.mrb[0].mxu0
      %v1765 = vadd.f32 %v1540, %v1764
      %v1766 = vpop.f32.mrb[0].mxu0
      %1767 = vmatprep.mubr.f32.mxu0 %v1095
      %1768 = vmatmul.mubr.f32.gmra.mrb[0].mxu0 %v1063
      %v1769 = vpop.f32.mrb[0].mxu0
      %v1770 = vadd.f32 %v1545, %v1769
      %v1771 = vpop.f32.mrb[0].mxu0
      %1772 = vmatprep.mubr.f32.mxu0 %v1096
      %1773 = vmatmul.mubr.f32.gmra.mrb[0].mxu0 %v1064
      %v1774 = vpop.f32.mrb[0].mxu0
      %v1775 = vadd.f32 %v1550, %v1774
      %v1776 = vpop.f32.mrb[0].mxu0
      %1777 = vmatprep.mubr.f32.mxu0 %v1097
      %1778 = vmatmul.mubr.f32.gmra.mrb[0].mxu0 %v1065
      %v1779 = vpop.f32.mrb[0].mxu0
      %v1780 = vadd.f32 %v1555, %v1779
      %v1781 = vpop.f32.mrb[0].mxu0
      %1782 = vmatprep.mubr.f32.mxu0 %v1098
      %1783 = vmatmul.mubr.f32.gmra.mrb[0].mxu0 %v1066
      %v1784 = vpop.f32.mrb[0].mxu0
      %v1785 = vadd.f32 %v1560, %v1784
      %v1786 = vpop.f32.mrb[0].mxu0
      %1787 = vmatprep.mubr.f32.mxu0 %v1099
      %1788 = vmatmul.mubr.f32.gmra.mrb[0].mxu0 %v1067
      %v1789 = vpop.f32.mrb[0].mxu0
      %v1790 = vadd.f32 %v1565, %v1789
      %v1791 = vpop.f32.mrb[0].mxu0
      %1792 = vmatprep.mubr.f32.mxu0 %v1100
      %1793 = vmatmul.mubr.f32.gmra.mrb[0].mxu0 %v1068
      %v1794 = vpop.f32.mrb[0].mxu0
      %v1795 = vadd.f32 %v1570, %v1794
      %v1796 = vpop.f32.mrb[0].mxu0
      %1797 = vmatprep.mubr.f32.mxu0 %v1101
      %1798 = vmatmul.mubr.f32.gmra.mrb[0].mxu0 %v1069
      %v1799 = vpop.f32.mrb[0].mxu0
      %v1800 = vadd.f32 %v1575, %v1799
      %v1801 = vpop.f32.mrb[0].mxu0
      %1802 = vmatprep.mubr.f32.mxu0 %v1102
      %1803 = vmatmul.mubr.f32.gmra.mrb[0].mxu0 %v1070
      %v1804 = vpop.f32.mrb[0].mxu0
      %v1805 = vadd.f32 %v1580, %v1804
      %v1806 = vpop.f32.mrb[0].mxu0
      %1807 = vmatprep.mubr.f32.mxu0 %v1103
      %1808 = vmatmul.mubr.f32.gmra.mrb[0].mxu0 %v1071
      %v1809 = vpop.f32.mrb[0].mxu0
      %v1810 = vadd.f32 %v1585, %v1809
      %v1811 = vpop.f32.mrb[0].mxu0
      %1812 = vmatprep.mubr.f32.mxu0 %v1104
      %1813 = vmatmul.mubr.f32.gmra.mrb[0].mxu0 %v1072
      %v1814 = vpop.f32.mrb[0].mxu0
      %v1815 = vadd.f32 %v1590, %v1814
      %v1816 = vpop.f32.mrb[0].mxu0
      %1817 = vmatprep.mubr.f32.mxu0 %v1105
      %1818 = vmatmul.mubr.f32.gmra.mrb[0].mxu0 %v1073
      %v1819 = vpop.f32.mrb[0].mxu0
      %v1820 = vadd.f32 %v1595, %v1819
      %v1821 = vpop.f32.mrb[0].mxu0
      %1822 = vmatprep.mubr.f32.mxu0 %v1106
      %1823 = vmatmul.mubr.f32.gmra.mrb[0].mxu0 %v1074
      %v1824 = vpop.f32.mrb[0].mxu0
      %v1825 = vadd.f32 %v1600, %v1824
      %v1826 = vpop.f32.mrb[0].mxu0
      %1827 = vmatprep.mubr.f32.mxu0 %v1107
      %1828 = vmatmul.mubr.f32.gmra.mrb[0].mxu0 %v1075
      %v1829 = vpop.f32.mrb[0].mxu0
      %v1830 = vadd.f32 %v1605, %v1829
      %v1831 = vpop.f32.mrb[0].mxu0
      %1832 = vmatprep.mubr.f32.mxu0 %v1108
      %1833 = vmatmul.mubr.f32.gmra.mrb[0].mxu0 %v1076
      %v1834 = vpop.f32.mrb[0].mxu0
      %v1835 = vadd.f32 %v1610, %v1834
      %v1836 = vpop.f32.mrb[0].mxu0
      %1837 = vmatprep.mubr.f32.mxu0 %v1109
      %1838 = vmatmul.mubr.f32.gmra.mrb[0].mxu0 %v1077
      %v1839 = vpop.f32.mrb[0].mxu0
      %v1840 = vadd.f32 %v1615, %v1839
      %v1841 = vpop.f32.mrb[0].mxu0
      %1842 = vmatprep.mubr.f32.mxu0 %v1110
      %1843 = vmatmul.mubr.f32.gmra.mrb[0].mxu0 %v1078
      %v1844 = vpop.f32.mrb[0].mxu0
      %v1845 = vadd.f32 %v1620, %v1844
      %v1846 = vpop.f32.mrb[0].mxu0
      %1847 = vmatprep.mubr.f32.mxu0 %v1111
      %1848 = vmatmul.mubr.f32.gmra.mrb[0].mxu0 %v1079
      %v1849 = vpop.f32.mrb[0].mxu0
      %v1850 = vadd.f32 %v1625, %v1849
      %v1851 = vpop.f32.mrb[0].mxu0
      %1852 = vmatprep.mubr.f32.mxu0 %v1112
      %1853 = vmatmul.mubr.f32.gmra.mrb[0].mxu0 %v1080
      %v1854 = vpop.f32.mrb[0].mxu0
      %v1855 = vadd.f32 %v1630, %v1854
      %v1856 = vpop.f32.mrb[0].mxu0
      %1857 = vmatprep.mubr.f32.mxu0 %v1113
      %1858 = vmatmul.mubr.f32.gmra.mrb[0].mxu0 %v1081
      %v1859 = vpop.f32.mrb[0].mxu0
      %v1860 = vadd.f32 %v1635, %v1859
      %v1861 = vpop.f32.mrb[0].mxu0
      %1862 = vmatprep.mubr.f32.mxu0 %v1114
      %1863 = vmatmul.mubr.f32.gmra.mrb[0].mxu0 %v1082
      %v1864 = vpop.f32.mrb[0].mxu0
      %v1865 = vadd.f32 %v1640, %v1864
      %v1866 = vpop.f32.mrb[0].mxu0
      %1867 = vmatprep.mubr.f32.mxu0 %v1115
      %1868 = vmatmul.mubr.f32.gmra.mrb[0].mxu0 %v1083
      %v1869 = vpop.f32.mrb[0].mxu0
      %v1870 = vadd.f32 %v1645, %v1869
      %v1871 = vpop.f32.mrb[0].mxu0
      %1872 = vmatprep.mubr.f32.mxu0 %v1116
      %1873 = vmatmul.mubr.f32.gmra.mrb[0].mxu0 %v1084
      %v1874 = vpop.f32.mrb[0].mxu0
      %v1875 = vadd.f32 %v1650, %v1874
      %v1876 = vpop.f32.mrb[0].mxu0
      %1877 = vdwg.mxu0
      %1878 = vmatprep.subr.mxu0 0.0
      %1879 = vmatpush1.msra.mxu0 %v1342
      %1880 = vmatprep.subr.mxu0 0.0
      %1881 = vmatpush1.msra.mxu0 %v1343
      %1882 = vmatprep.subr.mxu0 0.0
      %1883 = vmatpush1.msra.mxu0 %v1344
      %1884 = vmatprep.subr.mxu0 0.0
      %1885 = vmatpush1.msra.mxu0 %v1345
      %1886 = vmatprep.subr.mxu0 0.0
      %1887 = vmatpush1.msra.mxu0 %v1346
      %1888 = vmatprep.subr.mxu0 0.0
      %1889 = vmatpush1.msra.mxu0 %v1347
      %1890 = vmatprep.subr.mxu0 0.0
      %1891 = vmatpush1.msra.mxu0 %v1348
      %1892 = vmatprep.subr.mxu0 0.0
      %1893 = vmatpush1.msra.mxu0 %v1349
      %1894 = vmatprep.subr.mxu0 0.0
      %1895 = vmatpush1.msra.mxu0 %v1350
      %1896 = vmatprep.subr.mxu0 0.0
      %1897 = vmatpush1.msra.mxu0 %v1351
      %1898 = vmatprep.subr.mxu0 0.0
      %1899 = vmatpush1.msra.mxu0 %v1352
      %1900 = vmatprep.subr.mxu0 0.0
      %1901 = vmatpush1.msra.mxu0 %v1353
      %1902 = vmatprep.subr.mxu0 0.0
      %1903 = vmatpush1.msra.mxu0 %v1354
      %1904 = vmatprep.subr.mxu0 0.0
      %1905 = vmatpush1.msra.mxu0 %v1355
      %1906 = vmatprep.subr.mxu0 0.0
      %1907 = vmatpush1.msra.mxu0 %v1356
      %1908 = vmatprep.subr.mxu0 0.0
      %1909 = vmatpush1.msra.mxu0 %v1357
      %1910 = vmatprep.subr.mxu0 0.0
      %1911 = vmatpush1.msra.mxu0 %v1358
      %1912 = vmatprep.subr.mxu0 0.0
      %1913 = vmatpush1.msra.mxu0 %v1359
      %1914 = vmatprep.subr.mxu0 0.0
      %1915 = vmatpush1.msra.mxu0 %v1360
      %1916 = vmatprep.subr.mxu0 0.0
      %1917 = vmatpush1.msra.mxu0 %v1361
      %1918 = vmatprep.subr.mxu0 0.0
      %1919 = vmatpush1.msra.mxu0 %v1362
      %1920 = vmatprep.subr.mxu0 0.0
      %1921 = vmatpush1.msra.mxu0 %v1363
      %1922 = vmatprep.subr.mxu0 0.0
      %1923 = vmatpush1.msra.mxu0 %v1364
      %1924 = vmatprep.subr.mxu0 0.0
      %1925 = vmatpush1.msra.mxu0 %v1365
      %1926 = vmatprep.subr.mxu0 0.0
      %1927 = vmatpush1.msra.mxu0 %v1366
      %1928 = vmatprep.subr.mxu0 0.0
      %1929 = vmatpush1.msra.mxu0 %v1367
      %1930 = vmatprep.subr.mxu0 0.0
      %1931 = vmatpush1.msra.mxu0 %v1368
      %1932 = vmatprep.subr.mxu0 0.0
      %1933 = vmatpush1.msra.mxu0 %v1369
      %1934 = vmatprep.subr.mxu0 0.0
      %1935 = vmatpush1.msra.mxu0 %v1370
      %1936 = vmatprep.subr.mxu0 0.0
      %1937 = vmatpush1.msra.mxu0 %v1371
      %1938 = vmatprep.subr.mxu0 0.0
      %1939 = vmatpush1.msra.mxu0 %v1372
      %1940 = vmatprep.subr.mxu0 0.0
      %1941 = vmatpush1.msra.mxu0 %v1373
      %1942 = vmatprep.mubr.f32.mxu0 %v1149
      %1943 = vmatmul.mubr.f32.gmra.mrb[0].mxu0 %v1117
      %v1944 = vpop.f32.mrb[0].mxu0
      %v1945 = vadd.f32 %v1720, %v1944
      %v1946 = vpop.f32.mrb[0].mxu0
      %1947 = vmatprep.mubr.f32.mxu0 %v1150
      %1948 = vmatmul.mubr.f32.gmra.mrb[0].mxu0 %v1118
      %v1949 = vpop.f32.mrb[0].mxu0
      %v1950 = vadd.f32 %v1725, %v1949
      %v1951 = vpop.f32.mrb[0].mxu0
      %1952 = vmatprep.mubr.f32.mxu0 %v1151
      %1953 = vmatmul.mubr.f32.gmra.mrb[0].mxu0 %v1119
      %v1954 = vpop.f32.mrb[0].mxu0
      %v1955 = vadd.f32 %v1730, %v1954
      %v1956 = vpop.f32.mrb[0].mxu0
      %1957 = vmatprep.mubr.f32.mxu0 %v1152
      %1958 = vmatmul.mubr.f32.gmra.mrb[0].mxu0 %v1120
      %v1959 = vpop.f32.mrb[0].mxu0
      %v1960 = vadd.f32 %v1735, %v1959
      %v1961 = vpop.f32.mrb[0].mxu0
      %1962 = vmatprep.mubr.f32.mxu0 %v1153
      %1963 = vmatmul.mubr.f32.gmra.mrb[0].mxu0 %v1121
      %v1964 = vpop.f32.mrb[0].mxu0
      %v1965 = vadd.f32 %v1740, %v1964
      %v1966 = vpop.f32.mrb[0].mxu0
      %1967 = vmatprep.mubr.f32.mxu0 %v1154
      %1968 = vmatmul.mubr.f32.gmra.mrb[0].mxu0 %v1122
      %v1969 = vpop.f32.mrb[0].mxu0
      %v1970 = vadd.f32 %v1745, %v1969
      %v1971 = vpop.f32.mrb[0].mxu0
      %1972 = vmatprep.mubr.f32.mxu0 %v1155
      %1973 = vmatmul.mubr.f32.gmra.mrb[0].mxu0 %v1123
      %v1974 = vpop.f32.mrb[0].mxu0
      %v1975 = vadd.f32 %v1750, %v1974
      %v1976 = vpop.f32.mrb[0].mxu0
      %1977 = vmatprep.mubr.f32.mxu0 %v1156
      %1978 = vmatmul.mubr.f32.gmra.mrb[0].mxu0 %v1124
      %v1979 = vpop.f32.mrb[0].mxu0
      %v1980 = vadd.f32 %v1755, %v1979
      %v1981 = vpop.f32.mrb[0].mxu0
      %1982 = vmatprep.mubr.f32.mxu0 %v1157
      %1983 = vmatmul.mubr.f32.gmra.mrb[0].mxu0 %v1125
      %v1984 = vpop.f32.mrb[0].mxu0
      %v1985 = vadd.f32 %v1760, %v1984
      %v1986 = vpop.f32.mrb[0].mxu0
      %1987 = vmatprep.mubr.f32.mxu0 %v1158
      %1988 = vmatmul.mubr.f32.gmra.mrb[0].mxu0 %v1126
      %v1989 = vpop.f32.mrb[0].mxu0
      %v1990 = vadd.f32 %v1765, %v1989
      %v1991 = vpop.f32.mrb[0].mxu0
      %1992 = vmatprep.mubr.f32.mxu0 %v1159
      %1993 = vmatmul.mubr.f32.gmra.mrb[0].mxu0 %v1127
      %v1994 = vpop.f32.mrb[0].mxu0
      %v1995 = vadd.f32 %v1770, %v1994
      %v1996 = vpop.f32.mrb[0].mxu0
      %1997 = vmatprep.mubr.f32.mxu0 %v1160
      %1998 = vmatmul.mubr.f32.gmra.mrb[0].mxu0 %v1128
      %v1999 = vpop.f32.mrb[0].mxu0
      %v2000 = vadd.f32 %v1775, %v1999
      %v2001 = vpop.f32.mrb[0].mxu0
      %2002 = vmatprep.mubr.f32.mxu0 %v1161
      %2003 = vmatmul.mubr.f32.gmra.mrb[0].mxu0 %v1129
      %v2004 = vpop.f32.mrb[0].mxu0
      %v2005 = vadd.f32 %v1780, %v2004
      %v2006 = vpop.f32.mrb[0].mxu0
      %2007 = vmatprep.mubr.f32.mxu0 %v1162
      %2008 = vmatmul.mubr.f32.gmra.mrb[0].mxu0 %v1130
      %v2009 = vpop.f32.mrb[0].mxu0
      %v2010 = vadd.f32 %v1785, %v2009
      %v2011 = vpop.f32.mrb[0].mxu0
      %2012 = vmatprep.mubr.f32.mxu0 %v1163
      %2013 = vmatmul.mubr.f32.gmra.mrb[0].mxu0 %v1131
      %v2014 = vpop.f32.mrb[0].mxu0
      %v2015 = vadd.f32 %v1790, %v2014
      %v2016 = vpop.f32.mrb[0].mxu0
      %2017 = vmatprep.mubr.f32.mxu0 %v1164
      %2018 = vmatmul.mubr.f32.gmra.mrb[0].mxu0 %v1132
      %v2019 = vpop.f32.mrb[0].mxu0
      %v2020 = vadd.f32 %v1795, %v2019
      %v2021 = vpop.f32.mrb[0].mxu0
      %2022 = vmatprep.mubr.f32.mxu0 %v1165
      %2023 = vmatmul.mubr.f32.gmra.mrb[0].mxu0 %v1133
      %v2024 = vpop.f32.mrb[0].mxu0
      %v2025 = vadd.f32 %v1800, %v2024
      %v2026 = vpop.f32.mrb[0].mxu0
      %2027 = vmatprep.mubr.f32.mxu0 %v1166
      %2028 = vmatmul.mubr.f32.gmra.mrb[0].mxu0 %v1134
      %v2029 = vpop.f32.mrb[0].mxu0
      %v2030 = vadd.f32 %v1805, %v2029
      %v2031 = vpop.f32.mrb[0].mxu0
      %2032 = vmatprep.mubr.f32.mxu0 %v1167
      %2033 = vmatmul.mubr.f32.gmra.mrb[0].mxu0 %v1135
      %v2034 = vpop.f32.mrb[0].mxu0
      %v2035 = vadd.f32 %v1810, %v2034
      %v2036 = vpop.f32.mrb[0].mxu0
      %2037 = vmatprep.mubr.f32.mxu0 %v1168
      %2038 = vmatmul.mubr.f32.gmra.mrb[0].mxu0 %v1136
      %v2039 = vpop.f32.mrb[0].mxu0
      %v2040 = vadd.f32 %v1815, %v2039
      %v2041 = vpop.f32.mrb[0].mxu0
      %2042 = vmatprep.mubr.f32.mxu0 %v1169
      %2043 = vmatmul.mubr.f32.gmra.mrb[0].mxu0 %v1137
      %v2044 = vpop.f32.mrb[0].mxu0
      %v2045 = vadd.f32 %v1820, %v2044
      %v2046 = vpop.f32.mrb[0].mxu0
      %2047 = vmatprep.mubr.f32.mxu0 %v1170
      %2048 = vmatmul.mubr.f32.gmra.mrb[0].mxu0 %v1138
      %v2049 = vpop.f32.mrb[0].mxu0
      %v2050 = vadd.f32 %v1825, %v2049
      %v2051 = vpop.f32.mrb[0].mxu0
      %2052 = vmatprep.mubr.f32.mxu0 %v1171
      %2053 = vmatmul.mubr.f32.gmra.mrb[0].mxu0 %v1139
      %v2054 = vpop.f32.mrb[0].mxu0
      %v2055 = vadd.f32 %v1830, %v2054
      %v2056 = vpop.f32.mrb[0].mxu0
      %2057 = vmatprep.mubr.f32.mxu0 %v1172
      %2058 = vmatmul.mubr.f32.gmra.mrb[0].mxu0 %v1140
      %v2059 = vpop.f32.mrb[0].mxu0
      %v2060 = vadd.f32 %v1835, %v2059
      %v2061 = vpop.f32.mrb[0].mxu0
      %2062 = vmatprep.mubr.f32.mxu0 %v1173
      %2063 = vmatmul.mubr.f32.gmra.mrb[0].mxu0 %v1141
      %v2064 = vpop.f32.mrb[0].mxu0
      %v2065 = vadd.f32 %v1840, %v2064
      %v2066 = vpop.f32.mrb[0].mxu0
      %2067 = vmatprep.mubr.f32.mxu0 %v1174
      %2068 = vmatmul.mubr.f32.gmra.mrb[0].mxu0 %v1142
      %v2069 = vpop.f32.mrb[0].mxu0
      %v2070 = vadd.f32 %v1845, %v2069
      %v2071 = vpop.f32.mrb[0].mxu0
      %2072 = vmatprep.mubr.f32.mxu0 %v1175
      %2073 = vmatmul.mubr.f32.gmra.mrb[0].mxu0 %v1143
      %v2074 = vpop.f32.mrb[0].mxu0
      %v2075 = vadd.f32 %v1850, %v2074
      %v2076 = vpop.f32.mrb[0].mxu0
      %2077 = vmatprep.mubr.f32.mxu0 %v1176
      %2078 = vmatmul.mubr.f32.gmra.mrb[0].mxu0 %v1144
      %v2079 = vpop.f32.mrb[0].mxu0
      %v2080 = vadd.f32 %v1855, %v2079
      %v2081 = vpop.f32.mrb[0].mxu0
      %2082 = vmatprep.mubr.f32.mxu0 %v1177
      %2083 = vmatmul.mubr.f32.gmra.mrb[0].mxu0 %v1145
      %v2084 = vpop.f32.mrb[0].mxu0
      %v2085 = vadd.f32 %v1860, %v2084
      %v2086 = vpop.f32.mrb[0].mxu0
      %2087 = vmatprep.mubr.f32.mxu0 %v1178
      %2088 = vmatmul.mubr.f32.gmra.mrb[0].mxu0 %v1146
      %v2089 = vpop.f32.mrb[0].mxu0
      %v2090 = vadd.f32 %v1865, %v2089
      %v2091 = vpop.f32.mrb[0].mxu0
      %2092 = vmatprep.mubr.f32.mxu0 %v1179
      %2093 = vmatmul.mubr.f32.gmra.mrb[0].mxu0 %v1147
      %v2094 = vpop.f32.mrb[0].mxu0
      %v2095 = vadd.f32 %v1870, %v2094
      %v2096 = vpop.f32.mrb[0].mxu0
      %2097 = vmatprep.mubr.f32.mxu0 %v1180
      %2098 = vmatmul.mubr.f32.gmra.mrb[0].mxu0 %v1148
      %v2099 = vpop.f32.mrb[0].mxu0
      %v2100 = vadd.f32 %v1875, %v2099
      %v2101 = vpop.f32.mrb[0].mxu0
      %2102 = vdwg.mxu0
      %2103 = vmatprep.subr.mxu0 0.0
      %2104 = vmatpush1.msra.mxu0 %v1374
      %2105 = vmatprep.subr.mxu0 0.0
      %2106 = vmatpush1.msra.mxu0 %v1375
      %2107 = vmatprep.subr.mxu0 0.0
      %2108 = vmatpush1.msra.mxu0 %v1376
      %2109 = vmatprep.subr.mxu0 0.0
      %2110 = vmatpush1.msra.mxu0 %v1377
      %2111 = vmatprep.subr.mxu0 0.0
      %2112 = vmatpush1.msra.mxu0 %v1378
      %2113 = vmatprep.subr.mxu0 0.0
      %2114 = vmatpush1.msra.mxu0 %v1379
      %2115 = vmatprep.subr.mxu0 0.0
      %2116 = vmatpush1.msra.mxu0 %v1380
      %2117 = vmatprep.subr.mxu0 0.0
      %2118 = vmatpush1.msra.mxu0 %v1381
      %2119 = vmatprep.subr.mxu0 0.0
      %2120 = vmatpush1.msra.mxu0 %v1382
      %2121 = vmatprep.subr.mxu0 0.0
      %2122 = vmatpush1.msra.mxu0 %v1383
      %2123 = vmatprep.subr.mxu0 0.0
      %2124 = vmatpush1.msra.mxu0 %v1384
      %2125 = vmatprep.subr.mxu0 0.0
      %2126 = vmatpush1.msra.mxu0 %v1385
      %2127 = vmatprep.subr.mxu0 0.0
      %2128 = vmatpush1.msra.mxu0 %v1386
      %2129 = vmatprep.subr.mxu0 0.0
      %2130 = vmatpush1.msra.mxu0 %v1387
      %2131 = vmatprep.subr.mxu0 0.0
      %2132 = vmatpush1.msra.mxu0 %v1388
      %2133 = vmatprep.subr.mxu0 0.0
      %2134 = vmatpush1.msra.mxu0 %v1389
      %2135 = vmatprep.subr.mxu0 0.0
      %2136 = vmatpush1.msra.mxu0 %v1390
      %2137 = vmatprep.subr.mxu0 0.0
      %2138 = vmatpush1.msra.mxu0 %v1391
      %2139 = vmatprep.subr.mxu0 0.0
      %2140 = vmatpush1.msra.mxu0 %v1392
      %2141 = vmatprep.subr.mxu0 0.0
      %2142 = vmatpush1.msra.mxu0 %v1393
      %2143 = vmatprep.subr.mxu0 0.0
      %2144 = vmatpush1.msra.mxu0 %v1394
      %2145 = vmatprep.subr.mxu0 0.0
      %2146 = vmatpush1.msra.mxu0 %v1395
      %2147 = vmatprep.subr.mxu0 0.0
      %2148 = vmatpush1.msra.mxu0 %v1396
      %2149 = vmatprep.subr.mxu0 0.0
      %2150 = vmatpush1.msra.mxu0 %v1397
      %2151 = vmatprep.subr.mxu0 0.0
      %2152 = vmatpush1.msra.mxu0 %v1398
      %2153 = vmatprep.subr.mxu0 0.0
      %2154 = vmatpush1.msra.mxu0 %v1399
      %2155 = vmatprep.subr.mxu0 0.0
      %2156 = vmatpush1.msra.mxu0 %v1400
      %2157 = vmatprep.subr.mxu0 0.0
      %2158 = vmatpush1.msra.mxu0 %v1401
      %2159 = vmatprep.subr.mxu0 0.0
      %2160 = vmatpush1.msra.mxu0 %v1402
      %2161 = vmatprep.subr.mxu0 0.0
      %2162 = vmatpush1.msra.mxu0 %v1403
      %2163 = vmatprep.subr.mxu0 0.0
      %2164 = vmatpush1.msra.mxu0 %v1404
      %2165 = vmatprep.subr.mxu0 0.0
      %2166 = vmatpush1.msra.mxu0 %v1405
      %2167 = vmatprep.mubr.f32.mxu0 %v1214
      %2168 = vmatmul.mubr.f32.gmra.mrb[0].mxu0 %v1182
      %v2169 = vpop.f32.mrb[0].mxu0
      %v2170 = vadd.f32 %v1945, %v2169
      %v2171 = vpop.f32.mrb[0].mxu0
      %2172 = vmatprep.mubr.f32.mxu0 %v1215
      %2173 = vmatmul.mubr.f32.gmra.mrb[0].mxu0 %v1183
      %v2174 = vpop.f32.mrb[0].mxu0
      %v2175 = vadd.f32 %v1950, %v2174
      %v2176 = vpop.f32.mrb[0].mxu0
      %2177 = vmatprep.mubr.f32.mxu0 %v1216
      %2178 = vmatmul.mubr.f32.gmra.mrb[0].mxu0 %v1184
      %v2179 = vpop.f32.mrb[0].mxu0
      %v2180 = vadd.f32 %v1955, %v2179
      %v2181 = vpop.f32.mrb[0].mxu0
      %2182 = vmatprep.mubr.f32.mxu0 %v1217
      %2183 = vmatmul.mubr.f32.gmra.mrb[0].mxu0 %v1185
      %v2184 = vpop.f32.mrb[0].mxu0
      %v2185 = vadd.f32 %v1960, %v2184
      %v2186 = vpop.f32.mrb[0].mxu0
      %2187 = vmatprep.mubr.f32.mxu0 %v1218
      %2188 = vmatmul.mubr.f32.gmra.mrb[0].mxu0 %v1186
      %v2189 = vpop.f32.mrb[0].mxu0
      %v2190 = vadd.f32 %v1965, %v2189
      %v2191 = vpop.f32.mrb[0].mxu0
      %2192 = vmatprep.mubr.f32.mxu0 %v1219
      %2193 = vmatmul.mubr.f32.gmra.mrb[0].mxu0 %v1187
      %v2194 = vpop.f32.mrb[0].mxu0
      %v2195 = vadd.f32 %v1970, %v2194
      %v2196 = vpop.f32.mrb[0].mxu0
      %2197 = vmatprep.mubr.f32.mxu0 %v1220
      %2198 = vmatmul.mubr.f32.gmra.mrb[0].mxu0 %v1188
      %v2199 = vpop.f32.mrb[0].mxu0
      %v2200 = vadd.f32 %v1975, %v2199
      %v2201 = vpop.f32.mrb[0].mxu0
      %2202 = vmatprep.mubr.f32.mxu0 %v1221
      %2203 = vmatmul.mubr.f32.gmra.mrb[0].mxu0 %v1189
      %v2204 = vpop.f32.mrb[0].mxu0
      %v2205 = vadd.f32 %v1980, %v2204
      %v2206 = vpop.f32.mrb[0].mxu0
      %2207 = vmatprep.mubr.f32.mxu0 %v1222
      %2208 = vmatmul.mubr.f32.gmra.mrb[0].mxu0 %v1190
      %v2209 = vpop.f32.mrb[0].mxu0
      %v2210 = vadd.f32 %v1985, %v2209
      %v2211 = vpop.f32.mrb[0].mxu0
      %2212 = vmatprep.mubr.f32.mxu0 %v1223
      %2213 = vmatmul.mubr.f32.gmra.mrb[0].mxu0 %v1191
      %v2214 = vpop.f32.mrb[0].mxu0
      %v2215 = vadd.f32 %v1990, %v2214
      %v2216 = vpop.f32.mrb[0].mxu0
      %2217 = vmatprep.mubr.f32.mxu0 %v1224
      %2218 = vmatmul.mubr.f32.gmra.mrb[0].mxu0 %v1192
      %v2219 = vpop.f32.mrb[0].mxu0
      %v2220 = vadd.f32 %v1995, %v2219
      %v2221 = vpop.f32.mrb[0].mxu0
      %2222 = vmatprep.mubr.f32.mxu0 %v1225
      %2223 = vmatmul.mubr.f32.gmra.mrb[0].mxu0 %v1193
      %v2224 = vpop.f32.mrb[0].mxu0
      %v2225 = vadd.f32 %v2000, %v2224
      %v2226 = vpop.f32.mrb[0].mxu0
      %2227 = vmatprep.mubr.f32.mxu0 %v1226
      %2228 = vmatmul.mubr.f32.gmra.mrb[0].mxu0 %v1194
      %v2229 = vpop.f32.mrb[0].mxu0
      %v2230 = vadd.f32 %v2005, %v2229
      %v2231 = vpop.f32.mrb[0].mxu0
      %2232 = vmatprep.mubr.f32.mxu0 %v1227
      %2233 = vmatmul.mubr.f32.gmra.mrb[0].mxu0 %v1195
      %v2234 = vpop.f32.mrb[0].mxu0
      %v2235 = vadd.f32 %v2010, %v2234
      %v2236 = vpop.f32.mrb[0].mxu0
      %2237 = vmatprep.mubr.f32.mxu0 %v1228
      %2238 = vmatmul.mubr.f32.gmra.mrb[0].mxu0 %v1196
      %v2239 = vpop.f32.mrb[0].mxu0
      %v2240 = vadd.f32 %v2015, %v2239
      %v2241 = vpop.f32.mrb[0].mxu0
      %2242 = vmatprep.mubr.f32.mxu0 %v1229
      %2243 = vmatmul.mubr.f32.gmra.mrb[0].mxu0 %v1197
      %v2244 = vpop.f32.mrb[0].mxu0
      %v2245 = vadd.f32 %v2020, %v2244
      %v2246 = vpop.f32.mrb[0].mxu0
      %2247 = vmatprep.mubr.f32.mxu0 %v1230
      %2248 = vmatmul.mubr.f32.gmra.mrb[0].mxu0 %v1198
      %v2249 = vpop.f32.mrb[0].mxu0
      %v2250 = vadd.f32 %v2025, %v2249
      %v2251 = vpop.f32.mrb[0].mxu0
      %2252 = vmatprep.mubr.f32.mxu0 %v1231
      %2253 = vmatmul.mubr.f32.gmra.mrb[0].mxu0 %v1199
      %v2254 = vpop.f32.mrb[0].mxu0
      %v2255 = vadd.f32 %v2030, %v2254
      %v2256 = vpop.f32.mrb[0].mxu0
      %2257 = vmatprep.mubr.f32.mxu0 %v1232
      %2258 = vmatmul.mubr.f32.gmra.mrb[0].mxu0 %v1200
      %v2259 = vpop.f32.mrb[0].mxu0
      %v2260 = vadd.f32 %v2035, %v2259
      %v2261 = vpop.f32.mrb[0].mxu0
      %2262 = vmatprep.mubr.f32.mxu0 %v1233
      %2263 = vmatmul.mubr.f32.gmra.mrb[0].mxu0 %v1201
      %v2264 = vpop.f32.mrb[0].mxu0
      %v2265 = vadd.f32 %v2040, %v2264
      %v2266 = vpop.f32.mrb[0].mxu0
      %2267 = vmatprep.mubr.f32.mxu0 %v1234
      %2268 = vmatmul.mubr.f32.gmra.mrb[0].mxu0 %v1202
      %v2269 = vpop.f32.mrb[0].mxu0
      %v2270 = vadd.f32 %v2045, %v2269
      %v2271 = vpop.f32.mrb[0].mxu0
      %2272 = vmatprep.mubr.f32.mxu0 %v1235
      %2273 = vmatmul.mubr.f32.gmra.mrb[0].mxu0 %v1203
      %v2274 = vpop.f32.mrb[0].mxu0
      %v2275 = vadd.f32 %v2050, %v2274
      %v2276 = vpop.f32.mrb[0].mxu0
      %2277 = vmatprep.mubr.f32.mxu0 %v1236
      %2278 = vmatmul.mubr.f32.gmra.mrb[0].mxu0 %v1204
      %v2279 = vpop.f32.mrb[0].mxu0
      %v2280 = vadd.f32 %v2055, %v2279
      %v2281 = vpop.f32.mrb[0].mxu0
      %2282 = vmatprep.mubr.f32.mxu0 %v1237
      %2283 = vmatmul.mubr.f32.gmra.mrb[0].mxu0 %v1205
      %v2284 = vpop.f32.mrb[0].mxu0
      %v2285 = vadd.f32 %v2060, %v2284
      %v2286 = vpop.f32.mrb[0].mxu0
      %2287 = vmatprep.mubr.f32.mxu0 %v1238
      %2288 = vmatmul.mubr.f32.gmra.mrb[0].mxu0 %v1206
      %v2289 = vpop.f32.mrb[0].mxu0
      %v2290 = vadd.f32 %v2065, %v2289
      %v2291 = vpop.f32.mrb[0].mxu0
      %2292 = vmatprep.mubr.f32.mxu0 %v1239
      %2293 = vmatmul.mubr.f32.gmra.mrb[0].mxu0 %v1207
      %v2294 = vpop.f32.mrb[0].mxu0
      %v2295 = vadd.f32 %v2070, %v2294
      %v2296 = vpop.f32.mrb[0].mxu0
      %2297 = vmatprep.mubr.f32.mxu0 %v1240
      %2298 = vmatmul.mubr.f32.gmra.mrb[0].mxu0 %v1208
      %v2299 = vpop.f32.mrb[0].mxu0
      %v2300 = vadd.f32 %v2075, %v2299
      %v2301 = vpop.f32.mrb[0].mxu0
      %2302 = vmatprep.mubr.f32.mxu0 %v1241
      %2303 = vmatmul.mubr.f32.gmra.mrb[0].mxu0 %v1209
      %v2304 = vpop.f32.mrb[0].mxu0
      %v2305 = vadd.f32 %v2080, %v2304
      %v2306 = vpop.f32.mrb[0].mxu0
      %2307 = vmatprep.mubr.f32.mxu0 %v1242
      %2308 = vmatmul.mubr.f32.gmra.mrb[0].mxu0 %v1210
      %v2309 = vpop.f32.mrb[0].mxu0
      %v2310 = vadd.f32 %v2085, %v2309
      %v2311 = vpop.f32.mrb[0].mxu0
      %2312 = vmatprep.mubr.f32.mxu0 %v1243
      %2313 = vmatmul.mubr.f32.gmra.mrb[0].mxu0 %v1211
      %v2314 = vpop.f32.mrb[0].mxu0
      %v2315 = vadd.f32 %v2090, %v2314
      %v2316 = vpop.f32.mrb[0].mxu0
      %2317 = vmatprep.mubr.f32.mxu0 %v1244
      %2318 = vmatmul.mubr.f32.gmra.mrb[0].mxu0 %v1212
      %v2319 = vpop.f32.mrb[0].mxu0
      %v2320 = vadd.f32 %v2095, %v2319
      %v2321 = vpop.f32.mrb[0].mxu0
      %2322 = vmatprep.mubr.f32.mxu0 %v1245
      %2323 = vmatmul.mubr.f32.gmra.mrb[0].mxu0 %v1213
      %v2324 = vpop.f32.mrb[0].mxu0
      %v2325 = vadd.f32 %v2100, %v2324
      %v2326 = vpop.f32.mrb[0].mxu0
      %2327 = vdwg.mxu0
      %2328 = vmatprep.subr.mxu0 0.0
      %2329 = vmatpush1.msra.mxu0 %v1406
      %2330 = vmatprep.subr.mxu0 0.0
      %2331 = vmatpush1.msra.mxu0 %v1407
      %2332 = vmatprep.subr.mxu0 0.0
      %2333 = vmatpush1.msra.mxu0 %v1408
      %2334 = vmatprep.subr.mxu0 0.0
      %2335 = vmatpush1.msra.mxu0 %v1409
      %2336 = vmatprep.subr.mxu0 0.0
      %2337 = vmatpush1.msra.mxu0 %v1410
      %2338 = vmatprep.subr.mxu0 0.0
      %2339 = vmatpush1.msra.mxu0 %v1411
      %2340 = vmatprep.subr.mxu0 0.0
      %2341 = vmatpush1.msra.mxu0 %v1412
      %2342 = vmatprep.subr.mxu0 0.0
      %2343 = vmatpush1.msra.mxu0 %v1413
      %2344 = vmatprep.subr.mxu0 0.0
      %2345 = vmatpush1.msra.mxu0 %v1414
      %2346 = vmatprep.subr.mxu0 0.0
      %2347 = vmatpush1.msra.mxu0 %v1415
      %2348 = vmatprep.subr.mxu0 0.0
      %2349 = vmatpush1.msra.mxu0 %v1416
      %2350 = vmatprep.subr.mxu0 0.0
      %2351 = vmatpush1.msra.mxu0 %v1417
      %2352 = vmatprep.subr.mxu0 0.0
      %2353 = vmatpush1.msra.mxu0 %v1418
      %2354 = vmatprep.subr.mxu0 0.0
      %2355 = vmatpush1.msra.mxu0 %v1419
      %2356 = vmatprep.subr.mxu0 0.0
      %2357 = vmatpush1.msra.mxu0 %v1420
      %2358 = vmatprep.subr.mxu0 0.0
      %2359 = vmatpush1.msra.mxu0 %v1421
      %2360 = vmatprep.subr.mxu0 0.0
      %2361 = vmatpush1.msra.mxu0 0.0
      %2362 = vmatprep.subr.mxu0 0.0
      %2363 = vmatpush1.msra.mxu0 0.0
      %2364 = vmatprep.subr.mxu0 0.0
      %2365 = vmatpush1.msra.mxu0 0.0
      %2366 = vmatprep.subr.mxu0 0.0
      %2367 = vmatpush1.msra.mxu0 0.0
      %2368 = vmatprep.subr.mxu0 0.0
      %2369 = vmatpush1.msra.mxu0 0.0
      %2370 = vmatprep.subr.mxu0 0.0
      %2371 = vmatpush1.msra.mxu0 0.0
      %2372 = vmatprep.subr.mxu0 0.0
      %2373 = vmatpush1.msra.mxu0 0.0
      %2374 = vmatprep.subr.mxu0 0.0
      %2375 = vmatpush1.msra.mxu0 0.0
      %2376 = vmatprep.subr.mxu0 0.0
      %2377 = vmatpush1.msra.mxu0 0.0
      %2378 = vmatprep.subr.mxu0 0.0
      %2379 = vmatpush1.msra.mxu0 0.0
      %2380 = vmatprep.subr.mxu0 0.0
      %2381 = vmatpush1.msra.mxu0 0.0
      %2382 = vmatprep.subr.mxu0 0.0
      %2383 = vmatpush1.msra.mxu0 0.0
      %2384 = vmatprep.subr.mxu0 0.0
      %2385 = vmatpush1.msra.mxu0 0.0
      %2386 = vmatprep.subr.mxu0 0.0
      %2387 = vmatpush1.msra.mxu0 0.0
      %2388 = vmatprep.subr.mxu0 0.0
      %2389 = vmatpush1.msra.mxu0 0.0
      %2390 = vmatprep.subr.mxu0 0.0
      %2391 = vmatpush1.msra.mxu0 0.0
      %2392 = vmatprep.mubr.f32.mxu0 0.0
      %2393 = vmatmul.mubr.f32.gmra.mrb[0].mxu0 %v1246
      %v2394 = vpop.f32.mrb[0].mxu0
      %v2395 = vadd.f32 %v2170, %v2394
      %v2396 = vpop.f32.mrb[0].mxu0
      %2397 = vmatprep.mubr.f32.mxu0 0.0
      %2398 = vmatmul.mubr.f32.gmra.mrb[0].mxu0 %v1247
      %v2399 = vpop.f32.mrb[0].mxu0
      %v2400 = vadd.f32 %v2175, %v2399
      %v2401 = vpop.f32.mrb[0].mxu0
      %2402 = vmatprep.mubr.f32.mxu0 0.0
      %2403 = vmatmul.mubr.f32.gmra.mrb[0].mxu0 %v1248
      %v2404 = vpop.f32.mrb[0].mxu0
      %v2405 = vadd.f32 %v2180, %v2404
      %v2406 = vpop.f32.mrb[0].mxu0
      %2407 = vmatprep.mubr.f32.mxu0 0.0
      %2408 = vmatmul.mubr.f32.gmra.mrb[0].mxu0 %v1249
      %v2409 = vpop.f32.mrb[0].mxu0
      %v2410 = vadd.f32 %v2185, %v2409
      %v2411 = vpop.f32.mrb[0].mxu0
      %2412 = vmatprep.mubr.f32.mxu0 0.0
      %2413 = vmatmul.mubr.f32.gmra.mrb[0].mxu0 %v1250
      %v2414 = vpop.f32.mrb[0].mxu0
      %v2415 = vadd.f32 %v2190, %v2414
      %v2416 = vpop.f32.mrb[0].mxu0
      %2417 = vmatprep.mubr.f32.mxu0 0.0
      %2418 = vmatmul.mubr.f32.gmra.mrb[0].mxu0 %v1251
      %v2419 = vpop.f32.mrb[0].mxu0
      %v2420 = vadd.f32 %v2195, %v2419
      %v2421 = vpop.f32.mrb[0].mxu0
      %2422 = vmatprep.mubr.f32.mxu0 0.0
      %2423 = vmatmul.mubr.f32.gmra.mrb[0].mxu0 %v1252
      %v2424 = vpop.f32.mrb[0].mxu0
      %v2425 = vadd.f32 %v2200, %v2424
      %v2426 = vpop.f32.mrb[0].mxu0
      %2427 = vmatprep.mubr.f32.mxu0 0.0
      %2428 = vmatmul.mubr.f32.gmra.mrb[0].mxu0 %v1253
      %v2429 = vpop.f32.mrb[0].mxu0
      %v2430 = vadd.f32 %v2205, %v2429
      %v2431 = vpop.f32.mrb[0].mxu0
      %2432 = vmatprep.mubr.f32.mxu0 0.0
      %2433 = vmatmul.mubr.f32.gmra.mrb[0].mxu0 %v1254
      %v2434 = vpop.f32.mrb[0].mxu0
      %v2435 = vadd.f32 %v2210, %v2434
      %v2436 = vpop.f32.mrb[0].mxu0
      %2437 = vmatprep.mubr.f32.mxu0 0.0
      %2438 = vmatmul.mubr.f32.gmra.mrb[0].mxu0 %v1255
      %v2439 = vpop.f32.mrb[0].mxu0
      %v2440 = vadd.f32 %v2215, %v2439
      %v2441 = vpop.f32.mrb[0].mxu0
      %2442 = vmatprep.mubr.f32.mxu0 0.0
      %2443 = vmatmul.mubr.f32.gmra.mrb[0].mxu0 %v1256
      %v2444 = vpop.f32.mrb[0].mxu0
      %v2445 = vadd.f32 %v2220, %v2444
      %v2446 = vpop.f32.mrb[0].mxu0
      %2447 = vmatprep.mubr.f32.mxu0 0.0
      %2448 = vmatmul.mubr.f32.gmra.mrb[0].mxu0 %v1257
      %v2449 = vpop.f32.mrb[0].mxu0
      %v2450 = vadd.f32 %v2225, %v2449
      %v2451 = vpop.f32.mrb[0].mxu0
      %2452 = vmatprep.mubr.f32.mxu0 0.0
      %2453 = vmatmul.mubr.f32.gmra.mrb[0].mxu0 %v1258
      %v2454 = vpop.f32.mrb[0].mxu0
      %v2455 = vadd.f32 %v2230, %v2454
      %v2456 = vpop.f32.mrb[0].mxu0
      %2457 = vmatprep.mubr.f32.mxu0 0.0
      %2458 = vmatmul.mubr.f32.gmra.mrb[0].mxu0 %v1259
      %v2459 = vpop.f32.mrb[0].mxu0
      %v2460 = vadd.f32 %v2235, %v2459
      %v2461 = vpop.f32.mrb[0].mxu0
      %2462 = vmatprep.mubr.f32.mxu0 0.0
      %2463 = vmatmul.mubr.f32.gmra.mrb[0].mxu0 %v1260
      %v2464 = vpop.f32.mrb[0].mxu0
      %v2465 = vadd.f32 %v2240, %v2464
      %v2466 = vpop.f32.mrb[0].mxu0
      %2467 = vmatprep.mubr.f32.mxu0 0.0
      %2468 = vmatmul.mubr.f32.gmra.mrb[0].mxu0 %v1261
      %v2469 = vpop.f32.mrb[0].mxu0
      %v2470 = vadd.f32 %v2245, %v2469
      %v2471 = vpop.f32.mrb[0].mxu0
      %2472 = vmatprep.mubr.f32.mxu0 0.0
      %2473 = vmatmul.mubr.f32.gmra.mrb[0].mxu0 %v1262
      %v2474 = vpop.f32.mrb[0].mxu0
      %v2475 = vadd.f32 %v2250, %v2474
      %v2476 = vpop.f32.mrb[0].mxu0
      %2477 = vmatprep.mubr.f32.mxu0 0.0
      %2478 = vmatmul.mubr.f32.gmra.mrb[0].mxu0 %v1263
      %v2479 = vpop.f32.mrb[0].mxu0
      %v2480 = vadd.f32 %v2255, %v2479
      %v2481 = vpop.f32.mrb[0].mxu0
      %2482 = vmatprep.mubr.f32.mxu0 0.0
      %2483 = vmatmul.mubr.f32.gmra.mrb[0].mxu0 %v1264
      %v2484 = vpop.f32.mrb[0].mxu0
      %v2485 = vadd.f32 %v2260, %v2484
      %v2486 = vpop.f32.mrb[0].mxu0
      %2487 = vmatprep.mubr.f32.mxu0 0.0
      %2488 = vmatmul.mubr.f32.gmra.mrb[0].mxu0 %v1265
      %v2489 = vpop.f32.mrb[0].mxu0
      %v2490 = vadd.f32 %v2265, %v2489
      %v2491 = vpop.f32.mrb[0].mxu0
      %2492 = vmatprep.mubr.f32.mxu0 0.0
      %2493 = vmatmul.mubr.f32.gmra.mrb[0].mxu0 %v1266
      %v2494 = vpop.f32.mrb[0].mxu0
      %v2495 = vadd.f32 %v2270, %v2494
      %v2496 = vpop.f32.mrb[0].mxu0
      %2497 = vmatprep.mubr.f32.mxu0 0.0
      %2498 = vmatmul.mubr.f32.gmra.mrb[0].mxu0 %v1267
      %v2499 = vpop.f32.mrb[0].mxu0
      %v2500 = vadd.f32 %v2275, %v2499
      %v2501 = vpop.f32.mrb[0].mxu0
      %2502 = vmatprep.mubr.f32.mxu0 0.0
      %2503 = vmatmul.mubr.f32.gmra.mrb[0].mxu0 %v1268
      %v2504 = vpop.f32.mrb[0].mxu0
      %v2505 = vadd.f32 %v2280, %v2504
      %v2506 = vpop.f32.mrb[0].mxu0
      %2507 = vmatprep.mubr.f32.mxu0 0.0
      %2508 = vmatmul.mubr.f32.gmra.mrb[0].mxu0 %v1269
      %v2509 = vpop.f32.mrb[0].mxu0
      %v2510 = vadd.f32 %v2285, %v2509
      %v2511 = vpop.f32.mrb[0].mxu0
      %2512 = vmatprep.mubr.f32.mxu0 0.0
      %2513 = vmatmul.mubr.f32.gmra.mrb[0].mxu0 %v1270
      %v2514 = vpop.f32.mrb[0].mxu0
      %v2515 = vadd.f32 %v2290, %v2514
      %v2516 = vpop.f32.mrb[0].mxu0
      %2517 = vmatprep.mubr.f32.mxu0 0.0
      %2518 = vmatmul.mubr.f32.gmra.mrb[0].mxu0 %v1271
      %v2519 = vpop.f32.mrb[0].mxu0
      %v2520 = vadd.f32 %v2295, %v2519
      %v2521 = vpop.f32.mrb[0].mxu0
      %2522 = vmatprep.mubr.f32.mxu0 0.0
      %2523 = vmatmul.mubr.f32.gmra.mrb[0].mxu0 %v1272
      %v2524 = vpop.f32.mrb[0].mxu0
      %v2525 = vadd.f32 %v2300, %v2524
      %v2526 = vpop.f32.mrb[0].mxu0
      %2527 = vmatprep.mubr.f32.mxu0 0.0
      %2528 = vmatmul.mubr.f32.gmra.mrb[0].mxu0 %v1273
      %v2529 = vpop.f32.mrb[0].mxu0
      %v2530 = vadd.f32 %v2305, %v2529
      %v2531 = vpop.f32.mrb[0].mxu0
      %2532 = vmatprep.mubr.f32.mxu0 0.0
      %2533 = vmatmul.mubr.f32.gmra.mrb[0].mxu0 %v1274
      %v2534 = vpop.f32.mrb[0].mxu0
      %v2535 = vadd.f32 %v2310, %v2534
      %v2536 = vpop.f32.mrb[0].mxu0
      %2537 = vmatprep.mubr.f32.mxu0 0.0
      %2538 = vmatmul.mubr.f32.gmra.mrb[0].mxu0 %v1275
      %v2539 = vpop.f32.mrb[0].mxu0
      %v2540 = vadd.f32 %v2315, %v2539
      %v2541 = vpop.f32.mrb[0].mxu0
      %2542 = vmatprep.mubr.f32.mxu0 0.0
      %2543 = vmatmul.mubr.f32.gmra.mrb[0].mxu0 %v1276
      %v2544 = vpop.f32.mrb[0].mxu0
      %v2545 = vadd.f32 %v2320, %v2544
      %v2546 = vpop.f32.mrb[0].mxu0
      %2547 = vmatprep.mubr.f32.mxu0 0.0
      %2548 = vmatmul.mubr.f32.gmra.mrb[0].mxu0 %v1277
      %v2549 = vpop.f32.mrb[0].mxu0
      %v2550 = vadd.f32 %v2325, %v2549
      %v2551 = vpop.f32.mrb[0].mxu0
      %2552 = vdwg.mxu0
      %v2553 = vld [vmem:[%s5] sm:$0x1]
      %v2554 = vld [vmem:[%s6] sm:$0x1]
      %v2555 = vadd.f32 %v2395, %v2400
      %v2556 = vadd.f32 %v2555, %v2405
      %v2557 = vadd.f32 %v2556, %v2410
      %v2558 = vadd.f32 %v2557, %v2415
      %v2559 = vadd.f32 %v2558, %v2420
      %v2560 = vadd.f32 %v2559, %v2425
      %v2561 = vadd.f32 %v2560, %v2430
      %v2562 = vadd.f32 %v2561, %v2435
      %v2563 = vadd.f32 %v2562, %v2440
      %v2564 = vadd.f32 %v2563, %v2445
      %v2565 = vadd.f32 %v2564, %v2450
      %v2566 = vadd.f32 %v2565, %v2455
      %v2567 = vadd.f32 %v2566, %v2460
      %v2568 = vadd.f32 %v2567, %v2465
      %v2569 = vadd.f32 %v2568, %v2470
      %v2570 = vadd.f32 %v2569, %v2475
      %v2571 = vadd.f32 %v2570, %v2480
      %v2572 = vadd.f32 %v2571, %v2485
      %v2573 = vadd.f32 %v2572, %v2490
      %v2574 = vadd.f32 %v2573, %v2495
      %v2575 = vadd.f32 %v2574, %v2500
      %v2576 = vadd.f32 %v2575, %v2505
      %v2577 = vadd.f32 %v2576, %v2510
      %v2578 = vadd.f32 %v2577, %v2515
      %v2579 = vadd.f32 %v2578, %v2520
      %v2580 = vadd.f32 %v2579, %v2525
      %v2581 = vadd.f32 %v2580, %v2530
      %v2582 = vadd.f32 %v2581, %v2535
      %v2583 = vadd.f32 %v2582, %v2540
      %v2584 = vadd.f32 %v2583, %v2545
      %v2585 = vadd.f32 %v2584, %v2550
      %2586 = vadd.xlane.f32.xlu0 %v2585
      %v2587 = vpop.xlane.xlu0 %2586
      %v2588 = vrot.slane %v2587, 4
      %v2589 = vadd.f32 %v2587, %v2588
      %v2590 = vrot.slane %v2589, 2
      %v2591 = vadd.f32 %v2589, %v2590
      %v2592 = vrot.slane %v2591, 1
      %v2593 = vadd.f32 %v2591, %v2592
      %s2594 = vtos %v2593
      %v2595 = vmul.f32 %v2395, %v2395
      %v2596 = vmul.f32 %v2400, %v2400
      %v2597 = vmul.f32 %v2405, %v2405
      %v2598 = vmul.f32 %v2410, %v2410
      %v2599 = vmul.f32 %v2415, %v2415
      %v2600 = vmul.f32 %v2420, %v2420
      %v2601 = vmul.f32 %v2425, %v2425
      %v2602 = vmul.f32 %v2430, %v2430
      %v2603 = vmul.f32 %v2435, %v2435
      %v2604 = vmul.f32 %v2440, %v2440
      %v2605 = vmul.f32 %v2445, %v2445
      %v2606 = vmul.f32 %v2450, %v2450
      %v2607 = vmul.f32 %v2455, %v2455
      %v2608 = vmul.f32 %v2460, %v2460
      %v2609 = vmul.f32 %v2465, %v2465
      %v2610 = vmul.f32 %v2470, %v2470
      %v2611 = vmul.f32 %v2475, %v2475
      %v2612 = vmul.f32 %v2480, %v2480
      %v2613 = vmul.f32 %v2485, %v2485
      %v2614 = vmul.f32 %v2490, %v2490
      %v2615 = vmul.f32 %v2495, %v2495
      %v2616 = vmul.f32 %v2500, %v2500
      %v2617 = vmul.f32 %v2505, %v2505
      %v2618 = vmul.f32 %v2510, %v2510
      %v2619 = vmul.f32 %v2515, %v2515
      %v2620 = vmul.f32 %v2520, %v2520
      %v2621 = vmul.f32 %v2525, %v2525
      %v2622 = vmul.f32 %v2530, %v2530
      %v2623 = vmul.f32 %v2535, %v2535
      %v2624 = vmul.f32 %v2540, %v2540
      %v2625 = vmul.f32 %v2545, %v2545
      %v2626 = vmul.f32 %v2550, %v2550
      %v2627 = vadd.f32 %v2595, %v2596
      %v2628 = vadd.f32 %v2627, %v2597
      %v2629 = vadd.f32 %v2628, %v2598
      %v2630 = vadd.f32 %v2629, %v2599
      %v2631 = vadd.f32 %v2630, %v2600
      %v2632 = vadd.f32 %v2631, %v2601
      %v2633 = vadd.f32 %v2632, %v2602
      %v2634 = vadd.f32 %v2633, %v2603
      %v2635 = vadd.f32 %v2634, %v2604
      %v2636 = vadd.f32 %v2635, %v2605
      %v2637 = vadd.f32 %v2636, %v2606
      %v2638 = vadd.f32 %v2637, %v2607
      %v2639 = vadd.f32 %v2638, %v2608
      %v2640 = vadd.f32 %v2639, %v2609
      %v2641 = vadd.f32 %v2640, %v2610
      %v2642 = vadd.f32 %v2641, %v2611
      %v2643 = vadd.f32 %v2642, %v2612
      %v2644 = vadd.f32 %v2643, %v2613
      %v2645 = vadd.f32 %v2644, %v2614
      %v2646 = vadd.f32 %v2645, %v2615
      %v2647 = vadd.f32 %v2646, %v2616
      %v2648 = vadd.f32 %v2647, %v2617
      %v2649 = vadd.f32 %v2648, %v2618
      %v2650 = vadd.f32 %v2649, %v2619
      %v2651 = vadd.f32 %v2650, %v2620
      %v2652 = vadd.f32 %v2651, %v2621
      %v2653 = vadd.f32 %v2652, %v2622
      %v2654 = vadd.f32 %v2653, %v2623
      %v2655 = vadd.f32 %v2654, %v2624
      %v2656 = vadd.f32 %v2655, %v2625
      %v2657 = vadd.f32 %v2656, %v2626
      %2658 = vadd.xlane.f32.xlu0 %v2657
      %v2659 = vpop.xlane.xlu0 %2658
      %v2660 = vrot.slane %v2659, 4
      %v2661 = vadd.f32 %v2659, %v2660
      %v2662 = vrot.slane %v2661, 2
      %v2663 = vadd.f32 %v2661, %v2662
      %v2664 = vrot.slane %v2663, 1
      %v2665 = vadd.f32 %v2663, %v2664
      %s2666 = vtos %v2665
      %v2667 = vrcp.pop 2048.0
      %s2668 = vtos %v2667
      %s2669 = smul.f32 %s2594, %s2668
      %v2670 = vrcp.pop 2048.0
      %s2671 = vtos %v2670
      %s2672 = smul.f32 %s2666, %s2671
      %s2673 = smul.f32 %s2669, %s2669
      %s2674 = ssub.f32 %s2672, %s2673
      %s2675 = smax.f32 %s2674, 0.0
      %v2676 = vstv %s2669
      %v2677 = vsub.f32 %v2395, %v2676
      %v2678 = vsub.f32 %v2400, %v2676
      %v2679 = vsub.f32 %v2405, %v2676
      %v2680 = vsub.f32 %v2410, %v2676
      %v2681 = vsub.f32 %v2415, %v2676
      %v2682 = vsub.f32 %v2420, %v2676
      %v2683 = vsub.f32 %v2425, %v2676
      %v2684 = vsub.f32 %v2430, %v2676
      %v2685 = vsub.f32 %v2435, %v2676
      %v2686 = vsub.f32 %v2440, %v2676
      %v2687 = vsub.f32 %v2445, %v2676
      %v2688 = vsub.f32 %v2450, %v2676
      %v2689 = vsub.f32 %v2455, %v2676
      %v2690 = vsub.f32 %v2460, %v2676
      %v2691 = vsub.f32 %v2465, %v2676
      %v2692 = vsub.f32 %v2470, %v2676
      %v2693 = vsub.f32 %v2475, %v2676
      %v2694 = vsub.f32 %v2480, %v2676
      %v2695 = vsub.f32 %v2485, %v2676
      %v2696 = vsub.f32 %v2490, %v2676
      %v2697 = vsub.f32 %v2495, %v2676
      %v2698 = vsub.f32 %v2500, %v2676
      %v2699 = vsub.f32 %v2505, %v2676
      %v2700 = vsub.f32 %v2510, %v2676
      %v2701 = vsub.f32 %v2515, %v2676
      %v2702 = vsub.f32 %v2520, %v2676
      %v2703 = vsub.f32 %v2525, %v2676
      %v2704 = vsub.f32 %v2530, %v2676
      %v2705 = vsub.f32 %v2535, %v2676
      %v2706 = vsub.f32 %v2540, %v2676
      %v2707 = vsub.f32 %v2545, %v2676
      %v2708 = vsub.f32 %v2550, %v2676
      %s2709 = sadd.f32 %s2675, 1e-05
      %v2710 = vstv %s2709
      %v2711 = vrsqrt.pop %v2710
      %s2712 = vtos %v2711
      %v2713 = vstv %s2712
      %v2714 = vmul.f32 %v2677, %v2713
      %v2715 = vmul.f32 %v2678, %v2713
      %v2716 = vmul.f32 %v2679, %v2713
      %v2717 = vmul.f32 %v2680, %v2713
      %v2718 = vmul.f32 %v2681, %v2713
      %v2719 = vmul.f32 %v2682, %v2713
      %v2720 = vmul.f32 %v2683, %v2713
      %v2721 = vmul.f32 %v2684, %v2713
      %v2722 = vmul.f32 %v2685, %v2713
      %v2723 = vmul.f32 %v2686, %v2713
      %v2724 = vmul.f32 %v2687, %v2713
      %v2725 = vmul.f32 %v2688, %v2713
      %v2726 = vmul.f32 %v2689, %v2713
      %v2727 = vmul.f32 %v2690, %v2713
      %v2728 = vmul.f32 %v2691, %v2713
      %v2729 = vmul.f32 %v2692, %v2713
      %v2730 = vmul.f32 %v2693, %v2713
      %v2731 = vmul.f32 %v2694, %v2713
      %v2732 = vmul.f32 %v2695, %v2713
      %v2733 = vmul.f32 %v2696, %v2713
      %v2734 = vmul.f32 %v2697, %v2713
      %v2735 = vmul.f32 %v2698, %v2713
      %v2736 = vmul.f32 %v2699, %v2713
      %v2737 = vmul.f32 %v2700, %v2713
      %v2738 = vmul.f32 %v2701, %v2713
      %v2739 = vmul.f32 %v2702, %v2713
      %v2740 = vmul.f32 %v2703, %v2713
      %v2741 = vmul.f32 %v2704, %v2713
      %v2742 = vmul.f32 %v2705, %v2713
      %v2743 = vmul.f32 %v2706, %v2713
      %v2744 = vmul.f32 %v2707, %v2713
      %v2745 = vmul.f32 %v2708, %v2713
      %v2747 = vlaneseq
      %v2748 = vshrl.u32 %v2747, 7
      %v2749 = vsub.s32 0, %v2748
      %v2750 = vrot.slane %v2553, %v2749
      %v2752 = vmul.f32 %v2714, %v2750
      %v2753 = vmul.f32 %v2715, %v2750
      %v2754 = vmul.f32 %v2716, %v2750
      %v2755 = vmul.f32 %v2717, %v2750
      %v2756 = vmul.f32 %v2718, %v2750
      %v2757 = vmul.f32 %v2719, %v2750
      %v2758 = vmul.f32 %v2720, %v2750
      %v2759 = vmul.f32 %v2721, %v2750
      %v2760 = vmul.f32 %v2722, %v2750
      %v2761 = vmul.f32 %v2723, %v2750
      %v2762 = vmul.f32 %v2724, %v2750
      %v2763 = vmul.f32 %v2725, %v2750
      %v2764 = vmul.f32 %v2726, %v2750
      %v2765 = vmul.f32 %v2727, %v2750
      %v2766 = vmul.f32 %v2728, %v2750
      %v2767 = vmul.f32 %v2729, %v2750
      %v2768 = vmul.f32 %v2730, %v2750
      %v2769 = vmul.f32 %v2731, %v2750
      %v2770 = vmul.f32 %v2732, %v2750
      %v2771 = vmul.f32 %v2733, %v2750
      %v2772 = vmul.f32 %v2734, %v2750
      %v2773 = vmul.f32 %v2735, %v2750
      %v2774 = vmul.f32 %v2736, %v2750
      %v2775 = vmul.f32 %v2737, %v2750
      %v2776 = vmul.f32 %v2738, %v2750
      %v2777 = vmul.f32 %v2739, %v2750
      %v2778 = vmul.f32 %v2740, %v2750
      %v2779 = vmul.f32 %v2741, %v2750
      %v2780 = vmul.f32 %v2742, %v2750
      %v2781 = vmul.f32 %v2743, %v2750
      %v2782 = vmul.f32 %v2744, %v2750
      %v2783 = vmul.f32 %v2745, %v2750
      %v2785 = vlaneseq
      %v2786 = vshrl.u32 %v2785, 7
      %v2787 = vsub.s32 0, %v2786
      %v2788 = vrot.slane %v2554, %v2787
      %v2790 = vadd.f32 %v2752, %v2788
      %v2791 = vadd.f32 %v2753, %v2788
      %v2792 = vadd.f32 %v2754, %v2788
      %v2793 = vadd.f32 %v2755, %v2788
      %v2794 = vadd.f32 %v2756, %v2788
      %v2795 = vadd.f32 %v2757, %v2788
      %v2796 = vadd.f32 %v2758, %v2788
      %v2797 = vadd.f32 %v2759, %v2788
      %v2798 = vadd.f32 %v2760, %v2788
      %v2799 = vadd.f32 %v2761, %v2788
      %v2800 = vadd.f32 %v2762, %v2788
      %v2801 = vadd.f32 %v2763, %v2788
      %v2802 = vadd.f32 %v2764, %v2788
      %v2803 = vadd.f32 %v2765, %v2788
      %v2804 = vadd.f32 %v2766, %v2788
      %v2805 = vadd.f32 %v2767, %v2788
      %v2806 = vadd.f32 %v2768, %v2788
      %v2807 = vadd.f32 %v2769, %v2788
      %v2808 = vadd.f32 %v2770, %v2788
      %v2809 = vadd.f32 %v2771, %v2788
      %v2810 = vadd.f32 %v2772, %v2788
      %v2811 = vadd.f32 %v2773, %v2788
      %v2812 = vadd.f32 %v2774, %v2788
      %v2813 = vadd.f32 %v2775, %v2788
      %v2814 = vadd.f32 %v2776, %v2788
      %v2815 = vadd.f32 %v2777, %v2788
      %v2816 = vadd.f32 %v2778, %v2788
      %v2817 = vadd.f32 %v2779, %v2788
      %v2818 = vadd.f32 %v2780, %v2788
      %v2819 = vadd.f32 %v2781, %v2788
      %v2820 = vadd.f32 %v2782, %v2788
      %v2821 = vadd.f32 %v2783, %v2788
      %v2822 = vxor.u32 %v2790, 2147483648
      %v2823 = vxor.u32 %v2791, 2147483648
      %v2824 = vxor.u32 %v2792, 2147483648
      %v2825 = vxor.u32 %v2793, 2147483648
      %v2826 = vxor.u32 %v2794, 2147483648
      %v2827 = vxor.u32 %v2795, 2147483648
      %v2828 = vxor.u32 %v2796, 2147483648
      %v2829 = vxor.u32 %v2797, 2147483648
      %v2830 = vxor.u32 %v2798, 2147483648
      %v2831 = vxor.u32 %v2799, 2147483648
      %v2832 = vxor.u32 %v2800, 2147483648
      %v2833 = vxor.u32 %v2801, 2147483648
      %v2834 = vxor.u32 %v2802, 2147483648
      %v2835 = vxor.u32 %v2803, 2147483648
      %v2836 = vxor.u32 %v2804, 2147483648
      %v2837 = vxor.u32 %v2805, 2147483648
      %v2838 = vxor.u32 %v2806, 2147483648
      %v2839 = vxor.u32 %v2807, 2147483648
      %v2840 = vxor.u32 %v2808, 2147483648
      %v2841 = vxor.u32 %v2809, 2147483648
      %v2842 = vxor.u32 %v2810, 2147483648
      %v2843 = vxor.u32 %v2811, 2147483648
      %v2844 = vxor.u32 %v2812, 2147483648
      %v2845 = vxor.u32 %v2813, 2147483648
      %v2846 = vxor.u32 %v2814, 2147483648
      %v2847 = vxor.u32 %v2815, 2147483648
      %v2848 = vxor.u32 %v2816, 2147483648
      %v2849 = vxor.u32 %v2817, 2147483648
      %v2850 = vxor.u32 %v2818, 2147483648
      %v2851 = vxor.u32 %v2819, 2147483648
      %v2852 = vxor.u32 %v2820, 2147483648
      %v2853 = vxor.u32 %v2821, 2147483648
      %v2854 = vmul.f32 %v2822, 1.442695
      %v2855 = vpow.pop %v2854
      %v2856 = vmul.f32 %v2823, 1.442695
      %v2857 = vpow.pop %v2856
      %v2858 = vmul.f32 %v2824, 1.442695
      %v2859 = vpow.pop %v2858
      %v2860 = vmul.f32 %v2825, 1.442695
      %v2861 = vpow.pop %v2860
      %v2862 = vmul.f32 %v2826, 1.442695
      %v2863 = vpow.pop %v2862
      %v2864 = vmul.f32 %v2827, 1.442695
      %v2865 = vpow.pop %v2864
      %v2866 = vmul.f32 %v2828, 1.442695
      %v2867 = vpow.pop %v2866
      %v2868 = vmul.f32 %v2829, 1.442695
      %v2869 = vpow.pop %v2868
      %v2870 = vmul.f32 %v2830, 1.442695
      %v2871 = vpow.pop %v2870
      %v2872 = vmul.f32 %v2831, 1.442695
      %v2873 = vpow.pop %v2872
      %v2874 = vmul.f32 %v2832, 1.442695
      %v2875 = vpow.pop %v2874
      %v2876 = vmul.f32 %v2833, 1.442695
      %v2877 = vpow.pop %v2876
      %v2878 = vmul.f32 %v2834, 1.442695
      %v2879 = vpow.pop %v2878
      %v2880 = vmul.f32 %v2835, 1.442695
      %v2881 = vpow.pop %v2880
      %v2882 = vmul.f32 %v2836, 1.442695
      %v2883 = vpow.pop %v2882
      %v2884 = vmul.f32 %v2837, 1.442695
      %v2885 = vpow.pop %v2884
      %v2886 = vmul.f32 %v2838, 1.442695
      %v2887 = vpow.pop %v2886
      %v2888 = vmul.f32 %v2839, 1.442695
      %v2889 = vpow.pop %v2888
      %v2890 = vmul.f32 %v2840, 1.442695
      %v2891 = vpow.pop %v2890
      %v2892 = vmul.f32 %v2841, 1.442695
      %v2893 = vpow.pop %v2892
      %v2894 = vmul.f32 %v2842, 1.442695
      %v2895 = vpow.pop %v2894
      %v2896 = vmul.f32 %v2843, 1.442695
      %v2897 = vpow.pop %v2896
      %v2898 = vmul.f32 %v2844, 1.442695
      %v2899 = vpow.pop %v2898
      %v2900 = vmul.f32 %v2845, 1.442695
      %v2901 = vpow.pop %v2900
      %v2902 = vmul.f32 %v2846, 1.442695
      %v2903 = vpow.pop %v2902
      %v2904 = vmul.f32 %v2847, 1.442695
      %v2905 = vpow.pop %v2904
      %v2906 = vmul.f32 %v2848, 1.442695
      %v2907 = vpow.pop %v2906
      %v2908 = vmul.f32 %v2849, 1.442695
      %v2909 = vpow.pop %v2908
      %v2910 = vmul.f32 %v2850, 1.442695
      %v2911 = vpow.pop %v2910
      %v2912 = vmul.f32 %v2851, 1.442695
      %v2913 = vpow.pop %v2912
      %v2914 = vmul.f32 %v2852, 1.442695
      %v2915 = vpow.pop %v2914
      %v2916 = vmul.f32 %v2853, 1.442695
      %v2917 = vpow.pop %v2916
      %v2918 = vadd.f32 %v2855, 1.0
      %v2919 = vadd.f32 %v2857, 1.0
      %v2920 = vadd.f32 %v2859, 1.0
      %v2921 = vadd.f32 %v2861, 1.0
      %v2922 = vadd.f32 %v2863, 1.0
      %v2923 = vadd.f32 %v2865, 1.0
      %v2924 = vadd.f32 %v2867, 1.0
      %v2925 = vadd.f32 %v2869, 1.0
      %v2926 = vadd.f32 %v2871, 1.0
      %v2927 = vadd.f32 %v2873, 1.0
      %v2928 = vadd.f32 %v2875, 1.0
      %v2929 = vadd.f32 %v2877, 1.0
      %v2930 = vadd.f32 %v2879, 1.0
      %v2931 = vadd.f32 %v2881, 1.0
      %v2932 = vadd.f32 %v2883, 1.0
      %v2933 = vadd.f32 %v2885, 1.0
      %v2934 = vadd.f32 %v2887, 1.0
      %v2935 = vadd.f32 %v2889, 1.0
      %v2936 = vadd.f32 %v2891, 1.0
      %v2937 = vadd.f32 %v2893, 1.0
      %v2938 = vadd.f32 %v2895, 1.0
      %v2939 = vadd.f32 %v2897, 1.0
      %v2940 = vadd.f32 %v2899, 1.0
      %v2941 = vadd.f32 %v2901, 1.0
      %v2942 = vadd.f32 %v2903, 1.0
      %v2943 = vadd.f32 %v2905, 1.0
      %v2944 = vadd.f32 %v2907, 1.0
      %v2945 = vadd.f32 %v2909, 1.0
      %v2946 = vadd.f32 %v2911, 1.0
      %v2947 = vadd.f32 %v2913, 1.0
      %v2948 = vadd.f32 %v2915, 1.0
      %v2949 = vadd.f32 %v2917, 1.0
      %v2950 = vrcp.pop %v2918
      %v2951 = vmul.f32 1.0, %v2950
      %v2952 = vrcp.pop %v2919
      %v2953 = vmul.f32 1.0, %v2952
      %v2954 = vrcp.pop %v2920
      %v2955 = vmul.f32 1.0, %v2954
      %v2956 = vrcp.pop %v2921
      %v2957 = vmul.f32 1.0, %v2956
      %v2958 = vrcp.pop %v2922
      %v2959 = vmul.f32 1.0, %v2958
      %v2960 = vrcp.pop %v2923
      %v2961 = vmul.f32 1.0, %v2960
      %v2962 = vrcp.pop %v2924
      %v2963 = vmul.f32 1.0, %v2962
      %v2964 = vrcp.pop %v2925
      %v2965 = vmul.f32 1.0, %v2964
      %v2966 = vrcp.pop %v2926
      %v2967 = vmul.f32 1.0, %v2966
      %v2968 = vrcp.pop %v2927
      %v2969 = vmul.f32 1.0, %v2968
      %v2970 = vrcp.pop %v2928
      %v2971 = vmul.f32 1.0, %v2970
      %v2972 = vrcp.pop %v2929
      %v2973 = vmul.f32 1.0, %v2972
      %v2974 = vrcp.pop %v2930
      %v2975 = vmul.f32 1.0, %v2974
      %v2976 = vrcp.pop %v2931
      %v2977 = vmul.f32 1.0, %v2976
      %v2978 = vrcp.pop %v2932
      %v2979 = vmul.f32 1.0, %v2978
      %v2980 = vrcp.pop %v2933
      %v2981 = vmul.f32 1.0, %v2980
      %v2982 = vrcp.pop %v2934
      %v2983 = vmul.f32 1.0, %v2982
      %v2984 = vrcp.pop %v2935
      %v2985 = vmul.f32 1.0, %v2984
      %v2986 = vrcp.pop %v2936
      %v2987 = vmul.f32 1.0, %v2986
      %v2988 = vrcp.pop %v2937
      %v2989 = vmul.f32 1.0, %v2988
      %v2990 = vrcp.pop %v2938
      %v2991 = vmul.f32 1.0, %v2990
      %v2992 = vrcp.pop %v2939
      %v2993 = vmul.f32 1.0, %v2992
      %v2994 = vrcp.pop %v2940
      %v2995 = vmul.f32 1.0, %v2994
      %v2996 = vrcp.pop %v2941
      %v2997 = vmul.f32 1.0, %v2996
      %v2998 = vrcp.pop %v2942
      %v2999 = vmul.f32 1.0, %v2998
      %v3000 = vrcp.pop %v2943
      %v3001 = vmul.f32 1.0, %v3000
      %v3002 = vrcp.pop %v2944
      %v3003 = vmul.f32 1.0, %v3002
      %v3004 = vrcp.pop %v2945
      %v3005 = vmul.f32 1.0, %v3004
      %v3006 = vrcp.pop %v2946
      %v3007 = vmul.f32 1.0, %v3006
      %v3008 = vrcp.pop %v2947
      %v3009 = vmul.f32 1.0, %v3008
      %v3010 = vrcp.pop %v2948
      %v3011 = vmul.f32 1.0, %v3010
      %v3012 = vrcp.pop %v2949
      %v3013 = vmul.f32 1.0, %v3012
      %v3014 = vmul.f32 %v2790, %v2951
      %v3015 = vmul.f32 %v2791, %v2953
      %v3016 = vmul.f32 %v2792, %v2955
      %v3017 = vmul.f32 %v2793, %v2957
      %v3018 = vmul.f32 %v2794, %v2959
      %v3019 = vmul.f32 %v2795, %v2961
      %v3020 = vmul.f32 %v2796, %v2963
      %v3021 = vmul.f32 %v2797, %v2965
      %v3022 = vmul.f32 %v2798, %v2967
      %v3023 = vmul.f32 %v2799, %v2969
      %v3024 = vmul.f32 %v2800, %v2971
      %v3025 = vmul.f32 %v2801, %v2973
      %v3026 = vmul.f32 %v2802, %v2975
      %v3027 = vmul.f32 %v2803, %v2977
      %v3028 = vmul.f32 %v2804, %v2979
      %v3029 = vmul.f32 %v2805, %v2981
      %v3030 = vmul.f32 %v2806, %v2983
      %v3031 = vmul.f32 %v2807, %v2985
      %v3032 = vmul.f32 %v2808, %v2987
      %v3033 = vmul.f32 %v2809, %v2989
      %v3034 = vmul.f32 %v2810, %v2991
      %v3035 = vmul.f32 %v2811, %v2993
      %v3036 = vmul.f32 %v2812, %v2995
      %v3037 = vmul.f32 %v2813, %v2997
      %v3038 = vmul.f32 %v2814, %v2999
      %v3039 = vmul.f32 %v2815, %v3001
      %v3040 = vmul.f32 %v2816, %v3003
      %v3041 = vmul.f32 %v2817, %v3005
      %v3042 = vmul.f32 %v2818, %v3007
      %v3043 = vmul.f32 %v2819, %v3009
      %v3044 = vmul.f32 %v2820, %v3011
      %v3045 = vmul.f32 %v2821, %v3013
      %v3046 = vld [vmem:[%s8] sm:$0x1]
      %3047 = vst [vmem:[%s956 + $0x1] sm:$0xff] %v3014
      %3048 = vst [vmem:[%s956 + $0x9] sm:$0xff] %v3015
      %3049 = vst [vmem:[%s956 + $0x19] sm:$0xff] %v3016
      %3050 = vst [vmem:[%s956 + $0x21] sm:$0xff] %v3017
      %3051 = vst [vmem:[%s956 + $0x31] sm:$0xff] %v3018
      %3052 = vst [vmem:[%s956 + $0x39] sm:$0xff] %v3019
      %3053 = vst [vmem:[%s956 + $0x49] sm:$0xff] %v3020
      %3054 = vst [vmem:[%s956 + $0x51] sm:$0xff] %v3021
      %3055 = vst [vmem:[%s956 + $0x61] sm:$0xff] %v3022
      %3056 = vst [vmem:[%s956 + $0x69] sm:$0xff] %v3023
      %3057 = vst [vmem:[%s956 + $0x79] sm:$0xff] %v3024
      %3058 = vst [vmem:[%s956 + $0x81] sm:$0xff] %v3025
      %3059 = vst [vmem:[%s956 + $0x91] sm:$0xff] %v3026
      %3060 = vst [vmem:[%s956 + $0x99] sm:$0xff] %v3027
      %3061 = vst [vmem:[%s956 + $0xa9] sm:$0xff] %v3028
      %3062 = vst [vmem:[%s956 + $0xb1] sm:$0xff] %v3029
      %3063 = vst [vmem:[%s956 + $0xc1] sm:$0xff] %v3030
      %3064 = vst [vmem:[%s956 + $0xc9] sm:$0xff] %v3031
      %3065 = vst [vmem:[%s956 + $0xd9] sm:$0xff] %v3032
      %3066 = vst [vmem:[%s956 + $0xe1] sm:$0xff] %v3033
      %3067 = vst [vmem:[%s956 + $0xf1] sm:$0xff] %v3034
      %3068 = vst [vmem:[%s956 + $0xf9] sm:$0xff] %v3035
      %3069 = vst [vmem:[%s956 + $0x109] sm:$0xff] %v3036
      %3070 = vst [vmem:[%s956 + $0x111] sm:$0xff] %v3037
      %3071 = vst [vmem:[%s956 + $0x121] sm:$0xff] %v3038
      %3072 = vst [vmem:[%s956 + $0x129] sm:$0xff] %v3039
      %3073 = vst [vmem:[%s956 + $0x139] sm:$0xff] %v3040
      %3074 = vst [vmem:[%s956 + $0x141] sm:$0xff] %v3041
      %3075 = vst [vmem:[%s956 + $0x151] sm:$0xff] %v3042
      %3076 = vst [vmem:[%s956 + $0x159] sm:$0xff] %v3043
      %3077 = vst [vmem:[%s956 + $0x169] sm:$0xff] %v3044
      %3078 = vst [vmem:[%s956 + $0x171] sm:$0xff] %v3045
      %v3079 = vld [vmem:[#allocation2] sm:$0xff]
      %v3080 = vld [vmem:[#allocation2 + $0x8] sm:$0xff]
      %v3081 = vld [vmem:[#allocation2 + $0x18] sm:$0xff]
      %v3082 = vld [vmem:[#allocation2 + $0x20] sm:$0xff]
      %v3083 = vld [vmem:[#allocation2 + $0x30] sm:$0xff]
      %v3084 = vld [vmem:[#allocation2 + $0x38] sm:$0xff]
      %v3085 = vld [vmem:[#allocation2 + $0x48] sm:$0xff]
      %v3086 = vld [vmem:[#allocation2 + $0x50] sm:$0xff]
      %v3087 = vld [vmem:[#allocation2 + $0x60] sm:$0xff]
      %v3088 = vld [vmem:[#allocation2 + $0x68] sm:$0xff]
      %v3089 = vld [vmem:[#allocation2 + $0x78] sm:$0xff]
      %v3090 = vld [vmem:[#allocation2 + $0x80] sm:$0xff]
      %v3091 = vld [vmem:[#allocation2 + $0x90] sm:$0xff]
      %v3092 = vld [vmem:[#allocation2 + $0x98] sm:$0xff]
      %v3093 = vld [vmem:[#allocation2 + $0xa8] sm:$0xff]
      %v3094 = vld [vmem:[#allocation2 + $0xb0] sm:$0xff]
      %v3095 = vld [vmem:[#allocation2 + $0xc0] sm:$0xff]
      %v3096 = vld [vmem:[#allocation2 + $0xc8] sm:$0xff]
      %v3097 = vld [vmem:[#allocation2 + $0xd8] sm:$0xff]
      %v3098 = vld [vmem:[#allocation2 + $0xe0] sm:$0xff]
      %v3099 = vld [vmem:[#allocation2 + $0xf0] sm:$0xff]
      %v3100 = vld [vmem:[#allocation2 + $0xf8] sm:$0xff]
      %v3101 = vld [vmem:[#allocation2 + $0x108] sm:$0xff]
      %v3102 = vld [vmem:[#allocation2 + $0x110] sm:$0xff]
      %v3103 = vld [vmem:[#allocation2 + $0x120] sm:$0xff]
      %v3104 = vld [vmem:[#allocation2 + $0x128] sm:$0xff]
      %v3105 = vld [vmem:[#allocation2 + $0x138] sm:$0xff]
      %v3106 = vld [vmem:[#allocation2 + $0x140] sm:$0xff]
      %v3107 = vld [vmem:[#allocation2 + $0x150] sm:$0xff]
      %v3108 = vld [vmem:[#allocation2 + $0x158] sm:$0xff]
      %v3109 = vld [vmem:[#allocation2 + $0x168] sm:$0xff]
      %v3110 = vld [vmem:[#allocation2 + $0x170] sm:$0xff]
      %v3111 = vld [vmem:[#allocation2 + $0x1] sm:$0xff]
      %v3112 = vld [vmem:[#allocation2 + $0x9] sm:$0xff]
      %v3113 = vld [vmem:[#allocation2 + $0x19] sm:$0xff]
      %v3114 = vld [vmem:[#allocation2 + $0x21] sm:$0xff]
      %v3115 = vld [vmem:[#allocation2 + $0x31] sm:$0xff]
      %v3116 = vld [vmem:[#allocation2 + $0x39] sm:$0xff]
      %v3117 = vld [vmem:[#allocation2 + $0x49] sm:$0xff]
      %v3118 = vld [vmem:[#allocation2 + $0x51] sm:$0xff]
      %v3119 = vld [vmem:[#allocation2 + $0x61] sm:$0xff]
      %v3120 = vld [vmem:[#allocation2 + $0x69] sm:$0xff]
      %v3121 = vld [vmem:[#allocation2 + $0x79] sm:$0xff]
      %v3122 = vld [vmem:[#allocation2 + $0x81] sm:$0xff]
      %v3123 = vld [vmem:[#allocation2 + $0x91] sm:$0xff]
      %v3124 = vld [vmem:[#allocation2 + $0x99] sm:$0xff]
      %v3125 = vld [vmem:[#allocation2 + $0xa9] sm:$0xff]
      %v3126 = vld [vmem:[#allocation2 + $0xb1] sm:$0xff]
      %v3127 = vld [vmem:[#allocation2 + $0xc1] sm:$0xff]
      %v3128 = vld [vmem:[#allocation2 + $0xc9] sm:$0xff]
      %v3129 = vld [vmem:[#allocation2 + $0xd9] sm:$0xff]
      %v3130 = vld [vmem:[#allocation2 + $0xe1] sm:$0xff]
      %v3131 = vld [vmem:[#allocation2 + $0xf1] sm:$0xff]
      %v3132 = vld [vmem:[#allocation2 + $0xf9] sm:$0xff]
      %v3133 = vld [vmem:[#allocation2 + $0x109] sm:$0xff]
      %v3134 = vld [vmem:[#allocation2 + $0x111] sm:$0xff]
      %v3135 = vld [vmem:[#allocation2 + $0x121] sm:$0xff]
      %v3136 = vld [vmem:[#allocation2 + $0x129] sm:$0xff]
      %v3137 = vld [vmem:[#allocation2 + $0x139] sm:$0xff]
      %v3138 = vld [vmem:[#allocation2 + $0x141] sm:$0xff]
      %v3139 = vld [vmem:[#allocation2 + $0x151] sm:$0xff]
      %v3140 = vld [vmem:[#allocation2 + $0x159] sm:$0xff]
      %v3141 = vld [vmem:[#allocation2 + $0x169] sm:$0xff]
      %v3142 = vld [vmem:[#allocation2 + $0x171] sm:$0xff]
      %v3143 = vld [vmem:[#allocation2 + $0x2] sm:$0xff]
      %v3144 = vld [vmem:[#allocation2 + $0xa] sm:$0xff]
      %v3145 = vld [vmem:[#allocation2 + $0x1a] sm:$0xff]
      %v3146 = vld [vmem:[#allocation2 + $0x22] sm:$0xff]
      %v3147 = vld [vmem:[#allocation2 + $0x32] sm:$0xff]
      %v3148 = vld [vmem:[#allocation2 + $0x3a] sm:$0xff]
      %v3149 = vld [vmem:[#allocation2 + $0x4a] sm:$0xff]
      %v3150 = vld [vmem:[#allocation2 + $0x52] sm:$0xff]
      %v3151 = vld [vmem:[#allocation2 + $0x62] sm:$0xff]
      %v3152 = vld [vmem:[#allocation2 + $0x6a] sm:$0xff]
      %v3153 = vld [vmem:[#allocation2 + $0x7a] sm:$0xff]
      %v3154 = vld [vmem:[#allocation2 + $0x82] sm:$0xff]
      %v3155 = vld [vmem:[#allocation2 + $0x92] sm:$0xff]
      %v3156 = vld [vmem:[#allocation2 + $0x9a] sm:$0xff]
      %v3157 = vld [vmem:[#allocation2 + $0xaa] sm:$0xff]
      %v3158 = vld [vmem:[#allocation2 + $0xb2] sm:$0xff]
      %v3159 = vld [vmem:[#allocation2 + $0xc2] sm:$0xff]
      %v3160 = vld [vmem:[#allocation2 + $0xca] sm:$0xff]
      %v3161 = vld [vmem:[#allocation2 + $0xda] sm:$0xff]
      %v3162 = vld [vmem:[#allocation2 + $0xe2] sm:$0xff]
      %v3163 = vld [vmem:[#allocation2 + $0xf2] sm:$0xff]
      %v3164 = vld [vmem:[#allocation2 + $0xfa] sm:$0xff]
      %v3165 = vld [vmem:[#allocation2 + $0x10a] sm:$0xff]
      %v3166 = vld [vmem:[#allocation2 + $0x112] sm:$0xff]
      %v3167 = vld [vmem:[#allocation2 + $0x122] sm:$0xff]
      %v3168 = vld [vmem:[#allocation2 + $0x12a] sm:$0xff]
      %v3169 = vld [vmem:[#allocation2 + $0x13a] sm:$0xff]
      %v3170 = vld [vmem:[#allocation2 + $0x142] sm:$0xff]
      %v3171 = vld [vmem:[#allocation2 + $0x152] sm:$0xff]
      %v3172 = vld [vmem:[#allocation2 + $0x15a] sm:$0xff]
      %v3173 = vld [vmem:[#allocation2 + $0x16a] sm:$0xff]
      %v3174 = vld [vmem:[#allocation2 + $0x172] sm:$0xff]
      %v3175 = vld [vmem:[%s956] sm:$0xff]
      %v3176 = vld [vmem:[%s956 + $0x8] sm:$0xff]
      %v3177 = vld [vmem:[%s956 + $0x18] sm:$0xff]
      %v3178 = vld [vmem:[%s956 + $0x20] sm:$0xff]
      %v3179 = vld [vmem:[%s956 + $0x30] sm:$0xff]
      %v3180 = vld [vmem:[%s956 + $0x38] sm:$0xff]
      %v3181 = vld [vmem:[%s956 + $0x48] sm:$0xff]
      %v3182 = vld [vmem:[%s956 + $0x50] sm:$0xff]
      %v3183 = vld [vmem:[%s956 + $0x60] sm:$0xff]
      %v3184 = vld [vmem:[%s956 + $0x68] sm:$0xff]
      %v3185 = vld [vmem:[%s956 + $0x78] sm:$0xff]
      %v3186 = vld [vmem:[%s956 + $0x80] sm:$0xff]
      %v3187 = vld [vmem:[%s956 + $0x90] sm:$0xff]
      %v3188 = vld [vmem:[%s956 + $0x98] sm:$0xff]
      %v3189 = vld [vmem:[%s956 + $0xa8] sm:$0xff]
      %v3190 = vld [vmem:[%s956 + $0xb0] sm:$0xff]
      %v3191 = vld [vmem:[%s956 + $0xc0] sm:$0xff]
      %v3192 = vld [vmem:[%s956 + $0xc8] sm:$0xff]
      %v3193 = vld [vmem:[%s956 + $0xd8] sm:$0xff]
      %v3194 = vld [vmem:[%s956 + $0xe0] sm:$0xff]
      %v3195 = vld [vmem:[%s956 + $0xf0] sm:$0xff]
      %v3196 = vld [vmem:[%s956 + $0xf8] sm:$0xff]
      %v3197 = vld [vmem:[%s956 + $0x108] sm:$0xff]
      %v3198 = vld [vmem:[%s956 + $0x110] sm:$0xff]
      %v3199 = vld [vmem:[%s956 + $0x120] sm:$0xff]
      %v3200 = vld [vmem:[%s956 + $0x128] sm:$0xff]
      %v3201 = vld [vmem:[%s956 + $0x138] sm:$0xff]
      %v3202 = vld [vmem:[%s956 + $0x140] sm:$0xff]
      %v3203 = vld [vmem:[%s956 + $0x150] sm:$0xff]
      %v3204 = vld [vmem:[%s956 + $0x158] sm:$0xff]
      %v3205 = vld [vmem:[%s956 + $0x168] sm:$0xff]
      %v3206 = vld [vmem:[%s956 + $0x170] sm:$0xff]
      %v3207 = vld [vmem:[%s956 + $0x1] sm:$0xff]
      %v3208 = vld [vmem:[%s956 + $0x9] sm:$0xff]
      %v3209 = vld [vmem:[%s956 + $0x19] sm:$0xff]
      %v3210 = vld [vmem:[%s956 + $0x21] sm:$0xff]
      %v3211 = vld [vmem:[%s956 + $0x31] sm:$0xff]
      %v3212 = vld [vmem:[%s956 + $0x39] sm:$0xff]
      %v3213 = vld [vmem:[%s956 + $0x49] sm:$0xff]
      %v3214 = vld [vmem:[%s956 + $0x51] sm:$0xff]
      %v3215 = vld [vmem:[%s956 + $0x61] sm:$0xff]
      %v3216 = vld [vmem:[%s956 + $0x69] sm:$0xff]
      %v3217 = vld [vmem:[%s956 + $0x79] sm:$0xff]
      %v3218 = vld [vmem:[%s956 + $0x81] sm:$0xff]
      %v3219 = vld [vmem:[%s956 + $0x91] sm:$0xff]
      %v3220 = vld [vmem:[%s956 + $0x99] sm:$0xff]
      %v3221 = vld [vmem:[%s956 + $0xa9] sm:$0xff]
      %v3222 = vld [vmem:[%s956 + $0xb1] sm:$0xff]
      %v3223 = vld [vmem:[%s956 + $0xc1] sm:$0xff]
      %v3224 = vld [vmem:[%s956 + $0xc9] sm:$0xff]
      %v3225 = vld [vmem:[%s956 + $0xd9] sm:$0xff]
      %v3226 = vld [vmem:[%s956 + $0xe1] sm:$0xff]
      %v3227 = vld [vmem:[%s956 + $0xf1] sm:$0xff]
      %v3228 = vld [vmem:[%s956 + $0xf9] sm:$0xff]
      %v3229 = vld [vmem:[%s956 + $0x109] sm:$0xff]
      %v3230 = vld [vmem:[%s956 + $0x111] sm:$0xff]
      %v3231 = vld [vmem:[%s956 + $0x121] sm:$0xff]
      %v3232 = vld [vmem:[%s956 + $0x129] sm:$0xff]
      %v3233 = vld [vmem:[%s956 + $0x139] sm:$0xff]
      %v3234 = vld [vmem:[%s956 + $0x141] sm:$0xff]
      %v3235 = vld [vmem:[%s956 + $0x151] sm:$0xff]
      %v3236 = vld [vmem:[%s956 + $0x159] sm:$0xff]
      %v3237 = vld [vmem:[%s956 + $0x169] sm:$0xff]
      %v3238 = vld [vmem:[%s956 + $0x171] sm:$0xff]
      %v3239 = vld [vmem:[%s956 + $0x2] sm:$0xff]
      %v3240 = vld [vmem:[%s956 + $0xa] sm:$0xff]
      %v3241 = vld [vmem:[%s956 + $0x1a] sm:$0xff]
      %v3242 = vld [vmem:[%s956 + $0x22] sm:$0xff]
      %v3243 = vld [vmem:[%s956 + $0x32] sm:$0xff]
      %v3244 = vld [vmem:[%s956 + $0x3a] sm:$0xff]
      %v3245 = vld [vmem:[%s956 + $0x4a] sm:$0xff]
      %v3246 = vld [vmem:[%s956 + $0x52] sm:$0xff]
      %v3247 = vld [vmem:[%s956 + $0x62] sm:$0xff]
      %v3248 = vld [vmem:[%s956 + $0x6a] sm:$0xff]
      %v3249 = vld [vmem:[%s956 + $0x7a] sm:$0xff]
      %v3250 = vld [vmem:[%s956 + $0x82] sm:$0xff]
      %v3251 = vld [vmem:[%s956 + $0x92] sm:$0xff]
      %v3252 = vld [vmem:[%s956 + $0x9a] sm:$0xff]
      %v3253 = vld [vmem:[%s956 + $0xaa] sm:$0xff]
      %v3254 = vld [vmem:[%s956 + $0xb2] sm:$0xff]
      %v3255 = vld [vmem:[%s956 + $0xc2] sm:$0xff]
      %v3256 = vld [vmem:[%s956 + $0xca] sm:$0xff]
      %v3257 = vld [vmem:[%s956 + $0xda] sm:$0xff]
      %v3258 = vld [vmem:[%s956 + $0xe2] sm:$0xff]
      %v3259 = vld [vmem:[%s956 + $0xf2] sm:$0xff]
      %v3260 = vld [vmem:[%s956 + $0xfa] sm:$0xff]
      %v3261 = vld [vmem:[%s956 + $0x10a] sm:$0xff]
      %v3262 = vld [vmem:[%s956 + $0x112] sm:$0xff]
      %v3263 = vld [vmem:[%s956 + $0x122] sm:$0xff]
      %v3264 = vld [vmem:[%s956 + $0x12a] sm:$0xff]
      %v3265 = vld [vmem:[%s956 + $0x13a] sm:$0xff]
      %v3266 = vld [vmem:[%s956 + $0x142] sm:$0xff]
      %v3267 = vld [vmem:[%s956 + $0x152] sm:$0xff]
      %v3268 = vld [vmem:[%s956 + $0x15a] sm:$0xff]
      %v3269 = vld [vmem:[%s956 + $0x16a] sm:$0xff]
      %v3270 = vld [vmem:[%s956 + $0x172] sm:$0xff]
      %v3271 = vld [vmem:[%s1181] sm:$0xff]
      %v3272 = vld [vmem:[%s1181 + $0x8] sm:$0xff]
      %v3273 = vld [vmem:[%s1181 + $0x18] sm:$0xff]
      %v3274 = vld [vmem:[%s1181 + $0x20] sm:$0xff]
      %v3275 = vld [vmem:[%s1181 + $0x30] sm:$0xff]
      %v3276 = vld [vmem:[%s1181 + $0x38] sm:$0xff]
      %v3277 = vld [vmem:[%s1181 + $0x48] sm:$0xff]
      %v3278 = vld [vmem:[%s1181 + $0x50] sm:$0xff]
      %v3279 = vld [vmem:[%s1181 + $0x60] sm:$0xff]
      %v3280 = vld [vmem:[%s1181 + $0x68] sm:$0xff]
      %v3281 = vld [vmem:[%s1181 + $0x78] sm:$0xff]
      %v3282 = vld [vmem:[%s1181 + $0x80] sm:$0xff]
      %v3283 = vld [vmem:[%s1181 + $0x90] sm:$0xff]
      %v3284 = vld [vmem:[%s1181 + $0x98] sm:$0xff]
      %v3285 = vld [vmem:[%s1181 + $0xa8] sm:$0xff]
      %v3286 = vld [vmem:[%s1181 + $0xb0] sm:$0xff]
      %v3287 = vld [vmem:[%s1181 + $0xc0] sm:$0xff]
      %v3288 = vld [vmem:[%s1181 + $0xc8] sm:$0xff]
      %v3289 = vld [vmem:[%s1181 + $0xd8] sm:$0xff]
      %v3290 = vld [vmem:[%s1181 + $0xe0] sm:$0xff]
      %v3291 = vld [vmem:[%s1181 + $0xf0] sm:$0xff]
      %v3292 = vld [vmem:[%s1181 + $0xf8] sm:$0xff]
      %v3293 = vld [vmem:[%s1181 + $0x108] sm:$0xff]
      %v3294 = vld [vmem:[%s1181 + $0x110] sm:$0xff]
      %v3295 = vld [vmem:[%s1181 + $0x120] sm:$0xff]
      %v3296 = vld [vmem:[%s1181 + $0x128] sm:$0xff]
      %v3297 = vld [vmem:[%s1181 + $0x138] sm:$0xff]
      %v3298 = vld [vmem:[%s1181 + $0x140] sm:$0xff]
      %v3299 = vld [vmem:[%s1181 + $0x150] sm:$0xff]
      %v3300 = vld [vmem:[%s1181 + $0x158] sm:$0xff]
      %v3301 = vld [vmem:[%s1181 + $0x168] sm:$0xff]
      %v3302 = vld [vmem:[%s1181 + $0x170] sm:$0xff]
      %v3303 = vld [vmem:[%s1181 + $0x1] sm:$0xff]
      %v3304 = vld [vmem:[%s1181 + $0x9] sm:$0xff]
      %v3305 = vld [vmem:[%s1181 + $0x19] sm:$0xff]
      %v3306 = vld [vmem:[%s1181 + $0x21] sm:$0xff]
      %v3307 = vld [vmem:[%s1181 + $0x31] sm:$0xff]
      %v3308 = vld [vmem:[%s1181 + $0x39] sm:$0xff]
      %v3309 = vld [vmem:[%s1181 + $0x49] sm:$0xff]
      %v3310 = vld [vmem:[%s1181 + $0x51] sm:$0xff]
      %v3311 = vld [vmem:[%s1181 + $0x61] sm:$0xff]
      %v3312 = vld [vmem:[%s1181 + $0x69] sm:$0xff]
      %v3313 = vld [vmem:[%s1181 + $0x79] sm:$0xff]
      %v3314 = vld [vmem:[%s1181 + $0x81] sm:$0xff]
      %v3315 = vld [vmem:[%s1181 + $0x91] sm:$0xff]
      %v3316 = vld [vmem:[%s1181 + $0x99] sm:$0xff]
      %v3317 = vld [vmem:[%s1181 + $0xa9] sm:$0xff]
      %v3318 = vld [vmem:[%s1181 + $0xb1] sm:$0xff]
      %v3319 = vld [vmem:[%s1181 + $0xc1] sm:$0xff]
      %v3320 = vld [vmem:[%s1181 + $0xc9] sm:$0xff]
      %v3321 = vld [vmem:[%s1181 + $0xd9] sm:$0xff]
      %v3322 = vld [vmem:[%s1181 + $0xe1] sm:$0xff]
      %v3323 = vld [vmem:[%s1181 + $0xf1] sm:$0xff]
      %v3324 = vld [vmem:[%s1181 + $0xf9] sm:$0xff]
      %v3325 = vld [vmem:[%s1181 + $0x109] sm:$0xff]
      %v3326 = vld [vmem:[%s1181 + $0x111] sm:$0xff]
      %v3327 = vld [vmem:[%s1181 + $0x121] sm:$0xff]
      %v3328 = vld [vmem:[%s1181 + $0x129] sm:$0xff]
      %v3329 = vld [vmem:[%s1181 + $0x139] sm:$0xff]
      %v3330 = vld [vmem:[%s1181 + $0x141] sm:$0xff]
      %v3331 = vld [vmem:[%s1181 + $0x151] sm:$0xff]
      %v3332 = vld [vmem:[%s1181 + $0x159] sm:$0xff]
      %v3333 = vld [vmem:[%s1181 + $0x169] sm:$0xff]
      %v3334 = vld [vmem:[%s1181 + $0x171] sm:$0xff]
      %v3335 = vld [vmem:[%s1181 + $0x2] sm:$0xff]
      %v3336 = vld [vmem:[%s1181 + $0xa] sm:$0xff]
      %v3337 = vld [vmem:[%s1181 + $0x1a] sm:$0xff]
      %v3338 = vld [vmem:[%s1181 + $0x22] sm:$0xff]
      %v3339 = vld [vmem:[%s1181 + $0x32] sm:$0xff]
      %v3340 = vld [vmem:[%s1181 + $0x3a] sm:$0xff]
      %v3341 = vld [vmem:[%s1181 + $0x4a] sm:$0xff]
      %v3342 = vld [vmem:[%s1181 + $0x52] sm:$0xff]
      %v3343 = vld [vmem:[%s1181 + $0x62] sm:$0xff]
      %v3344 = vld [vmem:[%s1181 + $0x6a] sm:$0xff]
      %v3345 = vld [vmem:[%s1181 + $0x7a] sm:$0xff]
      %v3346 = vld [vmem:[%s1181 + $0x82] sm:$0xff]
      %v3347 = vld [vmem:[%s1181 + $0x92] sm:$0xff]
      %v3348 = vld [vmem:[%s1181 + $0x9a] sm:$0xff]
      %v3349 = vld [vmem:[%s1181 + $0xaa] sm:$0xff]
      %v3350 = vld [vmem:[%s1181 + $0xb2] sm:$0xff]
      %v3351 = vld [vmem:[%s1181 + $0xc2] sm:$0xff]
      %v3352 = vld [vmem:[%s1181 + $0xca] sm:$0xff]
      %v3353 = vld [vmem:[%s1181 + $0xda] sm:$0xff]
      %v3354 = vld [vmem:[%s1181 + $0xe2] sm:$0xff]
      %v3355 = vld [vmem:[%s1181 + $0xf2] sm:$0xff]
      %v3356 = vld [vmem:[%s1181 + $0xfa] sm:$0xff]
      %v3357 = vld [vmem:[%s1181 + $0x10a] sm:$0xff]
      %v3358 = vld [vmem:[%s1181 + $0x112] sm:$0xff]
      %v3359 = vld [vmem:[%s1181 + $0x122] sm:$0xff]
      %v3360 = vld [vmem:[%s1181 + $0x12a] sm:$0xff]
      %v3361 = vld [vmem:[%s1181 + $0x13a] sm:$0xff]
      %v3362 = vld [vmem:[%s1181 + $0x142] sm:$0xff]
      %v3363 = vld [vmem:[%s1181 + $0x152] sm:$0xff]
      %v3364 = vld [vmem:[%s1181 + $0x15a] sm:$0xff]
      %v3365 = vld [vmem:[%s1181 + $0x16a] sm:$0xff]
      %v3366 = vld [vmem:[%s1181 + $0x172] sm:$0xff]
      %v3367 = vld [vmem:[%s7] sm:$0xff]
      %v3368 = vld [vmem:[%s7 + $0x8] sm:$0xff]
      %v3369 = vld [vmem:[%s7 + $0x10] sm:$0xff]
      %v3370 = vld [vmem:[%s7 + $0x18] sm:$0xff]
      %v3371 = vld [vmem:[%s7 + $0x20] sm:$0xff]
      %v3372 = vld [vmem:[%s7 + $0x28] sm:$0xff]
      %v3373 = vld [vmem:[%s7 + $0x30] sm:$0xff]
      %v3374 = vld [vmem:[%s7 + $0x38] sm:$0xff]
      %v3375 = vld [vmem:[%s7 + $0x40] sm:$0xff]
      %v3376 = vld [vmem:[%s7 + $0x48] sm:$0xff]
      %v3377 = vld [vmem:[%s7 + $0x50] sm:$0xff]
      %v3378 = vld [vmem:[%s7 + $0x58] sm:$0xff]
      %v3379 = vld [vmem:[%s7 + $0x60] sm:$0xff]
      %v3380 = vld [vmem:[%s7 + $0x68] sm:$0xff]
      %v3381 = vld [vmem:[%s7 + $0x70] sm:$0xff]
      %v3382 = vld [vmem:[%s7 + $0x78] sm:$0xff]
      %v3383 = vld [vmem:[%s7 + $0x80] sm:$0xff]
      %v3384 = vld [vmem:[%s7 + $0x88] sm:$0xff]
      %v3385 = vld [vmem:[%s7 + $0x90] sm:$0xff]
      %v3386 = vld [vmem:[%s7 + $0x98] sm:$0xff]
      %v3387 = vld [vmem:[%s7 + $0xa0] sm:$0xff]
      %v3388 = vld [vmem:[%s7 + $0xa8] sm:$0xff]
      %v3389 = vld [vmem:[%s7 + $0xb0] sm:$0xff]
      %v3390 = vld [vmem:[%s7 + $0xb8] sm:$0xff]
      %v3391 = vld [vmem:[%s7 + $0xc0] sm:$0xff]
      %v3392 = vld [vmem:[%s7 + $0xc8] sm:$0xff]
      %v3393 = vld [vmem:[%s7 + $0xd0] sm:$0xff]
      %v3394 = vld [vmem:[%s7 + $0xd8] sm:$0xff]
      %v3395 = vld [vmem:[%s7 + $0xe0] sm:$0xff]
      %v3396 = vld [vmem:[%s7 + $0xe8] sm:$0xff]
      %v3397 = vld [vmem:[%s7 + $0xf0] sm:$0xff]
      %v3398 = vld [vmem:[%s7 + $0xf8] sm:$0xff]
      %v3399 = vld [vmem:[%s7 + $0x100] sm:$0xff]
      %v3400 = vld [vmem:[%s7 + $0x108] sm:$0xff]
      %v3401 = vld [vmem:[%s7 + $0x110] sm:$0xff]
      %v3402 = vld [vmem:[%s7 + $0x118] sm:$0xff]
      %v3403 = vld [vmem:[%s7 + $0x120] sm:$0xff]
      %v3404 = vld [vmem:[%s7 + $0x128] sm:$0xff]
      %v3405 = vld [vmem:[%s7 + $0x130] sm:$0xff]
      %v3406 = vld [vmem:[%s7 + $0x138] sm:$0xff]
      %v3407 = vld [vmem:[%s7 + $0x140] sm:$0xff]
      %v3408 = vld [vmem:[%s7 + $0x148] sm:$0xff]
      %v3409 = vld [vmem:[%s7 + $0x150] sm:$0xff]
      %v3410 = vld [vmem:[%s7 + $0x158] sm:$0xff]
      %v3411 = vld [vmem:[%s7 + $0x160] sm:$0xff]
      %v3412 = vld [vmem:[%s7 + $0x168] sm:$0xff]
      %v3413 = vld [vmem:[%s7 + $0x170] sm:$0xff]
      %v3414 = vld [vmem:[%s7 + $0x178] sm:$0xff]
      %v3415 = vld [vmem:[%s7 + $0x180] sm:$0xff]
      %v3416 = vld [vmem:[%s7 + $0x188] sm:$0xff]
      %v3417 = vld [vmem:[%s7 + $0x190] sm:$0xff]
      %v3418 = vld [vmem:[%s7 + $0x198] sm:$0xff]
      %v3419 = vld [vmem:[%s7 + $0x1a0] sm:$0xff]
      %v3420 = vld [vmem:[%s7 + $0x1a8] sm:$0xff]
      %v3421 = vld [vmem:[%s7 + $0x1b0] sm:$0xff]
      %v3422 = vld [vmem:[%s7 + $0x1b8] sm:$0xff]
      %v3423 = vld [vmem:[%s7 + $0x1c0] sm:$0xff]
      %v3424 = vld [vmem:[%s7 + $0x1c8] sm:$0xff]
      %v3425 = vld [vmem:[%s7 + $0x1d0] sm:$0xff]
      %v3426 = vld [vmem:[%s7 + $0x1d8] sm:$0xff]
      %v3427 = vld [vmem:[%s7 + $0x1e0] sm:$0xff]
      %v3428 = vld [vmem:[%s7 + $0x1e8] sm:$0xff]
      %v3429 = vld [vmem:[%s7 + $0x1f0] sm:$0xff]
      %v3430 = vld [vmem:[%s7 + $0x1f8] sm:$0xff]
      %v3431 = vld [vmem:[%s7 + $0x200] sm:$0xff]
      %v3432 = vld [vmem:[%s7 + $0x208] sm:$0xff]
      %v3433 = vld [vmem:[%s7 + $0x210] sm:$0xff]
      %v3434 = vld [vmem:[%s7 + $0x218] sm:$0xff]
      %v3435 = vld [vmem:[%s7 + $0x220] sm:$0xff]
      %v3436 = vld [vmem:[%s7 + $0x228] sm:$0xff]
      %v3437 = vld [vmem:[%s7 + $0x230] sm:$0xff]
      %v3438 = vld [vmem:[%s7 + $0x238] sm:$0xff]
      %v3439 = vld [vmem:[%s7 + $0x240] sm:$0xff]
      %v3440 = vld [vmem:[%s7 + $0x248] sm:$0xff]
      %v3441 = vld [vmem:[%s7 + $0x250] sm:$0xff]
      %v3442 = vld [vmem:[%s7 + $0x258] sm:$0xff]
      %v3443 = vld [vmem:[%s7 + $0x260] sm:$0xff]
      %v3444 = vld [vmem:[%s7 + $0x268] sm:$0xff]
      %v3445 = vld [vmem:[%s7 + $0x270] sm:$0xff]
      %v3446 = vld [vmem:[%s7 + $0x278] sm:$0xff]
      %v3447 = vld [vmem:[%s7 + $0x280] sm:$0xff]
      %v3448 = vld [vmem:[%s7 + $0x288] sm:$0xff]
      %v3449 = vld [vmem:[%s7 + $0x290] sm:$0xff]
      %v3450 = vld [vmem:[%s7 + $0x298] sm:$0xff]
      %v3451 = vld [vmem:[%s7 + $0x2a0] sm:$0xff]
      %v3452 = vld [vmem:[%s7 + $0x2a8] sm:$0xff]
      %v3453 = vld [vmem:[%s7 + $0x2b0] sm:$0xff]
      %v3454 = vld [vmem:[%s7 + $0x2b8] sm:$0xff]
      %v3455 = vld [vmem:[%s7 + $0x2c0] sm:$0xff]
      %v3456 = vld [vmem:[%s7 + $0x2c8] sm:$0xff]
      %v3457 = vld [vmem:[%s7 + $0x2d0] sm:$0xff]
      %v3458 = vld [vmem:[%s7 + $0x2d8] sm:$0xff]
      %v3459 = vld [vmem:[%s7 + $0x2e0] sm:$0xff]
      %v3460 = vld [vmem:[%s7 + $0x2e8] sm:$0xff]
      %v3461 = vld [vmem:[%s7 + $0x2f0] sm:$0xff]
      %v3462 = vld [vmem:[%s7 + $0x2f8] sm:$0xff]
      %v3463 = vld [vmem:[%s7 + $0x300] sm:$0xff]
      %v3464 = vld [vmem:[%s7 + $0x308] sm:$0xff]
      %v3465 = vld [vmem:[%s7 + $0x310] sm:$0xff]
      %v3466 = vld [vmem:[%s7 + $0x318] sm:$0xff]
      %v3467 = vld [vmem:[%s7 + $0x320] sm:$0xff]
      %v3468 = vld [vmem:[%s7 + $0x328] sm:$0xff]
      %v3469 = vld [vmem:[%s7 + $0x330] sm:$0xff]
      %v3470 = vld [vmem:[%s7 + $0x338] sm:$0xff]
      %v3471 = vld [vmem:[%s7 + $0x340] sm:$0xff]
      %v3472 = vld [vmem:[%s7 + $0x348] sm:$0xff]
      %v3473 = vld [vmem:[%s7 + $0x350] sm:$0xff]
      %v3474 = vld [vmem:[%s7 + $0x358] sm:$0xff]
      %v3475 = vld [vmem:[%s7 + $0x360] sm:$0xff]
      %v3476 = vld [vmem:[%s7 + $0x368] sm:$0xff]
      %v3477 = vld [vmem:[%s7 + $0x370] sm:$0xff]
      %v3478 = vld [vmem:[%s7 + $0x378] sm:$0xff]
      %v3479 = vld [vmem:[%s7 + $0x380] sm:$0xff]
      %v3480 = vld [vmem:[%s7 + $0x388] sm:$0xff]
      %v3481 = vld [vmem:[%s7 + $0x390] sm:$0xff]
      %v3482 = vld [vmem:[%s7 + $0x398] sm:$0xff]
      %v3483 = vld [vmem:[%s7 + $0x3a0] sm:$0xff]
      %v3484 = vld [vmem:[%s7 + $0x3a8] sm:$0xff]
      %v3485 = vld [vmem:[%s7 + $0x3b0] sm:$0xff]
      %v3486 = vld [vmem:[%s7 + $0x3b8] sm:$0xff]
      %v3487 = vld [vmem:[%s7 + $0x3c0] sm:$0xff]
      %v3488 = vld [vmem:[%s7 + $0x3c8] sm:$0xff]
      %v3489 = vld [vmem:[%s7 + $0x3d0] sm:$0xff]
      %v3490 = vld [vmem:[%s7 + $0x3d8] sm:$0xff]
      %v3491 = vld [vmem:[%s7 + $0x3e0] sm:$0xff]
      %v3492 = vld [vmem:[%s7 + $0x3e8] sm:$0xff]
      %v3493 = vld [vmem:[%s7 + $0x3f0] sm:$0xff]
      %v3494 = vld [vmem:[%s7 + $0x3f8] sm:$0xff]
      %v3495 = vld [vmem:[%s7 + $0x400] sm:$0xff]
      %v3496 = vld [vmem:[%s7 + $0x408] sm:$0xff]
      %v3497 = vld [vmem:[%s7 + $0x410] sm:$0xff]
      %v3498 = vld [vmem:[%s7 + $0x418] sm:$0xff]
      %v3499 = vld [vmem:[%s7 + $0x420] sm:$0xff]
      %v3500 = vld [vmem:[%s7 + $0x428] sm:$0xff]
      %v3501 = vld [vmem:[%s7 + $0x430] sm:$0xff]
      %v3502 = vld [vmem:[%s7 + $0x438] sm:$0xff]
      %v3503 = vld [vmem:[%s7 + $0x440] sm:$0xff]
      %v3504 = vld [vmem:[%s7 + $0x448] sm:$0xff]
      %v3505 = vld [vmem:[%s7 + $0x450] sm:$0xff]
      %v3506 = vld [vmem:[%s7 + $0x458] sm:$0xff]
      %v3507 = vld [vmem:[%s7 + $0x460] sm:$0xff]
      %v3508 = vld [vmem:[%s7 + $0x468] sm:$0xff]
      %v3509 = vld [vmem:[%s7 + $0x470] sm:$0xff]
      %v3510 = vld [vmem:[%s7 + $0x478] sm:$0xff]
      %v3512 = vlaneseq
      %v3513 = vshrl.u32 %v3512, 7
      %v3514 = vsub.s32 0, %v3513
      %v3515 = vrot.slane %v3046, %v3514
      %3517 = vmatprep.subr.mxu0 0.0
      %3518 = vmatpush1.msra.mxu0 %v3367
      %3519 = vmatprep.subr.mxu0 0.0
      %3520 = vmatpush1.msra.mxu0 %v3368
      %3521 = vmatprep.subr.mxu0 0.0
      %3522 = vmatpush1.msra.mxu0 %v3369
      %3523 = vmatprep.subr.mxu0 0.0
      %3524 = vmatpush1.msra.mxu0 %v3370
      %3525 = vmatprep.subr.mxu0 0.0
      %3526 = vmatpush1.msra.mxu0 %v3371
      %3527 = vmatprep.subr.mxu0 0.0
      %3528 = vmatpush1.msra.mxu0 %v3372
      %3529 = vmatprep.subr.mxu0 0.0
      %3530 = vmatpush1.msra.mxu0 %v3373
      %3531 = vmatprep.subr.mxu0 0.0
      %3532 = vmatpush1.msra.mxu0 %v3374
      %3533 = vmatprep.subr.mxu0 0.0
      %3534 = vmatpush1.msra.mxu0 %v3375
      %3535 = vmatprep.subr.mxu0 0.0
      %3536 = vmatpush1.msra.mxu0 %v3376
      %3537 = vmatprep.subr.mxu0 0.0
      %3538 = vmatpush1.msra.mxu0 %v3377
      %3539 = vmatprep.subr.mxu0 0.0
      %3540 = vmatpush1.msra.mxu0 %v3378
      %3541 = vmatprep.subr.mxu0 0.0
      %3542 = vmatpush1.msra.mxu0 %v3379
      %3543 = vmatprep.subr.mxu0 0.0
      %3544 = vmatpush1.msra.mxu0 %v3380
      %3545 = vmatprep.subr.mxu0 0.0
      %3546 = vmatpush1.msra.mxu0 %v3381
      %3547 = vmatprep.subr.mxu0 0.0
      %3548 = vmatpush1.msra.mxu0 %v3382
      %3549 = vmatprep.subr.mxu0 0.0
      %3550 = vmatpush1.msra.mxu0 %v3383
      %3551 = vmatprep.subr.mxu0 0.0
      %3552 = vmatpush1.msra.mxu0 %v3384
      %3553 = vmatprep.subr.mxu0 0.0
      %3554 = vmatpush1.msra.mxu0 %v3385
      %3555 = vmatprep.subr.mxu0 0.0
      %3556 = vmatpush1.msra.mxu0 %v3386
      %3557 = vmatprep.subr.mxu0 0.0
      %3558 = vmatpush1.msra.mxu0 %v3387
      %3559 = vmatprep.subr.mxu0 0.0
      %3560 = vmatpush1.msra.mxu0 %v3388
      %3561 = vmatprep.subr.mxu0 0.0
      %3562 = vmatpush1.msra.mxu0 %v3389
      %3563 = vmatprep.subr.mxu0 0.0
      %3564 = vmatpush1.msra.mxu0 %v3390
      %3565 = vmatprep.subr.mxu0 0.0
      %3566 = vmatpush1.msra.mxu0 %v3391
      %3567 = vmatprep.subr.mxu0 0.0
      %3568 = vmatpush1.msra.mxu0 %v3392
      %3569 = vmatprep.subr.mxu0 0.0
      %3570 = vmatpush1.msra.mxu0 %v3393
      %3571 = vmatprep.subr.mxu0 0.0
      %3572 = vmatpush1.msra.mxu0 %v3394
      %3573 = vmatprep.subr.mxu0 0.0
      %3574 = vmatpush1.msra.mxu0 %v3395
      %3575 = vmatprep.subr.mxu0 0.0
      %3576 = vmatpush1.msra.mxu0 %v3396
      %3577 = vmatprep.subr.mxu0 0.0
      %3578 = vmatpush1.msra.mxu0 %v3397
      %3579 = vmatprep.subr.mxu0 0.0
      %3580 = vmatpush1.msra.mxu0 %v3398
      %3581 = vmatprep.mubr.f32.mxu0 %v3111
      %3582 = vmatmul.mubr.f32.gmra.mrb[0].mxu0 %v3079
      %v3583 = vpop.f32.mrb[0].mxu0
      %v3584 = vadd.f32 %v3515, %v3583
      %v3585 = vpop.f32.mrb[0].mxu0
      %3586 = vmatprep.mubr.f32.mxu0 %v3112
      %3587 = vmatmul.mubr.f32.gmra.mrb[0].mxu0 %v3080
      %v3588 = vpop.f32.mrb[0].mxu0
      %v3589 = vadd.f32 %v3515, %v3588
      %v3590 = vpop.f32.mrb[0].mxu0
      %3591 = vmatprep.mubr.f32.mxu0 %v3113
      %3592 = vmatmul.mubr.f32.gmra.mrb[0].mxu0 %v3081
      %v3593 = vpop.f32.mrb[0].mxu0
      %v3594 = vadd.f32 %v3515, %v3593
      %v3595 = vpop.f32.mrb[0].mxu0
      %3596 = vmatprep.mubr.f32.mxu0 %v3114
      %3597 = vmatmul.mubr.f32.gmra.mrb[0].mxu0 %v3082
      %v3598 = vpop.f32.mrb[0].mxu0
      %v3599 = vadd.f32 %v3515, %v3598
      %v3600 = vpop.f32.mrb[0].mxu0
      %3601 = vmatprep.mubr.f32.mxu0 %v3115
      %3602 = vmatmul.mubr.f32.gmra.mrb[0].mxu0 %v3083
      %v3603 = vpop.f32.mrb[0].mxu0
      %v3604 = vadd.f32 %v3515, %v3603
      %v3605 = vpop.f32.mrb[0].mxu0
      %3606 = vmatprep.mubr.f32.mxu0 %v3116
      %3607 = vmatmul.mubr.f32.gmra.mrb[0].mxu0 %v3084
      %v3608 = vpop.f32.mrb[0].mxu0
      %v3609 = vadd.f32 %v3515, %v3608
      %v3610 = vpop.f32.mrb[0].mxu0
      %3611 = vmatprep.mubr.f32.mxu0 %v3117
      %3612 = vmatmul.mubr.f32.gmra.mrb[0].mxu0 %v3085
      %v3613 = vpop.f32.mrb[0].mxu0
      %v3614 = vadd.f32 %v3515, %v3613
      %v3615 = vpop.f32.mrb[0].mxu0
      %3616 = vmatprep.mubr.f32.mxu0 %v3118
      %3617 = vmatmul.mubr.f32.gmra.mrb[0].mxu0 %v3086
      %v3618 = vpop.f32.mrb[0].mxu0
      %v3619 = vadd.f32 %v3515, %v3618
      %v3620 = vpop.f32.mrb[0].mxu0
      %3621 = vmatprep.mubr.f32.mxu0 %v3119
      %3622 = vmatmul.mubr.f32.gmra.mrb[0].mxu0 %v3087
      %v3623 = vpop.f32.mrb[0].mxu0
      %v3624 = vadd.f32 %v3515, %v3623
      %v3625 = vpop.f32.mrb[0].mxu0
      %3626 = vmatprep.mubr.f32.mxu0 %v3120
      %3627 = vmatmul.mubr.f32.gmra.mrb[0].mxu0 %v3088
      %v3628 = vpop.f32.mrb[0].mxu0
      %v3629 = vadd.f32 %v3515, %v3628
      %v3630 = vpop.f32.mrb[0].mxu0
      %3631 = vmatprep.mubr.f32.mxu0 %v3121
      %3632 = vmatmul.mubr.f32.gmra.mrb[0].mxu0 %v3089
      %v3633 = vpop.f32.mrb[0].mxu0
      %v3634 = vadd.f32 %v3515, %v3633
      %v3635 = vpop.f32.mrb[0].mxu0
      %3636 = vmatprep.mubr.f32.mxu0 %v3122
      %3637 = vmatmul.mubr.f32.gmra.mrb[0].mxu0 %v3090
      %v3638 = vpop.f32.mrb[0].mxu0
      %v3639 = vadd.f32 %v3515, %v3638
      %v3640 = vpop.f32.mrb[0].mxu0
      %3641 = vmatprep.mubr.f32.mxu0 %v3123
      %3642 = vmatmul.mubr.f32.gmra.mrb[0].mxu0 %v3091
      %v3643 = vpop.f32.mrb[0].mxu0
      %v3644 = vadd.f32 %v3515, %v3643
      %v3645 = vpop.f32.mrb[0].mxu0
      %3646 = vmatprep.mubr.f32.mxu0 %v3124
      %3647 = vmatmul.mubr.f32.gmra.mrb[0].mxu0 %v3092
      %v3648 = vpop.f32.mrb[0].mxu0
      %v3649 = vadd.f32 %v3515, %v3648
      %v3650 = vpop.f32.mrb[0].mxu0
      %3651 = vmatprep.mubr.f32.mxu0 %v3125
      %3652 = vmatmul.mubr.f32.gmra.mrb[0].mxu0 %v3093
      %v3653 = vpop.f32.mrb[0].mxu0
      %v3654 = vadd.f32 %v3515, %v3653
      %v3655 = vpop.f32.mrb[0].mxu0
      %3656 = vmatprep.mubr.f32.mxu0 %v3126
      %3657 = vmatmul.mubr.f32.gmra.mrb[0].mxu0 %v3094
      %v3658 = vpop.f32.mrb[0].mxu0
      %v3659 = vadd.f32 %v3515, %v3658
      %v3660 = vpop.f32.mrb[0].mxu0
      %3661 = vmatprep.mubr.f32.mxu0 %v3127
      %3662 = vmatmul.mubr.f32.gmra.mrb[0].mxu0 %v3095
      %v3663 = vpop.f32.mrb[0].mxu0
      %v3664 = vadd.f32 %v3515, %v3663
      %v3665 = vpop.f32.mrb[0].mxu0
      %3666 = vmatprep.mubr.f32.mxu0 %v3128
      %3667 = vmatmul.mubr.f32.gmra.mrb[0].mxu0 %v3096
      %v3668 = vpop.f32.mrb[0].mxu0
      %v3669 = vadd.f32 %v3515, %v3668
      %v3670 = vpop.f32.mrb[0].mxu0
      %3671 = vmatprep.mubr.f32.mxu0 %v3129
      %3672 = vmatmul.mubr.f32.gmra.mrb[0].mxu0 %v3097
      %v3673 = vpop.f32.mrb[0].mxu0
      %v3674 = vadd.f32 %v3515, %v3673
      %v3675 = vpop.f32.mrb[0].mxu0
      %3676 = vmatprep.mubr.f32.mxu0 %v3130
      %3677 = vmatmul.mubr.f32.gmra.mrb[0].mxu0 %v3098
      %v3678 = vpop.f32.mrb[0].mxu0
      %v3679 = vadd.f32 %v3515, %v3678
      %v3680 = vpop.f32.mrb[0].mxu0
      %3681 = vmatprep.mubr.f32.mxu0 %v3131
      %3682 = vmatmul.mubr.f32.gmra.mrb[0].mxu0 %v3099
      %v3683 = vpop.f32.mrb[0].mxu0
      %v3684 = vadd.f32 %v3515, %v3683
      %v3685 = vpop.f32.mrb[0].mxu0
      %3686 = vmatprep.mubr.f32.mxu0 %v3132
      %3687 = vmatmul.mubr.f32.gmra.mrb[0].mxu0 %v3100
      %v3688 = vpop.f32.mrb[0].mxu0
      %v3689 = vadd.f32 %v3515, %v3688
      %v3690 = vpop.f32.mrb[0].mxu0
      %3691 = vmatprep.mubr.f32.mxu0 %v3133
      %3692 = vmatmul.mubr.f32.gmra.mrb[0].mxu0 %v3101
      %v3693 = vpop.f32.mrb[0].mxu0
      %v3694 = vadd.f32 %v3515, %v3693
      %v3695 = vpop.f32.mrb[0].mxu0
      %3696 = vmatprep.mubr.f32.mxu0 %v3134
      %3697 = vmatmul.mubr.f32.gmra.mrb[0].mxu0 %v3102
      %v3698 = vpop.f32.mrb[0].mxu0
      %v3699 = vadd.f32 %v3515, %v3698
      %v3700 = vpop.f32.mrb[0].mxu0
      %3701 = vmatprep.mubr.f32.mxu0 %v3135
      %3702 = vmatmul.mubr.f32.gmra.mrb[0].mxu0 %v3103
      %v3703 = vpop.f32.mrb[0].mxu0
      %v3704 = vadd.f32 %v3515, %v3703
      %v3705 = vpop.f32.mrb[0].mxu0
      %3706 = vmatprep.mubr.f32.mxu0 %v3136
      %3707 = vmatmul.mubr.f32.gmra.mrb[0].mxu0 %v3104
      %v3708 = vpop.f32.mrb[0].mxu0
      %v3709 = vadd.f32 %v3515, %v3708
      %v3710 = vpop.f32.mrb[0].mxu0
      %3711 = vmatprep.mubr.f32.mxu0 %v3137
      %3712 = vmatmul.mubr.f32.gmra.mrb[0].mxu0 %v3105
      %v3713 = vpop.f32.mrb[0].mxu0
      %v3714 = vadd.f32 %v3515, %v3713
      %v3715 = vpop.f32.mrb[0].mxu0
      %3716 = vmatprep.mubr.f32.mxu0 %v3138
      %3717 = vmatmul.mubr.f32.gmra.mrb[0].mxu0 %v3106
      %v3718 = vpop.f32.mrb[0].mxu0
      %v3719 = vadd.f32 %v3515, %v3718
      %v3720 = vpop.f32.mrb[0].mxu0
      %3721 = vmatprep.mubr.f32.mxu0 %v3139
      %3722 = vmatmul.mubr.f32.gmra.mrb[0].mxu0 %v3107
      %v3723 = vpop.f32.mrb[0].mxu0
      %v3724 = vadd.f32 %v3515, %v3723
      %v3725 = vpop.f32.mrb[0].mxu0
      %3726 = vmatprep.mubr.f32.mxu0 %v3140
      %3727 = vmatmul.mubr.f32.gmra.mrb[0].mxu0 %v3108
      %v3728 = vpop.f32.mrb[0].mxu0
      %v3729 = vadd.f32 %v3515, %v3728
      %v3730 = vpop.f32.mrb[0].mxu0
      %3731 = vmatprep.mubr.f32.mxu0 %v3141
      %3732 = vmatmul.mubr.f32.gmra.mrb[0].mxu0 %v3109
      %v3733 = vpop.f32.mrb[0].mxu0
      %v3734 = vadd.f32 %v3515, %v3733
      %v3735 = vpop.f32.mrb[0].mxu0
      %3736 = vmatprep.mubr.f32.mxu0 %v3142
      %3737 = vmatmul.mubr.f32.gmra.mrb[0].mxu0 %v3110
      %v3738 = vpop.f32.mrb[0].mxu0
      %v3739 = vadd.f32 %v3515, %v3738
      %v3740 = vpop.f32.mrb[0].mxu0
      %3741 = vdwg.mxu0
      %3742 = vmatprep.subr.mxu0 0.0
      %3743 = vmatpush1.msra.mxu0 %v3399
      %3744 = vmatprep.subr.mxu0 0.0
      %3745 = vmatpush1.msra.mxu0 %v3400
      %3746 = vmatprep.subr.mxu0 0.0
      %3747 = vmatpush1.msra.mxu0 %v3401
      %3748 = vmatprep.subr.mxu0 0.0
      %3749 = vmatpush1.msra.mxu0 %v3402
      %3750 = vmatprep.subr.mxu0 0.0
      %3751 = vmatpush1.msra.mxu0 %v3403
      %3752 = vmatprep.subr.mxu0 0.0
      %3753 = vmatpush1.msra.mxu0 %v3404
      %3754 = vmatprep.subr.mxu0 0.0
      %3755 = vmatpush1.msra.mxu0 %v3405
      %3756 = vmatprep.subr.mxu0 0.0
      %3757 = vmatpush1.msra.mxu0 %v3406
      %3758 = vmatprep.subr.mxu0 0.0
      %3759 = vmatpush1.msra.mxu0 %v3407
      %3760 = vmatprep.subr.mxu0 0.0
      %3761 = vmatpush1.msra.mxu0 %v3408
      %3762 = vmatprep.subr.mxu0 0.0
      %3763 = vmatpush1.msra.mxu0 %v3409
      %3764 = vmatprep.subr.mxu0 0.0
      %3765 = vmatpush1.msra.mxu0 %v3410
      %3766 = vmatprep.subr.mxu0 0.0
      %3767 = vmatpush1.msra.mxu0 %v3411
      %3768 = vmatprep.subr.mxu0 0.0
      %3769 = vmatpush1.msra.mxu0 %v3412
      %3770 = vmatprep.subr.mxu0 0.0
      %3771 = vmatpush1.msra.mxu0 %v3413
      %3772 = vmatprep.subr.mxu0 0.0
      %3773 = vmatpush1.msra.mxu0 %v3414
      %3774 = vmatprep.subr.mxu0 0.0
      %3775 = vmatpush1.msra.mxu0 %v3415
      %3776 = vmatprep.subr.mxu0 0.0
      %3777 = vmatpush1.msra.mxu0 %v3416
      %3778 = vmatprep.subr.mxu0 0.0
      %3779 = vmatpush1.msra.mxu0 %v3417
      %3780 = vmatprep.subr.mxu0 0.0
      %3781 = vmatpush1.msra.mxu0 %v3418
      %3782 = vmatprep.subr.mxu0 0.0
      %3783 = vmatpush1.msra.mxu0 %v3419
      %3784 = vmatprep.subr.mxu0 0.0
      %3785 = vmatpush1.msra.mxu0 %v3420
      %3786 = vmatprep.subr.mxu0 0.0
      %3787 = vmatpush1.msra.mxu0 %v3421
      %3788 = vmatprep.subr.mxu0 0.0
      %3789 = vmatpush1.msra.mxu0 %v3422
      %3790 = vmatprep.subr.mxu0 0.0
      %3791 = vmatpush1.msra.mxu0 %v3423
      %3792 = vmatprep.subr.mxu0 0.0
      %3793 = vmatpush1.msra.mxu0 %v3424
      %3794 = vmatprep.subr.mxu0 0.0
      %3795 = vmatpush1.msra.mxu0 %v3425
      %3796 = vmatprep.subr.mxu0 0.0
      %3797 = vmatpush1.msra.mxu0 %v3426
      %3798 = vmatprep.subr.mxu0 0.0
      %3799 = vmatpush1.msra.mxu0 %v3427
      %3800 = vmatprep.subr.mxu0 0.0
      %3801 = vmatpush1.msra.mxu0 %v3428
      %3802 = vmatprep.subr.mxu0 0.0
      %3803 = vmatpush1.msra.mxu0 %v3429
      %3804 = vmatprep.subr.mxu0 0.0
      %3805 = vmatpush1.msra.mxu0 %v3430
      %3806 = vmatprep.mubr.f32.mxu0 %v3175
      %3807 = vmatmul.mubr.f32.gmra.mrb[0].mxu0 %v3143
      %v3808 = vpop.f32.mrb[0].mxu0
      %v3809 = vadd.f32 %v3584, %v3808
      %v3810 = vpop.f32.mrb[0].mxu0
      %3811 = vmatprep.mubr.f32.mxu0 %v3176
      %3812 = vmatmul.mubr.f32.gmra.mrb[0].mxu0 %v3144
      %v3813 = vpop.f32.mrb[0].mxu0
      %v3814 = vadd.f32 %v3589, %v3813
      %v3815 = vpop.f32.mrb[0].mxu0
      %3816 = vmatprep.mubr.f32.mxu0 %v3177
      %3817 = vmatmul.mubr.f32.gmra.mrb[0].mxu0 %v3145
      %v3818 = vpop.f32.mrb[0].mxu0
      %v3819 = vadd.f32 %v3594, %v3818
      %v3820 = vpop.f32.mrb[0].mxu0
      %3821 = vmatprep.mubr.f32.mxu0 %v3178
      %3822 = vmatmul.mubr.f32.gmra.mrb[0].mxu0 %v3146
      %v3823 = vpop.f32.mrb[0].mxu0
      %v3824 = vadd.f32 %v3599, %v3823
      %v3825 = vpop.f32.mrb[0].mxu0
      %3826 = vmatprep.mubr.f32.mxu0 %v3179
      %3827 = vmatmul.mubr.f32.gmra.mrb[0].mxu0 %v3147
      %v3828 = vpop.f32.mrb[0].mxu0
      %v3829 = vadd.f32 %v3604, %v3828
      %v3830 = vpop.f32.mrb[0].mxu0
      %3831 = vmatprep.mubr.f32.mxu0 %v3180
      %3832 = vmatmul.mubr.f32.gmra.mrb[0].mxu0 %v3148
      %v3833 = vpop.f32.mrb[0].mxu0
      %v3834 = vadd.f32 %v3609, %v3833
      %v3835 = vpop.f32.mrb[0].mxu0
      %3836 = vmatprep.mubr.f32.mxu0 %v3181
      %3837 = vmatmul.mubr.f32.gmra.mrb[0].mxu0 %v3149
      %v3838 = vpop.f32.mrb[0].mxu0
      %v3839 = vadd.f32 %v3614, %v3838
      %v3840 = vpop.f32.mrb[0].mxu0
      %3841 = vmatprep.mubr.f32.mxu0 %v3182
      %3842 = vmatmul.mubr.f32.gmra.mrb[0].mxu0 %v3150
      %v3843 = vpop.f32.mrb[0].mxu0
      %v3844 = vadd.f32 %v3619, %v3843
      %v3845 = vpop.f32.mrb[0].mxu0
      %3846 = vmatprep.mubr.f32.mxu0 %v3183
      %3847 = vmatmul.mubr.f32.gmra.mrb[0].mxu0 %v3151
      %v3848 = vpop.f32.mrb[0].mxu0
      %v3849 = vadd.f32 %v3624, %v3848
      %v3850 = vpop.f32.mrb[0].mxu0
      %3851 = vmatprep.mubr.f32.mxu0 %v3184
      %3852 = vmatmul.mubr.f32.gmra.mrb[0].mxu0 %v3152
      %v3853 = vpop.f32.mrb[0].mxu0
      %v3854 = vadd.f32 %v3629, %v3853
      %v3855 = vpop.f32.mrb[0].mxu0
      %3856 = vmatprep.mubr.f32.mxu0 %v3185
      %3857 = vmatmul.mubr.f32.gmra.mrb[0].mxu0 %v3153
      %v3858 = vpop.f32.mrb[0].mxu0
      %v3859 = vadd.f32 %v3634, %v3858
      %v3860 = vpop.f32.mrb[0].mxu0
      %3861 = vmatprep.mubr.f32.mxu0 %v3186
      %3862 = vmatmul.mubr.f32.gmra.mrb[0].mxu0 %v3154
      %v3863 = vpop.f32.mrb[0].mxu0
      %v3864 = vadd.f32 %v3639, %v3863
      %v3865 = vpop.f32.mrb[0].mxu0
      %3866 = vmatprep.mubr.f32.mxu0 %v3187
      %3867 = vmatmul.mubr.f32.gmra.mrb[0].mxu0 %v3155
      %v3868 = vpop.f32.mrb[0].mxu0
      %v3869 = vadd.f32 %v3644, %v3868
      %v3870 = vpop.f32.mrb[0].mxu0
      %3871 = vmatprep.mubr.f32.mxu0 %v3188
      %3872 = vmatmul.mubr.f32.gmra.mrb[0].mxu0 %v3156
      %v3873 = vpop.f32.mrb[0].mxu0
      %v3874 = vadd.f32 %v3649, %v3873
      %v3875 = vpop.f32.mrb[0].mxu0
      %3876 = vmatprep.mubr.f32.mxu0 %v3189
      %3877 = vmatmul.mubr.f32.gmra.mrb[0].mxu0 %v3157
      %v3878 = vpop.f32.mrb[0].mxu0
      %v3879 = vadd.f32 %v3654, %v3878
      %v3880 = vpop.f32.mrb[0].mxu0
      %3881 = vmatprep.mubr.f32.mxu0 %v3190
      %3882 = vmatmul.mubr.f32.gmra.mrb[0].mxu0 %v3158
      %v3883 = vpop.f32.mrb[0].mxu0
      %v3884 = vadd.f32 %v3659, %v3883
      %v3885 = vpop.f32.mrb[0].mxu0
      %3886 = vmatprep.mubr.f32.mxu0 %v3191
      %3887 = vmatmul.mubr.f32.gmra.mrb[0].mxu0 %v3159
      %v3888 = vpop.f32.mrb[0].mxu0
      %v3889 = vadd.f32 %v3664, %v3888
      %v3890 = vpop.f32.mrb[0].mxu0
      %3891 = vmatprep.mubr.f32.mxu0 %v3192
      %3892 = vmatmul.mubr.f32.gmra.mrb[0].mxu0 %v3160
      %v3893 = vpop.f32.mrb[0].mxu0
      %v3894 = vadd.f32 %v3669, %v3893
      %v3895 = vpop.f32.mrb[0].mxu0
      %3896 = vmatprep.mubr.f32.mxu0 %v3193
      %3897 = vmatmul.mubr.f32.gmra.mrb[0].mxu0 %v3161
      %v3898 = vpop.f32.mrb[0].mxu0
      %v3899 = vadd.f32 %v3674, %v3898
      %v3900 = vpop.f32.mrb[0].mxu0
      %3901 = vmatprep.mubr.f32.mxu0 %v3194
      %3902 = vmatmul.mubr.f32.gmra.mrb[0].mxu0 %v3162
      %v3903 = vpop.f32.mrb[0].mxu0
      %v3904 = vadd.f32 %v3679, %v3903
      %v3905 = vpop.f32.mrb[0].mxu0
      %3906 = vmatprep.mubr.f32.mxu0 %v3195
      %3907 = vmatmul.mubr.f32.gmra.mrb[0].mxu0 %v3163
      %v3908 = vpop.f32.mrb[0].mxu0
      %v3909 = vadd.f32 %v3684, %v3908
      %v3910 = vpop.f32.mrb[0].mxu0
      %3911 = vmatprep.mubr.f32.mxu0 %v3196
      %3912 = vmatmul.mubr.f32.gmra.mrb[0].mxu0 %v3164
      %v3913 = vpop.f32.mrb[0].mxu0
      %v3914 = vadd.f32 %v3689, %v3913
      %v3915 = vpop.f32.mrb[0].mxu0
      %3916 = vmatprep.mubr.f32.mxu0 %v3197
      %3917 = vmatmul.mubr.f32.gmra.mrb[0].mxu0 %v3165
      %v3918 = vpop.f32.mrb[0].mxu0
      %v3919 = vadd.f32 %v3694, %v3918
      %v3920 = vpop.f32.mrb[0].mxu0
      %3921 = vmatprep.mubr.f32.mxu0 %v3198
      %3922 = vmatmul.mubr.f32.gmra.mrb[0].mxu0 %v3166
      %v3923 = vpop.f32.mrb[0].mxu0
      %v3924 = vadd.f32 %v3699, %v3923
      %v3925 = vpop.f32.mrb[0].mxu0
      %3926 = vmatprep.mubr.f32.mxu0 %v3199
      %3927 = vmatmul.mubr.f32.gmra.mrb[0].mxu0 %v3167
      %v3928 = vpop.f32.mrb[0].mxu0
      %v3929 = vadd.f32 %v3704, %v3928
      %v3930 = vpop.f32.mrb[0].mxu0
      %3931 = vmatprep.mubr.f32.mxu0 %v3200
      %3932 = vmatmul.mubr.f32.gmra.mrb[0].mxu0 %v3168
      %v3933 = vpop.f32.mrb[0].mxu0
      %v3934 = vadd.f32 %v3709, %v3933
      %v3935 = vpop.f32.mrb[0].mxu0
      %3936 = vmatprep.mubr.f32.mxu0 %v3201
      %3937 = vmatmul.mubr.f32.gmra.mrb[0].mxu0 %v3169
      %v3938 = vpop.f32.mrb[0].mxu0
      %v3939 = vadd.f32 %v3714, %v3938
      %v3940 = vpop.f32.mrb[0].mxu0
      %3941 = vmatprep.mubr.f32.mxu0 %v3202
      %3942 = vmatmul.mubr.f32.gmra.mrb[0].mxu0 %v3170
      %v3943 = vpop.f32.mrb[0].mxu0
      %v3944 = vadd.f32 %v3719, %v3943
      %v3945 = vpop.f32.mrb[0].mxu0
      %3946 = vmatprep.mubr.f32.mxu0 %v3203
      %3947 = vmatmul.mubr.f32.gmra.mrb[0].mxu0 %v3171
      %v3948 = vpop.f32.mrb[0].mxu0
      %v3949 = vadd.f32 %v3724, %v3948
      %v3950 = vpop.f32.mrb[0].mxu0
      %3951 = vmatprep.mubr.f32.mxu0 %v3204
      %3952 = vmatmul.mubr.f32.gmra.mrb[0].mxu0 %v3172
      %v3953 = vpop.f32.mrb[0].mxu0
      %v3954 = vadd.f32 %v3729, %v3953
      %v3955 = vpop.f32.mrb[0].mxu0
      %3956 = vmatprep.mubr.f32.mxu0 %v3205
      %3957 = vmatmul.mubr.f32.gmra.mrb[0].mxu0 %v3173
      %v3958 = vpop.f32.mrb[0].mxu0
      %v3959 = vadd.f32 %v3734, %v3958
      %v3960 = vpop.f32.mrb[0].mxu0
      %3961 = vmatprep.mubr.f32.mxu0 %v3206
      %3962 = vmatmul.mubr.f32.gmra.mrb[0].mxu0 %v3174
      %v3963 = vpop.f32.mrb[0].mxu0
      %v3964 = vadd.f32 %v3739, %v3963
      %v3965 = vpop.f32.mrb[0].mxu0
      %3966 = vdwg.mxu0
      %3967 = vmatprep.subr.mxu0 0.0
      %3968 = vmatpush1.msra.mxu0 %v3431
      %3969 = vmatprep.subr.mxu0 0.0
      %3970 = vmatpush1.msra.mxu0 %v3432
      %3971 = vmatprep.subr.mxu0 0.0
      %3972 = vmatpush1.msra.mxu0 %v3433
      %3973 = vmatprep.subr.mxu0 0.0
      %3974 = vmatpush1.msra.mxu0 %v3434
      %3975 = vmatprep.subr.mxu0 0.0
      %3976 = vmatpush1.msra.mxu0 %v3435
      %3977 = vmatprep.subr.mxu0 0.0
      %3978 = vmatpush1.msra.mxu0 %v3436
      %3979 = vmatprep.subr.mxu0 0.0
      %3980 = vmatpush1.msra.mxu0 %v3437
      %3981 = vmatprep.subr.mxu0 0.0
      %3982 = vmatpush1.msra.mxu0 %v3438
      %3983 = vmatprep.subr.mxu0 0.0
      %3984 = vmatpush1.msra.mxu0 %v3439
      %3985 = vmatprep.subr.mxu0 0.0
      %3986 = vmatpush1.msra.mxu0 %v3440
      %3987 = vmatprep.subr.mxu0 0.0
      %3988 = vmatpush1.msra.mxu0 %v3441
      %3989 = vmatprep.subr.mxu0 0.0
      %3990 = vmatpush1.msra.mxu0 %v3442
      %3991 = vmatprep.subr.mxu0 0.0
      %3992 = vmatpush1.msra.mxu0 %v3443
      %3993 = vmatprep.subr.mxu0 0.0
      %3994 = vmatpush1.msra.mxu0 %v3444
      %3995 = vmatprep.subr.mxu0 0.0
      %3996 = vmatpush1.msra.mxu0 %v3445
      %3997 = vmatprep.subr.mxu0 0.0
      %3998 = vmatpush1.msra.mxu0 %v3446
      %3999 = vmatprep.subr.mxu0 0.0
      %4000 = vmatpush1.msra.mxu0 %v3447
      %4001 = vmatprep.subr.mxu0 0.0
      %4002 = vmatpush1.msra.mxu0 %v3448
      %4003 = vmatprep.subr.mxu0 0.0
      %4004 = vmatpush1.msra.mxu0 %v3449
      %4005 = vmatprep.subr.mxu0 0.0
      %4006 = vmatpush1.msra.mxu0 %v3450
      %4007 = vmatprep.subr.mxu0 0.0
      %4008 = vmatpush1.msra.mxu0 %v3451
      %4009 = vmatprep.subr.mxu0 0.0
      %4010 = vmatpush1.msra.mxu0 %v3452
      %4011 = vmatprep.subr.mxu0 0.0
      %4012 = vmatpush1.msra.mxu0 %v3453
      %4013 = vmatprep.subr.mxu0 0.0
      %4014 = vmatpush1.msra.mxu0 %v3454
      %4015 = vmatprep.subr.mxu0 0.0
      %4016 = vmatpush1.msra.mxu0 %v3455
      %4017 = vmatprep.subr.mxu0 0.0
      %4018 = vmatpush1.msra.mxu0 %v3456
      %4019 = vmatprep.subr.mxu0 0.0
      %4020 = vmatpush1.msra.mxu0 %v3457
      %4021 = vmatprep.subr.mxu0 0.0
      %4022 = vmatpush1.msra.mxu0 %v3458
      %4023 = vmatprep.subr.mxu0 0.0
      %4024 = vmatpush1.msra.mxu0 %v3459
      %4025 = vmatprep.subr.mxu0 0.0
      %4026 = vmatpush1.msra.mxu0 %v3460
      %4027 = vmatprep.subr.mxu0 0.0
      %4028 = vmatpush1.msra.mxu0 %v3461
      %4029 = vmatprep.subr.mxu0 0.0
      %4030 = vmatpush1.msra.mxu0 %v3462
      %4031 = vmatprep.mubr.f32.mxu0 %v3239
      %4032 = vmatmul.mubr.f32.gmra.mrb[0].mxu0 %v3207
      %v4033 = vpop.f32.mrb[0].mxu0
      %v4034 = vadd.f32 %v3809, %v4033
      %v4035 = vpop.f32.mrb[0].mxu0
      %4036 = vmatprep.mubr.f32.mxu0 %v3240
      %4037 = vmatmul.mubr.f32.gmra.mrb[0].mxu0 %v3208
      %v4038 = vpop.f32.mrb[0].mxu0
      %v4039 = vadd.f32 %v3814, %v4038
      %v4040 = vpop.f32.mrb[0].mxu0
      %4041 = vmatprep.mubr.f32.mxu0 %v3241
      %4042 = vmatmul.mubr.f32.gmra.mrb[0].mxu0 %v3209
      %v4043 = vpop.f32.mrb[0].mxu0
      %v4044 = vadd.f32 %v3819, %v4043
      %v4045 = vpop.f32.mrb[0].mxu0
      %4046 = vmatprep.mubr.f32.mxu0 %v3242
      %4047 = vmatmul.mubr.f32.gmra.mrb[0].mxu0 %v3210
      %v4048 = vpop.f32.mrb[0].mxu0
      %v4049 = vadd.f32 %v3824, %v4048
      %v4050 = vpop.f32.mrb[0].mxu0
      %4051 = vmatprep.mubr.f32.mxu0 %v3243
      %4052 = vmatmul.mubr.f32.gmra.mrb[0].mxu0 %v3211
      %v4053 = vpop.f32.mrb[0].mxu0
      %v4054 = vadd.f32 %v3829, %v4053
      %v4055 = vpop.f32.mrb[0].mxu0
      %4056 = vmatprep.mubr.f32.mxu0 %v3244
      %4057 = vmatmul.mubr.f32.gmra.mrb[0].mxu0 %v3212
      %v4058 = vpop.f32.mrb[0].mxu0
      %v4059 = vadd.f32 %v3834, %v4058
      %v4060 = vpop.f32.mrb[0].mxu0
      %4061 = vmatprep.mubr.f32.mxu0 %v3245
      %4062 = vmatmul.mubr.f32.gmra.mrb[0].mxu0 %v3213
      %v4063 = vpop.f32.mrb[0].mxu0
      %v4064 = vadd.f32 %v3839, %v4063
      %v4065 = vpop.f32.mrb[0].mxu0
      %4066 = vmatprep.mubr.f32.mxu0 %v3246
      %4067 = vmatmul.mubr.f32.gmra.mrb[0].mxu0 %v3214
      %v4068 = vpop.f32.mrb[0].mxu0
      %v4069 = vadd.f32 %v3844, %v4068
      %v4070 = vpop.f32.mrb[0].mxu0
      %4071 = vmatprep.mubr.f32.mxu0 %v3247
      %4072 = vmatmul.mubr.f32.gmra.mrb[0].mxu0 %v3215
      %v4073 = vpop.f32.mrb[0].mxu0
      %v4074 = vadd.f32 %v3849, %v4073
      %v4075 = vpop.f32.mrb[0].mxu0
      %4076 = vmatprep.mubr.f32.mxu0 %v3248
      %4077 = vmatmul.mubr.f32.gmra.mrb[0].mxu0 %v3216
      %v4078 = vpop.f32.mrb[0].mxu0
      %v4079 = vadd.f32 %v3854, %v4078
      %v4080 = vpop.f32.mrb[0].mxu0
      %4081 = vmatprep.mubr.f32.mxu0 %v3249
      %4082 = vmatmul.mubr.f32.gmra.mrb[0].mxu0 %v3217
      %v4083 = vpop.f32.mrb[0].mxu0
      %v4084 = vadd.f32 %v3859, %v4083
      %v4085 = vpop.f32.mrb[0].mxu0
      %4086 = vmatprep.mubr.f32.mxu0 %v3250
      %4087 = vmatmul.mubr.f32.gmra.mrb[0].mxu0 %v3218
      %v4088 = vpop.f32.mrb[0].mxu0
      %v4089 = vadd.f32 %v3864, %v4088
      %v4090 = vpop.f32.mrb[0].mxu0
      %4091 = vmatprep.mubr.f32.mxu0 %v3251
      %4092 = vmatmul.mubr.f32.gmra.mrb[0].mxu0 %v3219
      %v4093 = vpop.f32.mrb[0].mxu0
      %v4094 = vadd.f32 %v3869, %v4093
      %v4095 = vpop.f32.mrb[0].mxu0
      %4096 = vmatprep.mubr.f32.mxu0 %v3252
      %4097 = vmatmul.mubr.f32.gmra.mrb[0].mxu0 %v3220
      %v4098 = vpop.f32.mrb[0].mxu0
      %v4099 = vadd.f32 %v3874, %v4098
      %v4100 = vpop.f32.mrb[0].mxu0
      %4101 = vmatprep.mubr.f32.mxu0 %v3253
      %4102 = vmatmul.mubr.f32.gmra.mrb[0].mxu0 %v3221
      %v4103 = vpop.f32.mrb[0].mxu0
      %v4104 = vadd.f32 %v3879, %v4103
      %v4105 = vpop.f32.mrb[0].mxu0
      %4106 = vmatprep.mubr.f32.mxu0 %v3254
      %4107 = vmatmul.mubr.f32.gmra.mrb[0].mxu0 %v3222
      %v4108 = vpop.f32.mrb[0].mxu0
      %v4109 = vadd.f32 %v3884, %v4108
      %v4110 = vpop.f32.mrb[0].mxu0
      %4111 = vmatprep.mubr.f32.mxu0 %v3255
      %4112 = vmatmul.mubr.f32.gmra.mrb[0].mxu0 %v3223
      %v4113 = vpop.f32.mrb[0].mxu0
      %v4114 = vadd.f32 %v3889, %v4113
      %v4115 = vpop.f32.mrb[0].mxu0
      %4116 = vmatprep.mubr.f32.mxu0 %v3256
      %4117 = vmatmul.mubr.f32.gmra.mrb[0].mxu0 %v3224
      %v4118 = vpop.f32.mrb[0].mxu0
      %v4119 = vadd.f32 %v3894, %v4118
      %v4120 = vpop.f32.mrb[0].mxu0
      %4121 = vmatprep.mubr.f32.mxu0 %v3257
      %4122 = vmatmul.mubr.f32.gmra.mrb[0].mxu0 %v3225
      %v4123 = vpop.f32.mrb[0].mxu0
      %v4124 = vadd.f32 %v3899, %v4123
      %v4125 = vpop.f32.mrb[0].mxu0
      %4126 = vmatprep.mubr.f32.mxu0 %v3258
      %4127 = vmatmul.mubr.f32.gmra.mrb[0].mxu0 %v3226
      %v4128 = vpop.f32.mrb[0].mxu0
      %v4129 = vadd.f32 %v3904, %v4128
      %v4130 = vpop.f32.mrb[0].mxu0
      %4131 = vmatprep.mubr.f32.mxu0 %v3259
      %4132 = vmatmul.mubr.f32.gmra.mrb[0].mxu0 %v3227
      %v4133 = vpop.f32.mrb[0].mxu0
      %v4134 = vadd.f32 %v3909, %v4133
      %v4135 = vpop.f32.mrb[0].mxu0
      %4136 = vmatprep.mubr.f32.mxu0 %v3260
      %4137 = vmatmul.mubr.f32.gmra.mrb[0].mxu0 %v3228
      %v4138 = vpop.f32.mrb[0].mxu0
      %v4139 = vadd.f32 %v3914, %v4138
      %v4140 = vpop.f32.mrb[0].mxu0
      %4141 = vmatprep.mubr.f32.mxu0 %v3261
      %4142 = vmatmul.mubr.f32.gmra.mrb[0].mxu0 %v3229
      %v4143 = vpop.f32.mrb[0].mxu0
      %v4144 = vadd.f32 %v3919, %v4143
      %v4145 = vpop.f32.mrb[0].mxu0
      %4146 = vmatprep.mubr.f32.mxu0 %v3262
      %4147 = vmatmul.mubr.f32.gmra.mrb[0].mxu0 %v3230
      %v4148 = vpop.f32.mrb[0].mxu0
      %v4149 = vadd.f32 %v3924, %v4148
      %v4150 = vpop.f32.mrb[0].mxu0
      %4151 = vmatprep.mubr.f32.mxu0 %v3263
      %4152 = vmatmul.mubr.f32.gmra.mrb[0].mxu0 %v3231
      %v4153 = vpop.f32.mrb[0].mxu0
      %v4154 = vadd.f32 %v3929, %v4153
      %v4155 = vpop.f32.mrb[0].mxu0
      %4156 = vmatprep.mubr.f32.mxu0 %v3264
      %4157 = vmatmul.mubr.f32.gmra.mrb[0].mxu0 %v3232
      %v4158 = vpop.f32.mrb[0].mxu0
      %v4159 = vadd.f32 %v3934, %v4158
      %v4160 = vpop.f32.mrb[0].mxu0
      %4161 = vmatprep.mubr.f32.mxu0 %v3265
      %4162 = vmatmul.mubr.f32.gmra.mrb[0].mxu0 %v3233
      %v4163 = vpop.f32.mrb[0].mxu0
      %v4164 = vadd.f32 %v3939, %v4163
      %v4165 = vpop.f32.mrb[0].mxu0
      %4166 = vmatprep.mubr.f32.mxu0 %v3266
      %4167 = vmatmul.mubr.f32.gmra.mrb[0].mxu0 %v3234
      %v4168 = vpop.f32.mrb[0].mxu0
      %v4169 = vadd.f32 %v3944, %v4168
      %v4170 = vpop.f32.mrb[0].mxu0
      %4171 = vmatprep.mubr.f32.mxu0 %v3267
      %4172 = vmatmul.mubr.f32.gmra.mrb[0].mxu0 %v3235
      %v4173 = vpop.f32.mrb[0].mxu0
      %v4174 = vadd.f32 %v3949, %v4173
      %v4175 = vpop.f32.mrb[0].mxu0
      %4176 = vmatprep.mubr.f32.mxu0 %v3268
      %4177 = vmatmul.mubr.f32.gmra.mrb[0].mxu0 %v3236
      %v4178 = vpop.f32.mrb[0].mxu0
      %v4179 = vadd.f32 %v3954, %v4178
      %v4180 = vpop.f32.mrb[0].mxu0
      %4181 = vmatprep.mubr.f32.mxu0 %v3269
      %4182 = vmatmul.mubr.f32.gmra.mrb[0].mxu0 %v3237
      %v4183 = vpop.f32.mrb[0].mxu0
      %v4184 = vadd.f32 %v3959, %v4183
      %v4185 = vpop.f32.mrb[0].mxu0
      %4186 = vmatprep.mubr.f32.mxu0 %v3270
      %4187 = vmatmul.mubr.f32.gmra.mrb[0].mxu0 %v3238
      %v4188 = vpop.f32.mrb[0].mxu0
      %v4189 = vadd.f32 %v3964, %v4188
      %v4190 = vpop.f32.mrb[0].mxu0
      %4191 = vdwg.mxu0
      %4192 = vmatprep.subr.mxu0 0.0
      %4193 = vmatpush1.msra.mxu0 %v3463
      %4194 = vmatprep.subr.mxu0 0.0
      %4195 = vmatpush1.msra.mxu0 %v3464
      %4196 = vmatprep.subr.mxu0 0.0
      %4197 = vmatpush1.msra.mxu0 %v3465
      %4198 = vmatprep.subr.mxu0 0.0
      %4199 = vmatpush1.msra.mxu0 %v3466
      %4200 = vmatprep.subr.mxu0 0.0
      %4201 = vmatpush1.msra.mxu0 %v3467
      %4202 = vmatprep.subr.mxu0 0.0
      %4203 = vmatpush1.msra.mxu0 %v3468
      %4204 = vmatprep.subr.mxu0 0.0
      %4205 = vmatpush1.msra.mxu0 %v3469
      %4206 = vmatprep.subr.mxu0 0.0
      %4207 = vmatpush1.msra.mxu0 %v3470
      %4208 = vmatprep.subr.mxu0 0.0
      %4209 = vmatpush1.msra.mxu0 %v3471
      %4210 = vmatprep.subr.mxu0 0.0
      %4211 = vmatpush1.msra.mxu0 %v3472
      %4212 = vmatprep.subr.mxu0 0.0
      %4213 = vmatpush1.msra.mxu0 %v3473
      %4214 = vmatprep.subr.mxu0 0.0
      %4215 = vmatpush1.msra.mxu0 %v3474
      %4216 = vmatprep.subr.mxu0 0.0
      %4217 = vmatpush1.msra.mxu0 %v3475
      %4218 = vmatprep.subr.mxu0 0.0
      %4219 = vmatpush1.msra.mxu0 %v3476
      %4220 = vmatprep.subr.mxu0 0.0
      %4221 = vmatpush1.msra.mxu0 %v3477
      %4222 = vmatprep.subr.mxu0 0.0
      %4223 = vmatpush1.msra.mxu0 %v3478
      %4224 = vmatprep.subr.mxu0 0.0
      %4225 = vmatpush1.msra.mxu0 %v3479
      %4226 = vmatprep.subr.mxu0 0.0
      %4227 = vmatpush1.msra.mxu0 %v3480
      %4228 = vmatprep.subr.mxu0 0.0
      %4229 = vmatpush1.msra.mxu0 %v3481
      %4230 = vmatprep.subr.mxu0 0.0
      %4231 = vmatpush1.msra.mxu0 %v3482
      %4232 = vmatprep.subr.mxu0 0.0
      %4233 = vmatpush1.msra.mxu0 %v3483
      %4234 = vmatprep.subr.mxu0 0.0
      %4235 = vmatpush1.msra.mxu0 %v3484
      %4236 = vmatprep.subr.mxu0 0.0
      %4237 = vmatpush1.msra.mxu0 %v3485
      %4238 = vmatprep.subr.mxu0 0.0
      %4239 = vmatpush1.msra.mxu0 %v3486
      %4240 = vmatprep.subr.mxu0 0.0
      %4241 = vmatpush1.msra.mxu0 %v3487
      %4242 = vmatprep.subr.mxu0 0.0
      %4243 = vmatpush1.msra.mxu0 %v3488
      %4244 = vmatprep.subr.mxu0 0.0
      %4245 = vmatpush1.msra.mxu0 %v3489
      %4246 = vmatprep.subr.mxu0 0.0
      %4247 = vmatpush1.msra.mxu0 %v3490
      %4248 = vmatprep.subr.mxu0 0.0
      %4249 = vmatpush1.msra.mxu0 %v3491
      %4250 = vmatprep.subr.mxu0 0.0
      %4251 = vmatpush1.msra.mxu0 %v3492
      %4252 = vmatprep.subr.mxu0 0.0
      %4253 = vmatpush1.msra.mxu0 %v3493
      %4254 = vmatprep.subr.mxu0 0.0
      %4255 = vmatpush1.msra.mxu0 %v3494
      %4256 = vmatprep.mubr.f32.mxu0 %v3303
      %4257 = vmatmul.mubr.f32.gmra.mrb[0].mxu0 %v3271
      %v4258 = vpop.f32.mrb[0].mxu0
      %v4259 = vadd.f32 %v4034, %v4258
      %v4260 = vpop.f32.mrb[0].mxu0
      %4261 = vmatprep.mubr.f32.mxu0 %v3304
      %4262 = vmatmul.mubr.f32.gmra.mrb[0].mxu0 %v3272
      %v4263 = vpop.f32.mrb[0].mxu0
      %v4264 = vadd.f32 %v4039, %v4263
      %v4265 = vpop.f32.mrb[0].mxu0
      %4266 = vmatprep.mubr.f32.mxu0 %v3305
      %4267 = vmatmul.mubr.f32.gmra.mrb[0].mxu0 %v3273
      %v4268 = vpop.f32.mrb[0].mxu0
      %v4269 = vadd.f32 %v4044, %v4268
      %v4270 = vpop.f32.mrb[0].mxu0
      %4271 = vmatprep.mubr.f32.mxu0 %v3306
      %4272 = vmatmul.mubr.f32.gmra.mrb[0].mxu0 %v3274
      %v4273 = vpop.f32.mrb[0].mxu0
      %v4274 = vadd.f32 %v4049, %v4273
      %v4275 = vpop.f32.mrb[0].mxu0
      %4276 = vmatprep.mubr.f32.mxu0 %v3307
      %4277 = vmatmul.mubr.f32.gmra.mrb[0].mxu0 %v3275
      %v4278 = vpop.f32.mrb[0].mxu0
      %v4279 = vadd.f32 %v4054, %v4278
      %v4280 = vpop.f32.mrb[0].mxu0
      %4281 = vmatprep.mubr.f32.mxu0 %v3308
      %4282 = vmatmul.mubr.f32.gmra.mrb[0].mxu0 %v3276
      %v4283 = vpop.f32.mrb[0].mxu0
      %v4284 = vadd.f32 %v4059, %v4283
      %v4285 = vpop.f32.mrb[0].mxu0
      %4286 = vmatprep.mubr.f32.mxu0 %v3309
      %4287 = vmatmul.mubr.f32.gmra.mrb[0].mxu0 %v3277
      %v4288 = vpop.f32.mrb[0].mxu0
      %v4289 = vadd.f32 %v4064, %v4288
      %v4290 = vpop.f32.mrb[0].mxu0
      %4291 = vmatprep.mubr.f32.mxu0 %v3310
      %4292 = vmatmul.mubr.f32.gmra.mrb[0].mxu0 %v3278
      %v4293 = vpop.f32.mrb[0].mxu0
      %v4294 = vadd.f32 %v4069, %v4293
      %v4295 = vpop.f32.mrb[0].mxu0
      %4296 = vmatprep.mubr.f32.mxu0 %v3311
      %4297 = vmatmul.mubr.f32.gmra.mrb[0].mxu0 %v3279
      %v4298 = vpop.f32.mrb[0].mxu0
      %v4299 = vadd.f32 %v4074, %v4298
      %v4300 = vpop.f32.mrb[0].mxu0
      %4301 = vmatprep.mubr.f32.mxu0 %v3312
      %4302 = vmatmul.mubr.f32.gmra.mrb[0].mxu0 %v3280
      %v4303 = vpop.f32.mrb[0].mxu0
      %v4304 = vadd.f32 %v4079, %v4303
      %v4305 = vpop.f32.mrb[0].mxu0
      %4306 = vmatprep.mubr.f32.mxu0 %v3313
      %4307 = vmatmul.mubr.f32.gmra.mrb[0].mxu0 %v3281
      %v4308 = vpop.f32.mrb[0].mxu0
      %v4309 = vadd.f32 %v4084, %v4308
      %v4310 = vpop.f32.mrb[0].mxu0
      %4311 = vmatprep.mubr.f32.mxu0 %v3314
      %4312 = vmatmul.mubr.f32.gmra.mrb[0].mxu0 %v3282
      %v4313 = vpop.f32.mrb[0].mxu0
      %v4314 = vadd.f32 %v4089, %v4313
      %v4315 = vpop.f32.mrb[0].mxu0
      %4316 = vmatprep.mubr.f32.mxu0 %v3315
      %4317 = vmatmul.mubr.f32.gmra.mrb[0].mxu0 %v3283
      %v4318 = vpop.f32.mrb[0].mxu0
      %v4319 = vadd.f32 %v4094, %v4318
      %v4320 = vpop.f32.mrb[0].mxu0
      %4321 = vmatprep.mubr.f32.mxu0 %v3316
      %4322 = vmatmul.mubr.f32.gmra.mrb[0].mxu0 %v3284
      %v4323 = vpop.f32.mrb[0].mxu0
      %v4324 = vadd.f32 %v4099, %v4323
      %v4325 = vpop.f32.mrb[0].mxu0
      %4326 = vmatprep.mubr.f32.mxu0 %v3317
      %4327 = vmatmul.mubr.f32.gmra.mrb[0].mxu0 %v3285
      %v4328 = vpop.f32.mrb[0].mxu0
      %v4329 = vadd.f32 %v4104, %v4328
      %v4330 = vpop.f32.mrb[0].mxu0
      %4331 = vmatprep.mubr.f32.mxu0 %v3318
      %4332 = vmatmul.mubr.f32.gmra.mrb[0].mxu0 %v3286
      %v4333 = vpop.f32.mrb[0].mxu0
      %v4334 = vadd.f32 %v4109, %v4333
      %v4335 = vpop.f32.mrb[0].mxu0
      %4336 = vmatprep.mubr.f32.mxu0 %v3319
      %4337 = vmatmul.mubr.f32.gmra.mrb[0].mxu0 %v3287
      %v4338 = vpop.f32.mrb[0].mxu0
      %v4339 = vadd.f32 %v4114, %v4338
      %v4340 = vpop.f32.mrb[0].mxu0
      %4341 = vmatprep.mubr.f32.mxu0 %v3320
      %4342 = vmatmul.mubr.f32.gmra.mrb[0].mxu0 %v3288
      %v4343 = vpop.f32.mrb[0].mxu0
      %v4344 = vadd.f32 %v4119, %v4343
      %v4345 = vpop.f32.mrb[0].mxu0
      %4346 = vmatprep.mubr.f32.mxu0 %v3321
      %4347 = vmatmul.mubr.f32.gmra.mrb[0].mxu0 %v3289
      %v4348 = vpop.f32.mrb[0].mxu0
      %v4349 = vadd.f32 %v4124, %v4348
      %v4350 = vpop.f32.mrb[0].mxu0
      %4351 = vmatprep.mubr.f32.mxu0 %v3322
      %4352 = vmatmul.mubr.f32.gmra.mrb[0].mxu0 %v3290
      %v4353 = vpop.f32.mrb[0].mxu0
      %v4354 = vadd.f32 %v4129, %v4353
      %v4355 = vpop.f32.mrb[0].mxu0
      %4356 = vmatprep.mubr.f32.mxu0 %v3323
      %4357 = vmatmul.mubr.f32.gmra.mrb[0].mxu0 %v3291
      %v4358 = vpop.f32.mrb[0].mxu0
      %v4359 = vadd.f32 %v4134, %v4358
      %v4360 = vpop.f32.mrb[0].mxu0
      %4361 = vmatprep.mubr.f32.mxu0 %v3324
      %4362 = vmatmul.mubr.f32.gmra.mrb[0].mxu0 %v3292
      %v4363 = vpop.f32.mrb[0].mxu0
      %v4364 = vadd.f32 %v4139, %v4363
      %v4365 = vpop.f32.mrb[0].mxu0
      %4366 = vmatprep.mubr.f32.mxu0 %v3325
      %4367 = vmatmul.mubr.f32.gmra.mrb[0].mxu0 %v3293
      %v4368 = vpop.f32.mrb[0].mxu0
      %v4369 = vadd.f32 %v4144, %v4368
      %v4370 = vpop.f32.mrb[0].mxu0
      %4371 = vmatprep.mubr.f32.mxu0 %v3326
      %4372 = vmatmul.mubr.f32.gmra.mrb[0].mxu0 %v3294
      %v4373 = vpop.f32.mrb[0].mxu0
      %v4374 = vadd.f32 %v4149, %v4373
      %v4375 = vpop.f32.mrb[0].mxu0
      %4376 = vmatprep.mubr.f32.mxu0 %v3327
      %4377 = vmatmul.mubr.f32.gmra.mrb[0].mxu0 %v3295
      %v4378 = vpop.f32.mrb[0].mxu0
      %v4379 = vadd.f32 %v4154, %v4378
      %v4380 = vpop.f32.mrb[0].mxu0
      %4381 = vmatprep.mubr.f32.mxu0 %v3328
      %4382 = vmatmul.mubr.f32.gmra.mrb[0].mxu0 %v3296
      %v4383 = vpop.f32.mrb[0].mxu0
      %v4384 = vadd.f32 %v4159, %v4383
      %v4385 = vpop.f32.mrb[0].mxu0
      %4386 = vmatprep.mubr.f32.mxu0 %v3329
      %4387 = vmatmul.mubr.f32.gmra.mrb[0].mxu0 %v3297
      %v4388 = vpop.f32.mrb[0].mxu0
      %v4389 = vadd.f32 %v4164, %v4388
      %v4390 = vpop.f32.mrb[0].mxu0
      %4391 = vmatprep.mubr.f32.mxu0 %v3330
      %4392 = vmatmul.mubr.f32.gmra.mrb[0].mxu0 %v3298
      %v4393 = vpop.f32.mrb[0].mxu0
      %v4394 = vadd.f32 %v4169, %v4393
      %v4395 = vpop.f32.mrb[0].mxu0
      %4396 = vmatprep.mubr.f32.mxu0 %v3331
      %4397 = vmatmul.mubr.f32.gmra.mrb[0].mxu0 %v3299
      %v4398 = vpop.f32.mrb[0].mxu0
      %v4399 = vadd.f32 %v4174, %v4398
      %v4400 = vpop.f32.mrb[0].mxu0
      %4401 = vmatprep.mubr.f32.mxu0 %v3332
      %4402 = vmatmul.mubr.f32.gmra.mrb[0].mxu0 %v3300
      %v4403 = vpop.f32.mrb[0].mxu0
      %v4404 = vadd.f32 %v4179, %v4403
      %v4405 = vpop.f32.mrb[0].mxu0
      %4406 = vmatprep.mubr.f32.mxu0 %v3333
      %4407 = vmatmul.mubr.f32.gmra.mrb[0].mxu0 %v3301
      %v4408 = vpop.f32.mrb[0].mxu0
      %v4409 = vadd.f32 %v4184, %v4408
      %v4410 = vpop.f32.mrb[0].mxu0
      %4411 = vmatprep.mubr.f32.mxu0 %v3334
      %4412 = vmatmul.mubr.f32.gmra.mrb[0].mxu0 %v3302
      %v4413 = vpop.f32.mrb[0].mxu0
      %v4414 = vadd.f32 %v4189, %v4413
      %v4415 = vpop.f32.mrb[0].mxu0
      %4416 = vdwg.mxu0
      %4417 = vmatprep.subr.mxu0 0.0
      %4418 = vmatpush1.msra.mxu0 %v3495
      %4419 = vmatprep.subr.mxu0 0.0
      %4420 = vmatpush1.msra.mxu0 %v3496
      %4421 = vmatprep.subr.mxu0 0.0
      %4422 = vmatpush1.msra.mxu0 %v3497
      %4423 = vmatprep.subr.mxu0 0.0
      %4424 = vmatpush1.msra.mxu0 %v3498
      %4425 = vmatprep.subr.mxu0 0.0
      %4426 = vmatpush1.msra.mxu0 %v3499
      %4427 = vmatprep.subr.mxu0 0.0
      %4428 = vmatpush1.msra.mxu0 %v3500
      %4429 = vmatprep.subr.mxu0 0.0
      %4430 = vmatpush1.msra.mxu0 %v3501
      %4431 = vmatprep.subr.mxu0 0.0
      %4432 = vmatpush1.msra.mxu0 %v3502
      %4433 = vmatprep.subr.mxu0 0.0
      %4434 = vmatpush1.msra.mxu0 %v3503
      %4435 = vmatprep.subr.mxu0 0.0
      %4436 = vmatpush1.msra.mxu0 %v3504
      %4437 = vmatprep.subr.mxu0 0.0
      %4438 = vmatpush1.msra.mxu0 %v3505
      %4439 = vmatprep.subr.mxu0 0.0
      %4440 = vmatpush1.msra.mxu0 %v3506
      %4441 = vmatprep.subr.mxu0 0.0
      %4442 = vmatpush1.msra.mxu0 %v3507
      %4443 = vmatprep.subr.mxu0 0.0
      %4444 = vmatpush1.msra.mxu0 %v3508
      %4445 = vmatprep.subr.mxu0 0.0
      %4446 = vmatpush1.msra.mxu0 %v3509
      %4447 = vmatprep.subr.mxu0 0.0
      %4448 = vmatpush1.msra.mxu0 %v3510
      %4449 = vmatprep.subr.mxu0 0.0
      %4450 = vmatpush1.msra.mxu0 0.0
      %4451 = vmatprep.subr.mxu0 0.0
      %4452 = vmatpush1.msra.mxu0 0.0
      %4453 = vmatprep.subr.mxu0 0.0
      %4454 = vmatpush1.msra.mxu0 0.0
      %4455 = vmatprep.subr.mxu0 0.0
      %4456 = vmatpush1.msra.mxu0 0.0
      %4457 = vmatprep.subr.mxu0 0.0
      %4458 = vmatpush1.msra.mxu0 0.0
      %4459 = vmatprep.subr.mxu0 0.0
      %4460 = vmatpush1.msra.mxu0 0.0
      %4461 = vmatprep.subr.mxu0 0.0
      %4462 = vmatpush1.msra.mxu0 0.0
      %4463 = vmatprep.subr.mxu0 0.0
      %4464 = vmatpush1.msra.mxu0 0.0
      %4465 = vmatprep.subr.mxu0 0.0
      %4466 = vmatpush1.msra.mxu0 0.0
      %4467 = vmatprep.subr.mxu0 0.0
      %4468 = vmatpush1.msra.mxu0 0.0
      %4469 = vmatprep.subr.mxu0 0.0
      %4470 = vmatpush1.msra.mxu0 0.0
      %4471 = vmatprep.subr.mxu0 0.0
      %4472 = vmatpush1.msra.mxu0 0.0
      %4473 = vmatprep.subr.mxu0 0.0
      %4474 = vmatpush1.msra.mxu0 0.0
      %4475 = vmatprep.subr.mxu0 0.0
      %4476 = vmatpush1.msra.mxu0 0.0
      %4477 = vmatprep.subr.mxu0 0.0
      %4478 = vmatpush1.msra.mxu0 0.0
      %4479 = vmatprep.subr.mxu0 0.0
      %4480 = vmatpush1.msra.mxu0 0.0
      %4481 = vmatprep.mubr.f32.mxu0 0.0
      %4482 = vmatmul.mubr.f32.gmra.mrb[0].mxu0 %v3335
      %v4483 = vpop.f32.mrb[0].mxu0
      %v4484 = vadd.f32 %v4259, %v4483
      %v4485 = vpop.f32.mrb[0].mxu0
      %4486 = vmatprep.mubr.f32.mxu0 0.0
      %4487 = vmatmul.mubr.f32.gmra.mrb[0].mxu0 %v3336
      %v4488 = vpop.f32.mrb[0].mxu0
      %v4489 = vadd.f32 %v4264, %v4488
      %v4490 = vpop.f32.mrb[0].mxu0
      %4491 = vmatprep.mubr.f32.mxu0 0.0
      %4492 = vmatmul.mubr.f32.gmra.mrb[0].mxu0 %v3337
      %v4493 = vpop.f32.mrb[0].mxu0
      %v4494 = vadd.f32 %v4269, %v4493
      %v4495 = vpop.f32.mrb[0].mxu0
      %4496 = vmatprep.mubr.f32.mxu0 0.0
      %4497 = vmatmul.mubr.f32.gmra.mrb[0].mxu0 %v3338
      %v4498 = vpop.f32.mrb[0].mxu0
      %v4499 = vadd.f32 %v4274, %v4498
      %v4500 = vpop.f32.mrb[0].mxu0
      %4501 = vmatprep.mubr.f32.mxu0 0.0
      %4502 = vmatmul.mubr.f32.gmra.mrb[0].mxu0 %v3339
      %v4503 = vpop.f32.mrb[0].mxu0
      %v4504 = vadd.f32 %v4279, %v4503
      %v4505 = vpop.f32.mrb[0].mxu0
      %4506 = vmatprep.mubr.f32.mxu0 0.0
      %4507 = vmatmul.mubr.f32.gmra.mrb[0].mxu0 %v3340
      %v4508 = vpop.f32.mrb[0].mxu0
      %v4509 = vadd.f32 %v4284, %v4508
      %v4510 = vpop.f32.mrb[0].mxu0
      %4511 = vmatprep.mubr.f32.mxu0 0.0
      %4512 = vmatmul.mubr.f32.gmra.mrb[0].mxu0 %v3341
      %v4513 = vpop.f32.mrb[0].mxu0
      %v4514 = vadd.f32 %v4289, %v4513
      %v4515 = vpop.f32.mrb[0].mxu0
      %4516 = vmatprep.mubr.f32.mxu0 0.0
      %4517 = vmatmul.mubr.f32.gmra.mrb[0].mxu0 %v3342
      %v4518 = vpop.f32.mrb[0].mxu0
      %v4519 = vadd.f32 %v4294, %v4518
      %v4520 = vpop.f32.mrb[0].mxu0
      %4521 = vmatprep.mubr.f32.mxu0 0.0
      %4522 = vmatmul.mubr.f32.gmra.mrb[0].mxu0 %v3343
      %v4523 = vpop.f32.mrb[0].mxu0
      %v4524 = vadd.f32 %v4299, %v4523
      %v4525 = vpop.f32.mrb[0].mxu0
      %4526 = vmatprep.mubr.f32.mxu0 0.0
      %4527 = vmatmul.mubr.f32.gmra.mrb[0].mxu0 %v3344
      %v4528 = vpop.f32.mrb[0].mxu0
      %v4529 = vadd.f32 %v4304, %v4528
      %v4530 = vpop.f32.mrb[0].mxu0
      %4531 = vmatprep.mubr.f32.mxu0 0.0
      %4532 = vmatmul.mubr.f32.gmra.mrb[0].mxu0 %v3345
      %v4533 = vpop.f32.mrb[0].mxu0
      %v4534 = vadd.f32 %v4309, %v4533
      %v4535 = vpop.f32.mrb[0].mxu0
      %4536 = vmatprep.mubr.f32.mxu0 0.0
      %4537 = vmatmul.mubr.f32.gmra.mrb[0].mxu0 %v3346
      %v4538 = vpop.f32.mrb[0].mxu0
      %v4539 = vadd.f32 %v4314, %v4538
      %v4540 = vpop.f32.mrb[0].mxu0
      %4541 = vmatprep.mubr.f32.mxu0 0.0
      %4542 = vmatmul.mubr.f32.gmra.mrb[0].mxu0 %v3347
      %v4543 = vpop.f32.mrb[0].mxu0
      %v4544 = vadd.f32 %v4319, %v4543
      %v4545 = vpop.f32.mrb[0].mxu0
      %4546 = vmatprep.mubr.f32.mxu0 0.0
      %4547 = vmatmul.mubr.f32.gmra.mrb[0].mxu0 %v3348
      %v4548 = vpop.f32.mrb[0].mxu0
      %v4549 = vadd.f32 %v4324, %v4548
      %v4550 = vpop.f32.mrb[0].mxu0
      %4551 = vmatprep.mubr.f32.mxu0 0.0
      %4552 = vmatmul.mubr.f32.gmra.mrb[0].mxu0 %v3349
      %v4553 = vpop.f32.mrb[0].mxu0
      %v4554 = vadd.f32 %v4329, %v4553
      %v4555 = vpop.f32.mrb[0].mxu0
      %4556 = vmatprep.mubr.f32.mxu0 0.0
      %4557 = vmatmul.mubr.f32.gmra.mrb[0].mxu0 %v3350
      %v4558 = vpop.f32.mrb[0].mxu0
      %v4559 = vadd.f32 %v4334, %v4558
      %v4560 = vpop.f32.mrb[0].mxu0
      %4561 = vmatprep.mubr.f32.mxu0 0.0
      %4562 = vmatmul.mubr.f32.gmra.mrb[0].mxu0 %v3351
      %v4563 = vpop.f32.mrb[0].mxu0
      %v4564 = vadd.f32 %v4339, %v4563
      %v4565 = vpop.f32.mrb[0].mxu0
      %4566 = vmatprep.mubr.f32.mxu0 0.0
      %4567 = vmatmul.mubr.f32.gmra.mrb[0].mxu0 %v3352
      %v4568 = vpop.f32.mrb[0].mxu0
      %v4569 = vadd.f32 %v4344, %v4568
      %v4570 = vpop.f32.mrb[0].mxu0
      %4571 = vmatprep.mubr.f32.mxu0 0.0
      %4572 = vmatmul.mubr.f32.gmra.mrb[0].mxu0 %v3353
      %v4573 = vpop.f32.mrb[0].mxu0
      %v4574 = vadd.f32 %v4349, %v4573
      %v4575 = vpop.f32.mrb[0].mxu0
      %4576 = vmatprep.mubr.f32.mxu0 0.0
      %4577 = vmatmul.mubr.f32.gmra.mrb[0].mxu0 %v3354
      %v4578 = vpop.f32.mrb[0].mxu0
      %v4579 = vadd.f32 %v4354, %v4578
      %v4580 = vpop.f32.mrb[0].mxu0
      %4581 = vmatprep.mubr.f32.mxu0 0.0
      %4582 = vmatmul.mubr.f32.gmra.mrb[0].mxu0 %v3355
      %v4583 = vpop.f32.mrb[0].mxu0
      %v4584 = vadd.f32 %v4359, %v4583
      %v4585 = vpop.f32.mrb[0].mxu0
      %4586 = vmatprep.mubr.f32.mxu0 0.0
      %4587 = vmatmul.mubr.f32.gmra.mrb[0].mxu0 %v3356
      %v4588 = vpop.f32.mrb[0].mxu0
      %v4589 = vadd.f32 %v4364, %v4588
      %v4590 = vpop.f32.mrb[0].mxu0
      %4591 = vmatprep.mubr.f32.mxu0 0.0
      %4592 = vmatmul.mubr.f32.gmra.mrb[0].mxu0 %v3357
      %v4593 = vpop.f32.mrb[0].mxu0
      %v4594 = vadd.f32 %v4369, %v4593
      %v4595 = vpop.f32.mrb[0].mxu0
      %4596 = vmatprep.mubr.f32.mxu0 0.0
      %4597 = vmatmul.mubr.f32.gmra.mrb[0].mxu0 %v3358
      %v4598 = vpop.f32.mrb[0].mxu0
      %v4599 = vadd.f32 %v4374, %v4598
      %v4600 = vpop.f32.mrb[0].mxu0
      %4601 = vmatprep.mubr.f32.mxu0 0.0
      %4602 = vmatmul.mubr.f32.gmra.mrb[0].mxu0 %v3359
      %v4603 = vpop.f32.mrb[0].mxu0
      %v4604 = vadd.f32 %v4379, %v4603
      %v4605 = vpop.f32.mrb[0].mxu0
      %4606 = vmatprep.mubr.f32.mxu0 0.0
      %4607 = vmatmul.mubr.f32.gmra.mrb[0].mxu0 %v3360
      %v4608 = vpop.f32.mrb[0].mxu0
      %v4609 = vadd.f32 %v4384, %v4608
      %v4610 = vpop.f32.mrb[0].mxu0
      %4611 = vmatprep.mubr.f32.mxu0 0.0
      %4612 = vmatmul.mubr.f32.gmra.mrb[0].mxu0 %v3361
      %v4613 = vpop.f32.mrb[0].mxu0
      %v4614 = vadd.f32 %v4389, %v4613
      %v4615 = vpop.f32.mrb[0].mxu0
      %4616 = vmatprep.mubr.f32.mxu0 0.0
      %4617 = vmatmul.mubr.f32.gmra.mrb[0].mxu0 %v3362
      %v4618 = vpop.f32.mrb[0].mxu0
      %v4619 = vadd.f32 %v4394, %v4618
      %v4620 = vpop.f32.mrb[0].mxu0
      %4621 = vmatprep.mubr.f32.mxu0 0.0
      %4622 = vmatmul.mubr.f32.gmra.mrb[0].mxu0 %v3363
      %v4623 = vpop.f32.mrb[0].mxu0
      %v4624 = vadd.f32 %v4399, %v4623
      %v4625 = vpop.f32.mrb[0].mxu0
      %4626 = vmatprep.mubr.f32.mxu0 0.0
      %4627 = vmatmul.mubr.f32.gmra.mrb[0].mxu0 %v3364
      %v4628 = vpop.f32.mrb[0].mxu0
      %v4629 = vadd.f32 %v4404, %v4628
      %v4630 = vpop.f32.mrb[0].mxu0
      %4631 = vmatprep.mubr.f32.mxu0 0.0
      %4632 = vmatmul.mubr.f32.gmra.mrb[0].mxu0 %v3365
      %v4633 = vpop.f32.mrb[0].mxu0
      %v4634 = vadd.f32 %v4409, %v4633
      %v4635 = vpop.f32.mrb[0].mxu0
      %4636 = vmatprep.mubr.f32.mxu0 0.0
      %4637 = vmatmul.mubr.f32.gmra.mrb[0].mxu0 %v3366
      %v4638 = vpop.f32.mrb[0].mxu0
      %v4639 = vadd.f32 %v4414, %v4638
      %v4640 = vpop.f32.mrb[0].mxu0
      %4641 = vdwg.mxu0
      %v4642 = vld [vmem:[%s9] sm:$0xff]
      %v4643 = vld [vmem:[%s9 + $0x8] sm:$0xff]
      %v4644 = vld [vmem:[%s9 + $0x10] sm:$0xff]
      %v4645 = vld [vmem:[%s9 + $0x18] sm:$0xff]
      %v4646 = vld [vmem:[%s9 + $0x20] sm:$0xff]
      %v4647 = vld [vmem:[%s9 + $0x28] sm:$0xff]
      %v4648 = vld [vmem:[%s9 + $0x30] sm:$0xff]
      %v4649 = vld [vmem:[%s9 + $0x38] sm:$0xff]
      %v4650 = vld [vmem:[%s9 + $0x40] sm:$0xff]
      %v4651 = vld [vmem:[%s9 + $0x48] sm:$0xff]
      %v4652 = vld [vmem:[%s9 + $0x50] sm:$0xff]
      %v4653 = vld [vmem:[%s9 + $0x58] sm:$0xff]
      %v4654 = vld [vmem:[%s9 + $0x60] sm:$0xff]
      %v4655 = vld [vmem:[%s9 + $0x68] sm:$0xff]
      %v4656 = vld [vmem:[%s9 + $0x70] sm:$0xff]
      %v4657 = vld [vmem:[%s9 + $0x78] sm:$0xff]
      %v4658 = vld [vmem:[%s10] sm:$0x1]
      %v4660 = vlaneseq
      %v4661 = vshrl.u32 %v4660, 7
      %v4662 = vsub.s32 0, %v4661
      %v4663 = vrot.slane %v4658, %v4662
      %4665 = vmatprep.subr.mxu0 0.0
      %4666 = vmatpush1.msra.mxu0 %v4642
      %4667 = vmatprep.subr.mxu0 0.0
      %4668 = vmatpush1.msra.mxu0 %v4643
      %4669 = vmatprep.subr.mxu0 0.0
      %4670 = vmatpush1.msra.mxu0 %v4644
      %4671 = vmatprep.subr.mxu0 0.0
      %4672 = vmatpush1.msra.mxu0 %v4645
      %4673 = vmatprep.subr.mxu0 0.0
      %4674 = vmatpush1.msra.mxu0 %v4646
      %4675 = vmatprep.subr.mxu0 0.0
      %4676 = vmatpush1.msra.mxu0 %v4647
      %4677 = vmatprep.subr.mxu0 0.0
      %4678 = vmatpush1.msra.mxu0 %v4648
      %4679 = vmatprep.subr.mxu0 0.0
      %4680 = vmatpush1.msra.mxu0 %v4649
      %4681 = vmatprep.subr.mxu0 0.0
      %4682 = vmatpush1.msra.mxu0 %v4650
      %4683 = vmatprep.subr.mxu0 0.0
      %4684 = vmatpush1.msra.mxu0 %v4651
      %4685 = vmatprep.subr.mxu0 0.0
      %4686 = vmatpush1.msra.mxu0 %v4652
      %4687 = vmatprep.subr.mxu0 0.0
      %4688 = vmatpush1.msra.mxu0 %v4653
      %4689 = vmatprep.subr.mxu0 0.0
      %4690 = vmatpush1.msra.mxu0 %v4654
      %4691 = vmatprep.subr.mxu0 0.0
      %4692 = vmatpush1.msra.mxu0 %v4655
      %4693 = vmatprep.subr.mxu0 0.0
      %4694 = vmatpush1.msra.mxu0 %v4656
      %4695 = vmatprep.subr.mxu0 0.0
      %4696 = vmatpush1.msra.mxu0 %v4657
      %4697 = vmatprep.subr.mxu0 0.0
      %4698 = vmatpush1.msra.mxu0 0.0
      %4699 = vmatprep.subr.mxu0 0.0
      %4700 = vmatpush1.msra.mxu0 0.0
      %4701 = vmatprep.subr.mxu0 0.0
      %4702 = vmatpush1.msra.mxu0 0.0
      %4703 = vmatprep.subr.mxu0 0.0
      %4704 = vmatpush1.msra.mxu0 0.0
      %4705 = vmatprep.subr.mxu0 0.0
      %4706 = vmatpush1.msra.mxu0 0.0
      %4707 = vmatprep.subr.mxu0 0.0
      %4708 = vmatpush1.msra.mxu0 0.0
      %4709 = vmatprep.subr.mxu0 0.0
      %4710 = vmatpush1.msra.mxu0 0.0
      %4711 = vmatprep.subr.mxu0 0.0
      %4712 = vmatpush1.msra.mxu0 0.0
      %4713 = vmatprep.subr.mxu0 0.0
      %4714 = vmatpush1.msra.mxu0 0.0
      %4715 = vmatprep.subr.mxu0 0.0
      %4716 = vmatpush1.msra.mxu0 0.0
      %4717 = vmatprep.subr.mxu0 0.0
      %4718 = vmatpush1.msra.mxu0 0.0
      %4719 = vmatprep.subr.mxu0 0.0
      %4720 = vmatpush1.msra.mxu0 0.0
      %4721 = vmatprep.subr.mxu0 0.0
      %4722 = vmatpush1.msra.mxu0 0.0
      %4723 = vmatprep.subr.mxu0 0.0
      %4724 = vmatpush1.msra.mxu0 0.0
      %4725 = vmatprep.subr.mxu0 0.0
      %4726 = vmatpush1.msra.mxu0 0.0
      %4727 = vmatprep.subr.mxu0 0.0
      %4728 = vmatpush1.msra.mxu0 0.0
      %4729 = vmatprep.mubr.f32.mxu0 0.0
      %4730 = vmatmul.mubr.f32.gmra.mrb[0].mxu0 %v430
      %v4731 = vpop.f32.mrb[0].mxu0
      %v4732 = vadd.f32 %v4663, %v4731
      %v4733 = vpop.f32.mrb[0].mxu0
      %4734 = vmatprep.mubr.f32.mxu0 0.0
      %4735 = vmatmul.mubr.f32.gmra.mrb[0].mxu0 %v431
      %v4736 = vpop.f32.mrb[0].mxu0
      %v4737 = vadd.f32 %v4663, %v4736
      %v4738 = vpop.f32.mrb[0].mxu0
      %4739 = vmatprep.mubr.f32.mxu0 0.0
      %4740 = vmatmul.mubr.f32.gmra.mrb[0].mxu0 %v432
      %v4741 = vpop.f32.mrb[0].mxu0
      %v4742 = vadd.f32 %v4663, %v4741
      %v4743 = vpop.f32.mrb[0].mxu0
      %4744 = vmatprep.mubr.f32.mxu0 0.0
      %4745 = vmatmul.mubr.f32.gmra.mrb[0].mxu0 %v433
      %v4746 = vpop.f32.mrb[0].mxu0
      %v4747 = vadd.f32 %v4663, %v4746
      %v4748 = vpop.f32.mrb[0].mxu0
      %4749 = vmatprep.mubr.f32.mxu0 0.0
      %4750 = vmatmul.mubr.f32.gmra.mrb[0].mxu0 %v434
      %v4751 = vpop.f32.mrb[0].mxu0
      %v4752 = vadd.f32 %v4663, %v4751
      %v4753 = vpop.f32.mrb[0].mxu0
      %4754 = vmatprep.mubr.f32.mxu0 0.0
      %4755 = vmatmul.mubr.f32.gmra.mrb[0].mxu0 %v435
      %v4756 = vpop.f32.mrb[0].mxu0
      %v4757 = vadd.f32 %v4663, %v4756
      %v4758 = vpop.f32.mrb[0].mxu0
      %4759 = vmatprep.mubr.f32.mxu0 0.0
      %4760 = vmatmul.mubr.f32.gmra.mrb[0].mxu0 %v436
      %v4761 = vpop.f32.mrb[0].mxu0
      %v4762 = vadd.f32 %v4663, %v4761
      %v4763 = vpop.f32.mrb[0].mxu0
      %4764 = vmatprep.mubr.f32.mxu0 0.0
      %4765 = vmatmul.mubr.f32.gmra.mrb[0].mxu0 %v437
      %v4766 = vpop.f32.mrb[0].mxu0
      %v4767 = vadd.f32 %v4663, %v4766
      %v4768 = vpop.f32.mrb[0].mxu0
      %4769 = vmatprep.mubr.f32.mxu0 0.0
      %4770 = vmatmul.mubr.f32.gmra.mrb[0].mxu0 %v438
      %v4771 = vpop.f32.mrb[0].mxu0
      %v4772 = vadd.f32 %v4663, %v4771
      %v4773 = vpop.f32.mrb[0].mxu0
      %4774 = vmatprep.mubr.f32.mxu0 0.0
      %4775 = vmatmul.mubr.f32.gmra.mrb[0].mxu0 %v439
      %v4776 = vpop.f32.mrb[0].mxu0
      %v4777 = vadd.f32 %v4663, %v4776
      %v4778 = vpop.f32.mrb[0].mxu0
      %4779 = vmatprep.mubr.f32.mxu0 0.0
      %4780 = vmatmul.mubr.f32.gmra.mrb[0].mxu0 %v440
      %v4781 = vpop.f32.mrb[0].mxu0
      %v4782 = vadd.f32 %v4663, %v4781
      %v4783 = vpop.f32.mrb[0].mxu0
      %4784 = vmatprep.mubr.f32.mxu0 0.0
      %4785 = vmatmul.mubr.f32.gmra.mrb[0].mxu0 %v441
      %v4786 = vpop.f32.mrb[0].mxu0
      %v4787 = vadd.f32 %v4663, %v4786
      %v4788 = vpop.f32.mrb[0].mxu0
      %4789 = vmatprep.mubr.f32.mxu0 0.0
      %4790 = vmatmul.mubr.f32.gmra.mrb[0].mxu0 %v442
      %v4791 = vpop.f32.mrb[0].mxu0
      %v4792 = vadd.f32 %v4663, %v4791
      %v4793 = vpop.f32.mrb[0].mxu0
      %4794 = vmatprep.mubr.f32.mxu0 0.0
      %4795 = vmatmul.mubr.f32.gmra.mrb[0].mxu0 %v443
      %v4796 = vpop.f32.mrb[0].mxu0
      %v4797 = vadd.f32 %v4663, %v4796
      %v4798 = vpop.f32.mrb[0].mxu0
      %4799 = vmatprep.mubr.f32.mxu0 0.0
      %4800 = vmatmul.mubr.f32.gmra.mrb[0].mxu0 %v444
      %v4801 = vpop.f32.mrb[0].mxu0
      %v4802 = vadd.f32 %v4663, %v4801
      %v4803 = vpop.f32.mrb[0].mxu0
      %4804 = vmatprep.mubr.f32.mxu0 0.0
      %4805 = vmatmul.mubr.f32.gmra.mrb[0].mxu0 %v445
      %v4806 = vpop.f32.mrb[0].mxu0
      %v4807 = vadd.f32 %v4663, %v4806
      %v4808 = vpop.f32.mrb[0].mxu0
      %4809 = vmatprep.mubr.f32.mxu0 0.0
      %4810 = vmatmul.mubr.f32.gmra.mrb[0].mxu0 %v446
      %v4811 = vpop.f32.mrb[0].mxu0
      %v4812 = vadd.f32 %v4663, %v4811
      %v4813 = vpop.f32.mrb[0].mxu0
      %4814 = vmatprep.mubr.f32.mxu0 0.0
      %4815 = vmatmul.mubr.f32.gmra.mrb[0].mxu0 %v447
      %v4816 = vpop.f32.mrb[0].mxu0
      %v4817 = vadd.f32 %v4663, %v4816
      %v4818 = vpop.f32.mrb[0].mxu0
      %4819 = vmatprep.mubr.f32.mxu0 0.0
      %4820 = vmatmul.mubr.f32.gmra.mrb[0].mxu0 %v448
      %v4821 = vpop.f32.mrb[0].mxu0
      %v4822 = vadd.f32 %v4663, %v4821
      %v4823 = vpop.f32.mrb[0].mxu0
      %4824 = vmatprep.mubr.f32.mxu0 0.0
      %4825 = vmatmul.mubr.f32.gmra.mrb[0].mxu0 %v449
      %v4826 = vpop.f32.mrb[0].mxu0
      %v4827 = vadd.f32 %v4663, %v4826
      %v4828 = vpop.f32.mrb[0].mxu0
      %4829 = vmatprep.mubr.f32.mxu0 0.0
      %4830 = vmatmul.mubr.f32.gmra.mrb[0].mxu0 %v450
      %v4831 = vpop.f32.mrb[0].mxu0
      %v4832 = vadd.f32 %v4663, %v4831
      %v4833 = vpop.f32.mrb[0].mxu0
      %4834 = vmatprep.mubr.f32.mxu0 0.0
      %4835 = vmatmul.mubr.f32.gmra.mrb[0].mxu0 %v451
      %v4836 = vpop.f32.mrb[0].mxu0
      %v4837 = vadd.f32 %v4663, %v4836
      %v4838 = vpop.f32.mrb[0].mxu0
      %4839 = vmatprep.mubr.f32.mxu0 0.0
      %4840 = vmatmul.mubr.f32.gmra.mrb[0].mxu0 %v452
      %v4841 = vpop.f32.mrb[0].mxu0
      %v4842 = vadd.f32 %v4663, %v4841
      %v4843 = vpop.f32.mrb[0].mxu0
      %4844 = vmatprep.mubr.f32.mxu0 0.0
      %4845 = vmatmul.mubr.f32.gmra.mrb[0].mxu0 %v453
      %v4846 = vpop.f32.mrb[0].mxu0
      %v4847 = vadd.f32 %v4663, %v4846
      %v4848 = vpop.f32.mrb[0].mxu0
      %4849 = vmatprep.mubr.f32.mxu0 0.0
      %4850 = vmatmul.mubr.f32.gmra.mrb[0].mxu0 %v454
      %v4851 = vpop.f32.mrb[0].mxu0
      %v4852 = vadd.f32 %v4663, %v4851
      %v4853 = vpop.f32.mrb[0].mxu0
      %4854 = vmatprep.mubr.f32.mxu0 0.0
      %4855 = vmatmul.mubr.f32.gmra.mrb[0].mxu0 %v455
      %v4856 = vpop.f32.mrb[0].mxu0
      %v4857 = vadd.f32 %v4663, %v4856
      %v4858 = vpop.f32.mrb[0].mxu0
      %4859 = vmatprep.mubr.f32.mxu0 0.0
      %4860 = vmatmul.mubr.f32.gmra.mrb[0].mxu0 %v456
      %v4861 = vpop.f32.mrb[0].mxu0
      %v4862 = vadd.f32 %v4663, %v4861
      %v4863 = vpop.f32.mrb[0].mxu0
      %4864 = vmatprep.mubr.f32.mxu0 0.0
      %4865 = vmatmul.mubr.f32.gmra.mrb[0].mxu0 %v457
      %v4866 = vpop.f32.mrb[0].mxu0
      %v4867 = vadd.f32 %v4663, %v4866
      %v4868 = vpop.f32.mrb[0].mxu0
      %4869 = vmatprep.mubr.f32.mxu0 0.0
      %4870 = vmatmul.mubr.f32.gmra.mrb[0].mxu0 %v458
      %v4871 = vpop.f32.mrb[0].mxu0
      %v4872 = vadd.f32 %v4663, %v4871
      %v4873 = vpop.f32.mrb[0].mxu0
      %4874 = vmatprep.mubr.f32.mxu0 0.0
      %4875 = vmatmul.mubr.f32.gmra.mrb[0].mxu0 %v459
      %v4876 = vpop.f32.mrb[0].mxu0
      %v4877 = vadd.f32 %v4663, %v4876
      %v4878 = vpop.f32.mrb[0].mxu0
      %4879 = vmatprep.mubr.f32.mxu0 0.0
      %4880 = vmatmul.mubr.f32.gmra.mrb[0].mxu0 %v460
      %v4881 = vpop.f32.mrb[0].mxu0
      %v4882 = vadd.f32 %v4663, %v4881
      %v4883 = vpop.f32.mrb[0].mxu0
      %4884 = vmatprep.mubr.f32.mxu0 0.0
      %4885 = vmatmul.mubr.f32.gmra.mrb[0].mxu0 %v461
      %v4886 = vpop.f32.mrb[0].mxu0
      %v4887 = vadd.f32 %v4663, %v4886
      %v4888 = vpop.f32.mrb[0].mxu0
      %4889 = vdwg.mxu0
      %v4890 = vadd.f32 %v4732, %v4484
      %v4891 = vadd.f32 %v4737, %v4489
      %v4892 = vadd.f32 %v4742, %v4494
      %v4893 = vadd.f32 %v4747, %v4499
      %v4894 = vadd.f32 %v4752, %v4504
      %v4895 = vadd.f32 %v4757, %v4509
      %v4896 = vadd.f32 %v4762, %v4514
      %v4897 = vadd.f32 %v4767, %v4519
      %v4898 = vadd.f32 %v4772, %v4524
      %v4899 = vadd.f32 %v4777, %v4529
      %v4900 = vadd.f32 %v4782, %v4534
      %v4901 = vadd.f32 %v4787, %v4539
      %v4902 = vadd.f32 %v4792, %v4544
      %v4903 = vadd.f32 %v4797, %v4549
      %v4904 = vadd.f32 %v4802, %v4554
      %v4905 = vadd.f32 %v4807, %v4559
      %v4906 = vadd.f32 %v4812, %v4564
      %v4907 = vadd.f32 %v4817, %v4569
      %v4908 = vadd.f32 %v4822, %v4574
      %v4909 = vadd.f32 %v4827, %v4579
      %v4910 = vadd.f32 %v4832, %v4584
      %v4911 = vadd.f32 %v4837, %v4589
      %v4912 = vadd.f32 %v4842, %v4594
      %v4913 = vadd.f32 %v4847, %v4599
      %v4914 = vadd.f32 %v4852, %v4604
      %v4915 = vadd.f32 %v4857, %v4609
      %v4916 = vadd.f32 %v4862, %v4614
      %v4917 = vadd.f32 %v4867, %v4619
      %v4918 = vadd.f32 %v4872, %v4624
      %v4919 = vadd.f32 %v4877, %v4629
      %v4920 = vadd.f32 %v4882, %v4634
      %v4921 = vadd.f32 %v4887, %v4639
      %4922 = vst [vmem:[%s386] sm:$0xff] %v4890
      %4923 = vst [vmem:[%s386 + $0x8] sm:$0xff] %v4891
      %4924 = vst [vmem:[%s386 + $0x10] sm:$0xff] %v4892
      %4925 = vst [vmem:[%s386 + $0x18] sm:$0xff] %v4893
      %4926 = vst [vmem:[%s386 + $0x20] sm:$0xff] %v4894
      %4927 = vst [vmem:[%s386 + $0x28] sm:$0xff] %v4895
      %4928 = vst [vmem:[%s386 + $0x30] sm:$0xff] %v4896
      %4929 = vst [vmem:[%s386 + $0x38] sm:$0xff] %v4897
      %4930 = vst [vmem:[%s386 + $0x40] sm:$0xff] %v4898
      %4931 = vst [vmem:[%s386 + $0x48] sm:$0xff] %v4899
      %4932 = vst [vmem:[%s386 + $0x50] sm:$0xff] %v4900
      %4933 = vst [vmem:[%s386 + $0x58] sm:$0xff] %v4901
      %4934 = vst [vmem:[%s386 + $0x60] sm:$0xff] %v4902
      %4935 = vst [vmem:[%s386 + $0x68] sm:$0xff] %v4903
      %4936 = vst [vmem:[%s386 + $0x70] sm:$0xff] %v4904
      %4937 = vst [vmem:[%s386 + $0x78] sm:$0xff] %v4905
      %4938 = vst [vmem:[%s386 + $0x80] sm:$0xff] %v4906
      %4939 = vst [vmem:[%s386 + $0x88] sm:$0xff] %v4907
      %4940 = vst [vmem:[%s386 + $0x90] sm:$0xff] %v4908
      %4941 = vst [vmem:[%s386 + $0x98] sm:$0xff] %v4909
      %4942 = vst [vmem:[%s386 + $0xa0] sm:$0xff] %v4910
      %4943 = vst [vmem:[%s386 + $0xa8] sm:$0xff] %v4911
      %4944 = vst [vmem:[%s386 + $0xb0] sm:$0xff] %v4912
      %4945 = vst [vmem:[%s386 + $0xb8] sm:$0xff] %v4913
      %4946 = vst [vmem:[%s386 + $0xc0] sm:$0xff] %v4914
      %4947 = vst [vmem:[%s386 + $0xc8] sm:$0xff] %v4915
      %4948 = vst [vmem:[%s386 + $0xd0] sm:$0xff] %v4916
      %4949 = vst [vmem:[%s386 + $0xd8] sm:$0xff] %v4917
      %4950 = vst [vmem:[%s386 + $0xe0] sm:$0xff] %v4918
      %4951 = vst [vmem:[%s386 + $0xe8] sm:$0xff] %v4919
      %4952 = vst [vmem:[%s386 + $0xf0] sm:$0xff] %v4920
      %4953 = vst [vmem:[%s386 + $0xf8] sm:$0xff] %v4921
      %p4954 = scmp.lt.s32.totalorder %s22, 1
      %s4955 = scalar_select %p4954, %s22, 1
      %s4956 = smul.addr %s4955, 32
      %s4957 = smul.addr %s4956, 8
      %s4958 = scalar_lea.vmem %s11, %s4957
      // Predicated region
      $region65: #{resblock_pallas_nhwc.1} parent=63 // pred_check
        %p4959 = pneg %p276
      $region66: #{resblock_pallas_nhwc.1} parent=63 // pred_check_branch
        %4961 = sbr.rel (%p4959) target = $region68
      $region67: #{resblock_pallas_nhwc.1} parent=63 // pred_region
        _
      $region68: #{resblock_pallas_nhwc.1} parent=63 // pred_fallthru
        _
    $region64: #{resblock_pallas_nhwc.1} parent=5 // pred_fallthru
      _
    %p4962 = scmp.le.s32.totalorder 2, %s17
    // Predicated region
    $region69: #{resblock_pallas_nhwc.1} parent=5 // pred_check
      %p4963 = pneg %p4962
    $region70: #{resblock_pallas_nhwc.1} parent=5 // pred_check_branch
      %4965 = sbr.rel (%p4963) target = $region72
    $region71: #{resblock_pallas_nhwc.1} parent=5 // pred_region
      %s4966 = ssub.s32 %s17, 2
      // Predicated region
      $region73: #{resblock_pallas_nhwc.1} parent=71 // pred_check
        %p4967 = pneg %p282
      $region74: #{resblock_pallas_nhwc.1} parent=71 // pred_check_branch
        %4969 = sbr.rel (%p4967) target = $region76
      $region75: #{resblock_pallas_nhwc.1} parent=71 // pred_region
        %p4970 = scmp.lt.s32.totalorder %s23, 1
        %s4971 = scalar_select %p4970, %s23, 1
        %s4972 = smul.addr %s4971, 32
        %s4973 = smul.addr %s4972, 8
        %s4974 = scalar_lea.vmem %s11, %s4973
      $region76: #{resblock_pallas_nhwc.1} parent=71 // pred_fallthru
        _
    $region72: #{resblock_pallas_nhwc.1} parent=5 // pred_fallthru
      _
  $region6: #{resblock_pallas_nhwc.1} parent=0 // loop_footer
    %s21 = sadd.s32 1, %s17
  $region7: #{resblock_pallas_nhwc.1} parent=0 // loop_footer_branch
    %16 = sbr.rel target = $region3
  $region8: #{resblock_pallas_nhwc.1} parent=0 // loop_exit
    _

</llo_original>
